<compile_context>
chip_gen: v6e
topology: v6e:2x2x1
jax: 0.10.0
libtpu: 0.0.40
codegen_flags: <defaults>
</compile_context>

<pallas_src>
import numpy as np
import jax
import jax.numpy as jnp
from jax import lax
from jax.experimental import pallas as pl
from jax.experimental.pallas import tpu as pltpu


def _holo_qkv_kernel(x_ref, w1s_ref, w1x_ref, b1_ref, w2_ref, b2_ref,
                     ffwd_ref, cinv_ref, sinv_ref, out_ref, carry_ref):
    f32 = jnp.float32
    Tt, D = x_ref.shape
    mdt = w1s_ref.dtype                    # bf16 (MXU-native) or f32

    # Reset the running per-sequence prefix sum at the first row tile.
    @pl.when(pl.program_id(1) == 0)
    def _():
        carry_ref[...] = jnp.zeros_like(carry_ref)

    x = x_ref[...]                         # (Tt, D) f32
    x_m = x.astype(mdt)

    # Exclusive causal cumsum: strictly-lower mask built in-kernel (cheap VPU
    # iota/compare, hides under MXU work) + carried prefix from earlier tiles.
    row = lax.broadcasted_iota(jnp.int32, (Tt, Tt), 0)
    col = lax.broadcasted_iota(jnp.int32, (Tt, Tt), 1)
    lmask = (row > col).astype(mdt)
    s = jnp.dot(lmask, x_m, preferred_element_type=f32) + carry_ref[...]
    carry_ref[...] = carry_ref[...] + jnp.sum(x, axis=0, keepdims=True)
    s_m = s.astype(mdt)

    ffwd = ffwd_ref[...]                   # (D, 2D) = [C | -S]

    def dft(v_m):                          # forward DFT in one fused matmul
        spec = jnp.dot(v_m, ffwd, preferred_element_type=f32)
        return spec[:, :D], spec[:, D:]    # lane-aligned when D % 128 == 0

    sr, si = dft(s_m)                      # spectrum of s

    # Five 2-layer MLP heads (entity_a, entity_b, relation_w/m/b), static loop;
    # head weights live on a leading axis so per-head extraction is free.
    specs = []
    for hd in range(5):
        h1 = (jnp.dot(s_m, w1s_ref[hd], preferred_element_type=f32)
              + jnp.dot(x_m, w1x_ref[hd], preferred_element_type=f32)
              + b1_ref[hd])
        h1 = jnp.where(h1 >= 0, h1, 0.01 * h1)           # LeakyReLU(0.01)
        o = (jnp.dot(h1.astype(mdt), w2_ref[hd], preferred_element_type=f32)
             + b2_ref[hd])
        re, im = dft(o.astype(mdt))
        # TODO(synk): match hrr.unit_projection's exact eps convention
        # (X * rsqrt(|X|^2 + eps) here vs a possible X / (|X| + eps)).
        inv_mag = lax.rsqrt(re * re + im * im + 1e-12)   # EUP rsqrt
        specs.append((re * inv_mag, im * inv_mag))

    (ea_r, ea_i), (eb_r, eb_i), (rw_r, rw_i), (rm_r, rm_i), (rb_r, rb_i) = specs

    # Frequency-domain composition of the whole bind/unbind graph.
    rs_r = rw_r + rm_r + rb_r
    rs_i = rw_i + rm_i + rb_i
    p_r = ea_r * rs_r - ea_i * rs_i        # Ea * (Rw + Rm + Rb)
    p_i = ea_r * rs_i + ea_i * rs_r
    ar = p_r * eb_r - p_i * eb_i           # ... * Eb
    ai = p_r * eb_i + p_i * eb_r
    ea2 = ea_r * ea_r + ea_i * ea_i
    eb2 = eb_r * eb_r + eb_i * eb_i
    g = (ea2 * (rw_r * rw_r + rw_i * rw_i + rm_r * rm_r + rm_i * rm_i)
         + eb2 * (rb_r * rb_r + rb_i * rb_i))

    out_re = (ar - g * sr).astype(mdt)
    out_im = (ai - g * si).astype(mdt)

    # Inverse DFT of the composed spectrum (1/D folded into cinv/sinv).
    res = (jnp.dot(out_re, cinv_ref[...], preferred_element_type=f32)
           - jnp.dot(out_im, sinv_ref[...], preferred_element_type=f32))
    out_ref[...] = res.astype(out_ref.dtype)


def init_params(key, dims):
    """Deterministic init mimicking nn.Linear's U(-1/sqrt(fan_in), +) for the
    five heads (entity_a, entity_b, relation_w, relation_m, relation_b)."""
    in_dims, hid = 2 * dims, 4 * dims
    k0, k1, k2, k3 = jax.random.split(key, 4)
    lim1 = 1.0 / np.sqrt(in_dims)
    lim2 = 1.0 / np.sqrt(hid)
    w1 = jax.random.uniform(k0, (5, in_dims, hid), jnp.float32, -lim1, lim1)
    b1 = jax.random.uniform(k1, (5, 1, hid), jnp.float32, -lim1, lim1)
    w2 = jax.random.uniform(k2, (5, hid, dims), jnp.float32, -lim2, lim2)
    b2 = jax.random.uniform(k3, (5, 1, dims), jnp.float32, -lim2, lim2)
    w1s = w1[:, :dims, :]    # half of W1 multiplying s
    w1x = w1[:, dims:, :]    # half of W1 multiplying x
    return w1s, w1x, b1, w2, b2


def _dft_matrices(dims):
    n = np.arange(dims)
    ang = 2.0 * np.pi * np.outer(n, n) / dims
    c = np.cos(ang).astype(np.float32)
    s = np.sin(ang).astype(np.float32)
    ffwd = np.concatenate([c, -s], axis=1)       # X = x @ [C | -S]  ->  [re | im]
    cinv = c / dims                              # x = re @ (C/D) - im @ (S/D)
    sinv = s / dims
    return jnp.asarray(ffwd), jnp.asarray(cinv), jnp.asarray(sinv)


def _pick_row_tile(T, target):
    if T <= target:
        return T
    for t in range(target, 7, -1):
        if T % t == 0 and t % 8 == 0:            # sublane-aligned divisor of T
            return t
    return T


def _vmem_limit_bytes():
    # Leave headroom below physical VMEM (64 MiB v7x, 128 MiB v5e/v6e).
    try:
        cap = pltpu.get_tpu_info().vmem_capacity_bytes
        return int(min(cap * 0.85, 100 * 1024 * 1024))
    except Exception:
        return 64 * 1024 * 1024


def _build_call(B, T, D, Tt, single_buffer_consts, vmem_limit):
    hid = 4 * D

    def const_spec(shape):
        nd = len(shape)
        imap = lambda b, j: (0,) * nd
        if single_buffer_consts:
            # Constant operands (block index never changes) don't need the
            # default double buffer; halve their resident VMEM footprint.
            return pl.BlockSpec(shape, imap, pipeline_mode=pl.Buffered(1))
        return pl.BlockSpec(shape, imap)

    return pl.pallas_call(
        _holo_qkv_kernel,
        out_shape=jax.ShapeDtypeStruct((B, T, D), jnp.float32),
        grid=(B, T // Tt),
        in_specs=[
            pl.BlockSpec((None, Tt, D), lambda b, j: (b, j, 0)),  # x row tile
            const_spec((5, D, hid)),                              # W1, s half
            const_spec((5, D, hid)),                              # W1, x half
            const_spec((5, 1, hid)),                              # b1
            const_spec((5, hid, D)),                              # W2 per head
            const_spec((5, 1, D)),                                # b2
            const_spec((D, 2 * D)),                               # fwd DFT [C|-S]
            const_spec((D, D)),                                   # inv DFT cos/D
            const_spec((D, D)),                                   # inv DFT sin/D
        ],
        out_specs=pl.BlockSpec((None, Tt, D), lambda b, j: (b, j, 0)),
        scratch_shapes=[pltpu.VMEM((1, D), jnp.float32)],         # cumsum carry
        compiler_params=pltpu.CompilerParams(
            dimension_semantics=("parallel", "arbitrary"),
            vmem_limit_bytes=vmem_limit),
    )


def causal_holographic_qkv(x, params, *, use_bf16_matmul=True, row_tile=256):
    """x: (B, T, D) float32 -> (B, T, D) float32."""
    B, T, D = x.shape
    mdt = jnp.bfloat16 if use_bf16_matmul else jnp.float32
    Tt = _pick_row_tile(T, row_tile)
    w1s, w1x, b1, w2, b2 = params
    ffwd, cinv, sinv = _dft_matrices(D)
    args = (x.astype(jnp.float32),
            w1s.astype(mdt), w1x.astype(mdt), b1.astype(jnp.float32),
            w2.astype(mdt), b2.astype(jnp.float32),
            ffwd.astype(mdt), cinv.astype(mdt), sinv.astype(mdt))
    vmem_limit = _vmem_limit_bytes()
    # TODO(synk): for v5e with D < 128, reshape the output lane-dense
    # ((B*T*D/128, 128)) in the wrapper to avoid masked partial stores.
    try:
        return _build_call(B, T, D, Tt, True, vmem_limit)(*args)
    except Exception:
        # Fallback for jax versions without pl.Buffered(1) on constant operands.
        return _build_call(B, T, D, Tt, False, vmem_limit)(*args)


def _reference(x, params):
    """Plain-JAX transcription of the PyTorch forward (rfft/irfft HRR ops)."""
    w1s, w1x, b1, w2, b2 = params
    D = x.shape[-1]
    s = jnp.cumsum(x, axis=1) - x

    rfft = lambda v: jnp.fft.rfft(v, axis=-1)
    irfft = lambda V: jnp.fft.irfft(V, n=D, axis=-1)

    def unit(v):
        V = rfft(v)
        mag = jnp.sqrt(jnp.real(V) ** 2 + jnp.imag(V) ** 2 + 1e-12)
        return irfft(V / mag)

    bind = lambda a, b: irfft(rfft(a) * rfft(b))
    unbind = lambda v, k: irfft(rfft(v) * jnp.conj(rfft(k)))

    def head(i):
        h = jnp.dot(s, w1s[i]) + jnp.dot(x, w1x[i]) + b1[i]
        h = jnp.where(h >= 0, h, 0.01 * h)
        return jnp.dot(h, w2[i]) + b2[i]

    e_a, e_b, r_w, r_m, r_b = (unit(head(i)) for i in range(5))
    w_hat = unbind(unbind(s, r_w), e_a)
    m_hat = unbind(unbind(s, r_m), e_a)
    b_hat = unbind(unbind(s, r_b), e_b)
    w = bind(bind(e_a, r_w), e_b) - bind(bind(e_a, r_w), w_hat)
    m = bind(bind(e_a, r_m), e_b) - bind(bind(e_a, r_m), m_hat)
    b = bind(bind(e_a, r_b), e_b) - bind(bind(e_b, r_b), b_hat)
    return w + m + b


if __name__ == "__main__":
    B, T, D = 2, 8, 32            # batch, sequence, embedding (dims=32)
    key = jax.random.PRNGKey(0)
    kx, kp = jax.random.split(key)
    x = jax.random.normal(kx, (B, T, D), jnp.float32)
    params = init_params(kp, D)

    # Default (bf16 MXU operands, f32 accumulation).
    out = jax.block_until_ready(causal_holographic_qkv(x, params))
    assert out.shape == (B, T, D) and out.dtype == jnp.float32
    assert bool(jnp.all(jnp.isfinite(out)))

    # Structural check of the frequency-domain collapse against a plain-JAX
    # transcription of the PyTorch forward (kernel run with f32 operands).
    out_f32 = jax.block_until_ready(
        causal_holographic_qkv(x, params, use_bf16_matmul=False))
    ref = _reference(x, params)
    rel = float(jnp.linalg.norm(out_f32 - ref) / (jnp.linalg.norm(ref) + 1e-30))
    assert rel < 1e-1, f"relative error vs reference too large: {rel}"

    print("KERNEL_OK")
</pallas_src>

<mosaic_0001>
module attributes {stable_mosaic.version = 11 : i64} {
  func.func @_holo_qkv_kernel(%arg0: i32, %arg1: i32, %arg2: memref<1x8x32xf32, #tpu.memory_space<vmem>>, %arg3: memref<5x32x128xbf16, #tpu.memory_space<vmem>>, %arg4: memref<5x32x128xbf16, #tpu.memory_space<vmem>>, %arg5: memref<5x1x128xf32, #tpu.memory_space<vmem>>, %arg6: memref<5x128x32xbf16, #tpu.memory_space<vmem>>, %arg7: memref<5x1x32xf32, #tpu.memory_space<vmem>>, %arg8: memref<32x64xbf16, #tpu.memory_space<vmem>>, %arg9: memref<32x32xbf16, #tpu.memory_space<vmem>>, %arg10: memref<32x32xbf16, #tpu.memory_space<vmem>>, %arg11: memref<1x8x32xf32, #tpu.memory_space<vmem>>, %arg12: memref<1x32xf32, #tpu.memory_space<vmem>>) attributes {dimension_semantics = [#tpu.dimension_semantics<parallel>, #tpu.dimension_semantics<arbitrary>], iteration_bounds = array<i64: 2, 1>, scalar_prefetch = 0 : i64, scratch_operands = 1 : i64, tpu.core_type = #tpu.core_type<tc>, window_params = [{transform_indices = @transform_0, window_bounds = array<i64: 1, 8, 32>}, {pipeline_mode = #tpu.pipeline_mode<synchronous>, transform_indices = @transform_1, window_bounds = array<i64: 5, 32, 128>}, {pipeline_mode = #tpu.pipeline_mode<synchronous>, transform_indices = @transform_2, window_bounds = array<i64: 5, 32, 128>}, {pipeline_mode = #tpu.pipeline_mode<synchronous>, transform_indices = @transform_3, window_bounds = array<i64: 5, 1, 128>}, {pipeline_mode = #tpu.pipeline_mode<synchronous>, transform_indices = @transform_4, window_bounds = array<i64: 5, 128, 32>}, {pipeline_mode = #tpu.pipeline_mode<synchronous>, transform_indices = @transform_5, window_bounds = array<i64: 5, 1, 32>}, {pipeline_mode = #tpu.pipeline_mode<synchronous>, transform_indices = @transform_6, window_bounds = array<i64: 32, 64>}, {pipeline_mode = #tpu.pipeline_mode<synchronous>, transform_indices = @transform_7, window_bounds = array<i64: 32, 32>}, {pipeline_mode = #tpu.pipeline_mode<synchronous>, transform_indices = @transform_8, window_bounds = array<i64: 32, 32>}, {transform_indices = @transform_9, window_bounds = array<i64: 1, 8, 32>}]} {
    %c0_i32 = arith.constant 0 : i32
    %0 = arith.cmpi eq, %arg1, %c0_i32 : i32
    %1 = arith.extui %0 : i1 to i32
    %c0_i32_0 = arith.constant 0 : i32
    %2 = arith.cmpi ne, %1, %c0_i32_0 : i32
    scf.if %2 {
      %cst_128 = arith.constant 0.000000e+00 : f32
      %255 = vector.broadcast %cst_128 : f32 to vector<1x32xf32>
      %c0_129 = arith.constant 0 : index
      %c0_130 = arith.constant 0 : index
      %256 = vector.load %arg12[%c0_129, %c0_130] : memref<1x32xf32, #tpu.memory_space<vmem>>, vector<1x32xf32>
      tpu.vector_store %arg12[%c0_129, %c0_130], %255 {strides = array<i32>} : memref<1x32xf32, #tpu.memory_space<vmem>>, vector<1x32xf32>,
    } else {
    }
    %c0 = arith.constant 0 : index
    %c0_1 = arith.constant 0 : index
    %c0_2 = arith.constant 0 : index
    %3 = vector.load %arg2[%c0, %c0_1, %c0_2] : memref<1x8x32xf32, #tpu.memory_space<vmem>>, vector<1x8x32xf32>
    %4 = vector.shape_cast %3 : vector<1x8x32xf32> to vector<8x32xf32>
    %5 = arith.truncf %4 : vector<8x32xf32> to vector<8x32xbf16>
    %6 = tpu.iota {dimensions = array<i32: 0>} : vector<8x8xi32>
    %7 = tpu.iota {dimensions = array<i32: 1>} : vector<8x8xi32>
    %8 = arith.cmpi sgt, %6, %7 : vector<8x8xi32>
    %9 = arith.extui %8 : vector<8x8xi1> to vector<8x8xi32>
    %10 = arith.sitofp %9 : vector<8x8xi32> to vector<8x8xf32>
    %11 = arith.truncf %10 : vector<8x8xf32> to vector<8x8xbf16>
    %cst = arith.constant dense<0.000000e+00> : vector<8x32xf32>
    %12 = tpu.matmul %11, %5, %cst {dimension_numbers = #tpu.dot_dimension_numbers<[1], [0], [0], [1], [0, 0, 1, 1], [], []>} : vector<8x8xbf16>, vector<8x32xbf16>, vector<8x32xf32> -> vector<8x32xf32>
    %c0_3 = arith.constant 0 : index
    %c0_4 = arith.constant 0 : index
    %13 = vector.load %arg12[%c0_3, %c0_4] : memref<1x32xf32, #tpu.memory_space<vmem>>, vector<1x32xf32>
    %14 = vector.broadcast %13 : vector<1x32xf32> to vector<8x32xf32>
    %15 = arith.addf %12, %14 : vector<8x32xf32>
    %c0_5 = arith.constant 0 : index
    %c0_6 = arith.constant 0 : index
    %16 = vector.load %arg12[%c0_5, %c0_6] : memref<1x32xf32, #tpu.memory_space<vmem>>, vector<1x32xf32>
    %cst_7 = arith.constant dense<0.000000e+00> : vector<32xf32>
    %17 = vector.multi_reduction <add>, %4, %cst_7 [0] : vector<8x32xf32> to vector<32xf32>
    %18 = vector.shape_cast %17 : vector<32xf32> to vector<1x32xf32>
    %19 = arith.addf %16, %18 : vector<1x32xf32>
    %c0_8 = arith.constant 0 : index
    %c0_9 = arith.constant 0 : index
    %20 = vector.load %arg12[%c0_8, %c0_9] : memref<1x32xf32, #tpu.memory_space<vmem>>, vector<1x32xf32>
    tpu.vector_store %arg12[%c0_8, %c0_9], %19 {strides = array<i32>} : memref<1x32xf32, #tpu.memory_space<vmem>>, vector<1x32xf32>,
    %21 = arith.truncf %15 : vector<8x32xf32> to vector<8x32xbf16>
    %c0_10 = arith.constant 0 : index
    %c0_11 = arith.constant 0 : index
    %22 = vector.load %arg8[%c0_10, %c0_11] : memref<32x64xbf16, #tpu.memory_space<vmem>>, vector<32x64xbf16>
    %cst_12 = arith.constant dense<0.000000e+00> : vector<8x64xf32>
    %23 = tpu.matmul %21, %22, %cst_12 {dimension_numbers = #tpu.dot_dimension_numbers<[1], [0], [0], [1], [0, 0, 1, 1], [], []>} : vector<8x32xbf16>, vector<32x64xbf16>, vector<8x64xf32> -> vector<8x64xf32>
    %24 = vector.extract_strided_slice %23 {offsets = [0, 0], sizes = [8, 32], strides = [1, 1]} : vector<8x64xf32> to vector<8x32xf32>
    %25 = vector.extract_strided_slice %23 {offsets = [0, 32], sizes = [8, 32], strides = [1, 1]} : vector<8x64xf32> to vector<8x32xf32>
    %c0_13 = arith.constant 0 : index
    %c0_14 = arith.constant 0 : index
    %c0_15 = arith.constant 0 : index
    %26 = vector.load %arg3[%c0_13, %c0_14, %c0_15] : memref<5x32x128xbf16, #tpu.memory_space<vmem>>, vector<1x32x128xbf16>
    %27 = vector.shape_cast %26 : vector<1x32x128xbf16> to vector<32x128xbf16>
    %cst_16 = arith.constant dense<0.000000e+00> : vector<8x128xf32>
    %28 = tpu.matmul %21, %27, %cst_16 {dimension_numbers = #tpu.dot_dimension_numbers<[1], [0], [0], [1], [0, 0, 1, 1], [], []>} : vector<8x32xbf16>, vector<32x128xbf16>, vector<8x128xf32> -> vector<8x128xf32>
    %c0_17 = arith.constant 0 : index
    %c0_18 = arith.constant 0 : index
    %c0_19 = arith.constant 0 : index
    %29 = vector.load %arg4[%c0_17, %c0_18, %c0_19] : memref<5x32x128xbf16, #tpu.memory_space<vmem>>, vector<1x32x128xbf16>
    %30 = vector.shape_cast %29 : vector<1x32x128xbf16> to vector<32x128xbf16>
    %cst_20 = arith.constant dense<0.000000e+00> : vector<8x128xf32>
    %31 = tpu.matmul %5, %30, %cst_20 {dimension_numbers = #tpu.dot_dimension_numbers<[1], [0], [0], [1], [0, 0, 1, 1], [], []>} : vector<8x32xbf16>, vector<32x128xbf16>, vector<8x128xf32> -> vector<8x128xf32>
    %32 = arith.addf %28, %31 : vector<8x128xf32>
    %c0_21 = arith.constant 0 : index
    %c0_22 = arith.constant 0 : index
    %c0_23 = arith.constant 0 : index
    %33 = vector.load %arg5[%c0_21, %c0_22, %c0_23] : memref<5x1x128xf32, #tpu.memory_space<vmem>>, vector<1x1x128xf32>
    %34 = vector.shape_cast %33 : vector<1x1x128xf32> to vector<1x128xf32>
    %35 = vector.broadcast %34 : vector<1x128xf32> to vector<8x128xf32>
    %36 = arith.addf %32, %35 : vector<8x128xf32>
    %cst_24 = arith.constant 0.000000e+00 : f32
    %37 = vector.broadcast %cst_24 : f32 to vector<8x128xf32>
    %38 = arith.cmpf oge, %36, %37 : vector<8x128xf32>
    %cst_25 = arith.constant 0.00999999977 : f32
    %39 = vector.broadcast %cst_25 : f32 to vector<8x128xf32>
    %40 = arith.mulf %39, %36 : vector<8x128xf32>
    %41 = arith.select %38, %36, %40 : vector<8x128xi1>, vector<8x128xf32>
    %42 = arith.truncf %41 : vector<8x128xf32> to vector<8x128xbf16>
    %c0_26 = arith.constant 0 : index
    %c0_27 = arith.constant 0 : index
    %c0_28 = arith.constant 0 : index
    %43 = vector.load %arg6[%c0_26, %c0_27, %c0_28] : memref<5x128x32xbf16, #tpu.memory_space<vmem>>, vector<1x128x32xbf16>
    %44 = vector.shape_cast %43 : vector<1x128x32xbf16> to vector<128x32xbf16>
    %cst_29 = arith.constant dense<0.000000e+00> : vector<8x32xf32>
    %45 = tpu.matmul %42, %44, %cst_29 {dimension_numbers = #tpu.dot_dimension_numbers<[1], [0], [0], [1], [0, 0, 1, 1], [], []>} : vector<8x128xbf16>, vector<128x32xbf16>, vector<8x32xf32> -> vector<8x32xf32>
    %c0_30 = arith.constant 0 : index
    %c0_31 = arith.constant 0 : index
    %c0_32 = arith.constant 0 : index
    %46 = vector.load %arg7[%c0_30, %c0_31, %c0_32] : memref<5x1x32xf32, #tpu.memory_space<vmem>>, vector<1x1x32xf32>
    %47 = vector.shape_cast %46 : vector<1x1x32xf32> to vector<1x32xf32>
    %48 = vector.broadcast %47 : vector<1x32xf32> to vector<8x32xf32>
    %49 = arith.addf %45, %48 : vector<8x32xf32>
    %50 = arith.truncf %49 : vector<8x32xf32> to vector<8x32xbf16>
    %cst_33 = arith.constant dense<0.000000e+00> : vector<8x64xf32>
    %51 = tpu.matmul %50, %22, %cst_33 {dimension_numbers = #tpu.dot_dimension_numbers<[1], [0], [0], [1], [0, 0, 1, 1], [], []>} : vector<8x32xbf16>, vector<32x64xbf16>, vector<8x64xf32> -> vector<8x64xf32>
    %52 = vector.extract_strided_slice %51 {offsets = [0, 0], sizes = [8, 32], strides = [1, 1]} : vector<8x64xf32> to vector<8x32xf32>
    %53 = vector.extract_strided_slice %51 {offsets = [0, 32], sizes = [8, 32], strides = [1, 1]} : vector<8x64xf32> to vector<8x32xf32>
    %54 = arith.mulf %52, %52 : vector<8x32xf32>
    %55 = arith.mulf %53, %53 : vector<8x32xf32>
    %56 = arith.addf %54, %55 : vector<8x32xf32>
    %cst_34 = arith.constant 9.99999996E-13 : f32
    %57 = vector.broadcast %cst_34 : f32 to vector<8x32xf32>
    %58 = arith.addf %56, %57 : vector<8x32xf32>
    %59 = math.rsqrt %58 : vector<8x32xf32>
    %60 = arith.mulf %52, %59 : vector<8x32xf32>
    %61 = arith.mulf %53, %59 : vector<8x32xf32>
    %c1 = arith.constant 1 : index
    %c0_35 = arith.constant 0 : index
    %c0_36 = arith.constant 0 : index
    %62 = vector.load %arg3[%c1, %c0_35, %c0_36] : memref<5x32x128xbf16, #tpu.memory_space<vmem>>, vector<1x32x128xbf16>
    %63 = vector.shape_cast %62 : vector<1x32x128xbf16> to vector<32x128xbf16>
    %cst_37 = arith.constant dense<0.000000e+00> : vector<8x128xf32>
    %64 = tpu.matmul %21, %63, %cst_37 {dimension_numbers = #tpu.dot_dimension_numbers<[1], [0], [0], [1], [0, 0, 1, 1], [], []>} : vector<8x32xbf16>, vector<32x128xbf16>, vector<8x128xf32> -> vector<8x128xf32>
    %c1_38 = arith.constant 1 : index
    %c0_39 = arith.constant 0 : index
    %c0_40 = arith.constant 0 : index
    %65 = vector.load %arg4[%c1_38, %c0_39, %c0_40] : memref<5x32x128xbf16, #tpu.memory_space<vmem>>, vector<1x32x128xbf16>
    %66 = vector.shape_cast %65 : vector<1x32x128xbf16> to vector<32x128xbf16>
    %cst_41 = arith.constant dense<0.000000e+00> : vector<8x128xf32>
    %67 = tpu.matmul %5, %66, %cst_41 {dimension_numbers = #tpu.dot_dimension_numbers<[1], [0], [0], [1], [0, 0, 1, 1], [], []>} : vector<8x32xbf16>, vector<32x128xbf16>, vector<8x128xf32> -> vector<8x128xf32>
    %68 = arith.addf %64, %67 : vector<8x128xf32>
    %c1_42 = arith.constant 1 : index
    %c0_43 = arith.constant 0 : index
    %c0_44 = arith.constant 0 : index
    %69 = vector.load %arg5[%c1_42, %c0_43, %c0_44] : memref<5x1x128xf32, #tpu.memory_space<vmem>>, vector<1x1x128xf32>
    %70 = vector.shape_cast %69 : vector<1x1x128xf32> to vector<1x128xf32>
    %71 = vector.broadcast %70 : vector<1x128xf32> to vector<8x128xf32>
    %72 = arith.addf %68, %71 : vector<8x128xf32>
    %cst_45 = arith.constant 0.000000e+00 : f32
    %73 = vector.broadcast %cst_45 : f32 to vector<8x128xf32>
    %74 = arith.cmpf oge, %72, %73 : vector<8x128xf32>
    %cst_46 = arith.constant 0.00999999977 : f32
    %75 = vector.broadcast %cst_46 : f32 to vector<8x128xf32>
    %76 = arith.mulf %75, %72 : vector<8x128xf32>
    %77 = arith.select %74, %72, %76 : vector<8x128xi1>, vector<8x128xf32>
    %78 = arith.truncf %77 : vector<8x128xf32> to vector<8x128xbf16>
    %c1_47 = arith.constant 1 : index
    %c0_48 = arith.constant 0 : index
    %c0_49 = arith.constant 0 : index
    %79 = vector.load %arg6[%c1_47, %c0_48, %c0_49] : memref<5x128x32xbf16, #tpu.memory_space<vmem>>, vector<1x128x32xbf16>
    %80 = vector.shape_cast %79 : vector<1x128x32xbf16> to vector<128x32xbf16>
    %cst_50 = arith.constant dense<0.000000e+00> : vector<8x32xf32>
    %81 = tpu.matmul %78, %80, %cst_50 {dimension_numbers = #tpu.dot_dimension_numbers<[1], [0], [0], [1], [0, 0, 1, 1], [], []>} : vector<8x128xbf16>, vector<128x32xbf16>, vector<8x32xf32> -> vector<8x32xf32>
    %c1_51 = arith.constant 1 : index
    %c0_52 = arith.constant 0 : index
    %c0_53 = arith.constant 0 : index
    %82 = vector.load %arg7[%c1_51, %c0_52, %c0_53] : memref<5x1x32xf32, #tpu.memory_space<vmem>>, vector<1x1x32xf32>
    %83 = vector.shape_cast %82 : vector<1x1x32xf32> to vector<1x32xf32>
    %84 = vector.broadcast %83 : vector<1x32xf32> to vector<8x32xf32>
    %85 = arith.addf %81, %84 : vector<8x32xf32>
    %86 = arith.truncf %85 : vector<8x32xf32> to vector<8x32xbf16>
    %cst_54 = arith.constant dense<0.000000e+00> : vector<8x64xf32>
    %87 = tpu.matmul %86, %22, %cst_54 {dimension_numbers = #tpu.dot_dimension_numbers<[1], [0], [0], [1], [0, 0, 1, 1], [], []>} : vector<8x32xbf16>, vector<32x64xbf16>, vector<8x64xf32> -> vector<8x64xf32>
    %88 = vector.extract_strided_slice %87 {offsets = [0, 0], sizes = [8, 32], strides = [1, 1]} : vector<8x64xf32> to vector<8x32xf32>
    %89 = vector.extract_strided_slice %87 {offsets = [0, 32], sizes = [8, 32], strides = [1, 1]} : vector<8x64xf32> to vector<8x32xf32>
    %90 = arith.mulf %88, %88 : vector<8x32xf32>
    %91 = arith.mulf %89, %89 : vector<8x32xf32>
    %92 = arith.addf %90, %91 : vector<8x32xf32>
    %cst_55 = arith.constant 9.99999996E-13 : f32
    %93 = vector.broadcast %cst_55 : f32 to vector<8x32xf32>
    %94 = arith.addf %92, %93 : vector<8x32xf32>
    %95 = math.rsqrt %94 : vector<8x32xf32>
    %96 = arith.mulf %88, %95 : vector<8x32xf32>
    %97 = arith.mulf %89, %95 : vector<8x32xf32>
    %c2 = arith.constant 2 : index
    %c0_56 = arith.constant 0 : index
    %c0_57 = arith.constant 0 : index
    %98 = vector.load %arg3[%c2, %c0_56, %c0_57] : memref<5x32x128xbf16, #tpu.memory_space<vmem>>, vector<1x32x128xbf16>
    %99 = vector.shape_cast %98 : vector<1x32x128xbf16> to vector<32x128xbf16>
    %cst_58 = arith.constant dense<0.000000e+00> : vector<8x128xf32>
    %100 = tpu.matmul %21, %99, %cst_58 {dimension_numbers = #tpu.dot_dimension_numbers<[1], [0], [0], [1], [0, 0, 1, 1], [], []>} : vector<8x32xbf16>, vector<32x128xbf16>, vector<8x128xf32> -> vector<8x128xf32>
    %c2_59 = arith.constant 2 : index
    %c0_60 = arith.constant 0 : index
    %c0_61 = arith.constant 0 : index
    %101 = vector.load %arg4[%c2_59, %c0_60, %c0_61] : memref<5x32x128xbf16, #tpu.memory_space<vmem>>, vector<1x32x128xbf16>
    %102 = vector.shape_cast %101 : vector<1x32x128xbf16> to vector<32x128xbf16>
    %cst_62 = arith.constant dense<0.000000e+00> : vector<8x128xf32>
    %103 = tpu.matmul %5, %102, %cst_62 {dimension_numbers = #tpu.dot_dimension_numbers<[1], [0], [0], [1], [0, 0, 1, 1], [], []>} : vector<8x32xbf16>, vector<32x128xbf16>, vector<8x128xf32> -> vector<8x128xf32>
    %104 = arith.addf %100, %103 : vector<8x128xf32>
    %c2_63 = arith.constant 2 : index
    %c0_64 = arith.constant 0 : index
    %c0_65 = arith.constant 0 : index
    %105 = vector.load %arg5[%c2_63, %c0_64, %c0_65] : memref<5x1x128xf32, #tpu.memory_space<vmem>>, vector<1x1x128xf32>
    %106 = vector.shape_cast %105 : vector<1x1x128xf32> to vector<1x128xf32>
    %107 = vector.broadcast %106 : vector<1x128xf32> to vector<8x128xf32>
    %108 = arith.addf %104, %107 : vector<8x128xf32>
    %cst_66 = arith.constant 0.000000e+00 : f32
    %109 = vector.broadcast %cst_66 : f32 to vector<8x128xf32>
    %110 = arith.cmpf oge, %108, %109 : vector<8x128xf32>
    %cst_67 = arith.constant 0.00999999977 : f32
    %111 = vector.broadcast %cst_67 : f32 to vector<8x128xf32>
    %112 = arith.mulf %111, %108 : vector<8x128xf32>
    %113 = arith.select %110, %108, %112 : vector<8x128xi1>, vector<8x128xf32>
    %114 = arith.truncf %113 : vector<8x128xf32> to vector<8x128xbf16>
    %c2_68 = arith.constant 2 : index
    %c0_69 = arith.constant 0 : index
    %c0_70 = arith.constant 0 : index
    %115 = vector.load %arg6[%c2_68, %c0_69, %c0_70] : memref<5x128x32xbf16, #tpu.memory_space<vmem>>, vector<1x128x32xbf16>
    %116 = vector.shape_cast %115 : vector<1x128x32xbf16> to vector<128x32xbf16>
    %cst_71 = arith.constant dense<0.000000e+00> : vector<8x32xf32>
    %117 = tpu.matmul %114, %116, %cst_71 {dimension_numbers = #tpu.dot_dimension_numbers<[1], [0], [0], [1], [0, 0, 1, 1], [], []>} : vector<8x128xbf16>, vector<128x32xbf16>, vector<8x32xf32> -> vector<8x32xf32>
    %c2_72 = arith.constant 2 : index
    %c0_73 = arith.constant 0 : index
    %c0_74 = arith.constant 0 : index
    %118 = vector.load %arg7[%c2_72, %c0_73, %c0_74] : memref<5x1x32xf32, #tpu.memory_space<vmem>>, vector<1x1x32xf32>
    %119 = vector.shape_cast %118 : vector<1x1x32xf32> to vector<1x32xf32>
    %120 = vector.broadcast %119 : vector<1x32xf32> to vector<8x32xf32>
    %121 = arith.addf %117, %120 : vector<8x32xf32>
    %122 = arith.truncf %121 : vector<8x32xf32> to vector<8x32xbf16>
    %cst_75 = arith.constant dense<0.000000e+00> : vector<8x64xf32>
    %123 = tpu.matmul %122, %22, %cst_75 {dimension_numbers = #tpu.dot_dimension_numbers<[1], [0], [0], [1], [0, 0, 1, 1], [], []>} : vector<8x32xbf16>, vector<32x64xbf16>, vector<8x64xf32> -> vector<8x64xf32>
    %124 = vector.extract_strided_slice %123 {offsets = [0, 0], sizes = [8, 32], strides = [1, 1]} : vector<8x64xf32> to vector<8x32xf32>
    %125 = vector.extract_strided_slice %123 {offsets = [0, 32], sizes = [8, 32], strides = [1, 1]} : vector<8x64xf32> to vector<8x32xf32>
    %126 = arith.mulf %124, %124 : vector<8x32xf32>
    %127 = arith.mulf %125, %125 : vector<8x32xf32>
    %128 = arith.addf %126, %127 : vector<8x32xf32>
    %cst_76 = arith.constant 9.99999996E-13 : f32
    %129 = vector.broadcast %cst_76 : f32 to vector<8x32xf32>
    %130 = arith.addf %128, %129 : vector<8x32xf32>
    %131 = math.rsqrt %130 : vector<8x32xf32>
    %132 = arith.mulf %124, %131 : vector<8x32xf32>
    %133 = arith.mulf %125, %131 : vector<8x32xf32>
    %c3 = arith.constant 3 : index
    %c0_77 = arith.constant 0 : index
    %c0_78 = arith.constant 0 : index
    %134 = vector.load %arg3[%c3, %c0_77, %c0_78] : memref<5x32x128xbf16, #tpu.memory_space<vmem>>, vector<1x32x128xbf16>
    %135 = vector.shape_cast %134 : vector<1x32x128xbf16> to vector<32x128xbf16>
    %cst_79 = arith.constant dense<0.000000e+00> : vector<8x128xf32>
    %136 = tpu.matmul %21, %135, %cst_79 {dimension_numbers = #tpu.dot_dimension_numbers<[1], [0], [0], [1], [0, 0, 1, 1], [], []>} : vector<8x32xbf16>, vector<32x128xbf16>, vector<8x128xf32> -> vector<8x128xf32>
    %c3_80 = arith.constant 3 : index
    %c0_81 = arith.constant 0 : index
    %c0_82 = arith.constant 0 : index
    %137 = vector.load %arg4[%c3_80, %c0_81, %c0_82] : memref<5x32x128xbf16, #tpu.memory_space<vmem>>, vector<1x32x128xbf16>
    %138 = vector.shape_cast %137 : vector<1x32x128xbf16> to vector<32x128xbf16>
    %cst_83 = arith.constant dense<0.000000e+00> : vector<8x128xf32>
    %139 = tpu.matmul %5, %138, %cst_83 {dimension_numbers = #tpu.dot_dimension_numbers<[1], [0], [0], [1], [0, 0, 1, 1], [], []>} : vector<8x32xbf16>, vector<32x128xbf16>, vector<8x128xf32> -> vector<8x128xf32>
    %140 = arith.addf %136, %139 : vector<8x128xf32>
    %c3_84 = arith.constant 3 : index
    %c0_85 = arith.constant 0 : index
    %c0_86 = arith.constant 0 : index
    %141 = vector.load %arg5[%c3_84, %c0_85, %c0_86] : memref<5x1x128xf32, #tpu.memory_space<vmem>>, vector<1x1x128xf32>
    %142 = vector.shape_cast %141 : vector<1x1x128xf32> to vector<1x128xf32>
    %143 = vector.broadcast %142 : vector<1x128xf32> to vector<8x128xf32>
    %144 = arith.addf %140, %143 : vector<8x128xf32>
    %cst_87 = arith.constant 0.000000e+00 : f32
    %145 = vector.broadcast %cst_87 : f32 to vector<8x128xf32>
    %146 = arith.cmpf oge, %144, %145 : vector<8x128xf32>
    %cst_88 = arith.constant 0.00999999977 : f32
    %147 = vector.broadcast %cst_88 : f32 to vector<8x128xf32>
    %148 = arith.mulf %147, %144 : vector<8x128xf32>
    %149 = arith.select %146, %144, %148 : vector<8x128xi1>, vector<8x128xf32>
    %150 = arith.truncf %149 : vector<8x128xf32> to vector<8x128xbf16>
    %c3_89 = arith.constant 3 : index
    %c0_90 = arith.constant 0 : index
    %c0_91 = arith.constant 0 : index
    %151 = vector.load %arg6[%c3_89, %c0_90, %c0_91] : memref<5x128x32xbf16, #tpu.memory_space<vmem>>, vector<1x128x32xbf16>
    %152 = vector.shape_cast %151 : vector<1x128x32xbf16> to vector<128x32xbf16>
    %cst_92 = arith.constant dense<0.000000e+00> : vector<8x32xf32>
    %153 = tpu.matmul %150, %152, %cst_92 {dimension_numbers = #tpu.dot_dimension_numbers<[1], [0], [0], [1], [0, 0, 1, 1], [], []>} : vector<8x128xbf16>, vector<128x32xbf16>, vector<8x32xf32> -> vector<8x32xf32>
    %c3_93 = arith.constant 3 : index
    %c0_94 = arith.constant 0 : index
    %c0_95 = arith.constant 0 : index
    %154 = vector.load %arg7[%c3_93, %c0_94, %c0_95] : memref<5x1x32xf32, #tpu.memory_space<vmem>>, vector<1x1x32xf32>
    %155 = vector.shape_cast %154 : vector<1x1x32xf32> to vector<1x32xf32>
    %156 = vector.broadcast %155 : vector<1x32xf32> to vector<8x32xf32>
    %157 = arith.addf %153, %156 : vector<8x32xf32>
    %158 = arith.truncf %157 : vector<8x32xf32> to vector<8x32xbf16>
    %cst_96 = arith.constant dense<0.000000e+00> : vector<8x64xf32>
    %159 = tpu.matmul %158, %22, %cst_96 {dimension_numbers = #tpu.dot_dimension_numbers<[1], [0], [0], [1], [0, 0, 1, 1], [], []>} : vector<8x32xbf16>, vector<32x64xbf16>, vector<8x64xf32> -> vector<8x64xf32>
    %160 = vector.extract_strided_slice %159 {offsets = [0, 0], sizes = [8, 32], strides = [1, 1]} : vector<8x64xf32> to vector<8x32xf32>
    %161 = vector.extract_strided_slice %159 {offsets = [0, 32], sizes = [8, 32], strides = [1, 1]} : vector<8x64xf32> to vector<8x32xf32>
    %162 = arith.mulf %160, %160 : vector<8x32xf32>
    %163 = arith.mulf %161, %161 : vector<8x32xf32>
    %164 = arith.addf %162, %163 : vector<8x32xf32>
    %cst_97 = arith.constant 9.99999996E-13 : f32
    %165 = vector.broadcast %cst_97 : f32 to vector<8x32xf32>
    %166 = arith.addf %164, %165 : vector<8x32xf32>
    %167 = math.rsqrt %166 : vector<8x32xf32>
    %168 = arith.mulf %160, %167 : vector<8x32xf32>
    %169 = arith.mulf %161, %167 : vector<8x32xf32>
    %c4 = arith.constant 4 : index
    %c0_98 = arith.constant 0 : index
    %c0_99 = arith.constant 0 : index
    %170 = vector.load %arg3[%c4, %c0_98, %c0_99] : memref<5x32x128xbf16, #tpu.memory_space<vmem>>, vector<1x32x128xbf16>
    %171 = vector.shape_cast %170 : vector<1x32x128xbf16> to vector<32x128xbf16>
    %cst_100 = arith.constant dense<0.000000e+00> : vector<8x128xf32>
    %172 = tpu.matmul %21, %171, %cst_100 {dimension_numbers = #tpu.dot_dimension_numbers<[1], [0], [0], [1], [0, 0, 1, 1], [], []>} : vector<8x32xbf16>, vector<32x128xbf16>, vector<8x128xf32> -> vector<8x128xf32>
    %c4_101 = arith.constant 4 : index
    %c0_102 = arith.constant 0 : index
    %c0_103 = arith.constant 0 : index
    %173 = vector.load %arg4[%c4_101, %c0_102, %c0_103] : memref<5x32x128xbf16, #tpu.memory_space<vmem>>, vector<1x32x128xbf16>
    %174 = vector.shape_cast %173 : vector<1x32x128xbf16> to vector<32x128xbf16>
    %cst_104 = arith.constant dense<0.000000e+00> : vector<8x128xf32>
    %175 = tpu.matmul %5, %174, %cst_104 {dimension_numbers = #tpu.dot_dimension_numbers<[1], [0], [0], [1], [0, 0, 1, 1], [], []>} : vector<8x32xbf16>, vector<32x128xbf16>, vector<8x128xf32> -> vector<8x128xf32>
    %176 = arith.addf %172, %175 : vector<8x128xf32>
    %c4_105 = arith.constant 4 : index
    %c0_106 = arith.constant 0 : index
    %c0_107 = arith.constant 0 : index
    %177 = vector.load %arg5[%c4_105, %c0_106, %c0_107] : memref<5x1x128xf32, #tpu.memory_space<vmem>>, vector<1x1x128xf32>
    %178 = vector.shape_cast %177 : vector<1x1x128xf32> to vector<1x128xf32>
    %179 = vector.broadcast %178 : vector<1x128xf32> to vector<8x128xf32>
    %180 = arith.addf %176, %179 : vector<8x128xf32>
    %cst_108 = arith.constant 0.000000e+00 : f32
    %181 = vector.broadcast %cst_108 : f32 to vector<8x128xf32>
    %182 = arith.cmpf oge, %180, %181 : vector<8x128xf32>
    %cst_109 = arith.constant 0.00999999977 : f32
    %183 = vector.broadcast %cst_109 : f32 to vector<8x128xf32>
    %184 = arith.mulf %183, %180 : vector<8x128xf32>
    %185 = arith.select %182, %180, %184 : vector<8x128xi1>, vector<8x128xf32>
    %186 = arith.truncf %185 : vector<8x128xf32> to vector<8x128xbf16>
    %c4_110 = arith.constant 4 : index
    %c0_111 = arith.constant 0 : index
    %c0_112 = arith.constant 0 : index
    %187 = vector.load %arg6[%c4_110, %c0_111, %c0_112] : memref<5x128x32xbf16, #tpu.memory_space<vmem>>, vector<1x128x32xbf16>
    %188 = vector.shape_cast %187 : vector<1x128x32xbf16> to vector<128x32xbf16>
    %cst_113 = arith.constant dense<0.000000e+00> : vector<8x32xf32>
    %189 = tpu.matmul %186, %188, %cst_113 {dimension_numbers = #tpu.dot_dimension_numbers<[1], [0], [0], [1], [0, 0, 1, 1], [], []>} : vector<8x128xbf16>, vector<128x32xbf16>, vector<8x32xf32> -> vector<8x32xf32>
    %c4_114 = arith.constant 4 : index
    %c0_115 = arith.constant 0 : index
    %c0_116 = arith.constant 0 : index
    %190 = vector.load %arg7[%c4_114, %c0_115, %c0_116] : memref<5x1x32xf32, #tpu.memory_space<vmem>>, vector<1x1x32xf32>
    %191 = vector.shape_cast %190 : vector<1x1x32xf32> to vector<1x32xf32>
    %192 = vector.broadcast %191 : vector<1x32xf32> to vector<8x32xf32>
    %193 = arith.addf %189, %192 : vector<8x32xf32>
    %194 = arith.truncf %193 : vector<8x32xf32> to vector<8x32xbf16>
    %cst_117 = arith.constant dense<0.000000e+00> : vector<8x64xf32>
    %195 = tpu.matmul %194, %22, %cst_117 {dimension_numbers = #tpu.dot_dimension_numbers<[1], [0], [0], [1], [0, 0, 1, 1], [], []>} : vector<8x32xbf16>, vector<32x64xbf16>, vector<8x64xf32> -> vector<8x64xf32>
    %196 = vector.extract_strided_slice %195 {offsets = [0, 0], sizes = [8, 32], strides = [1, 1]} : vector<8x64xf32> to vector<8x32xf32>
    %197 = vector.extract_strided_slice %195 {offsets = [0, 32], sizes = [8, 32], strides = [1, 1]} : vector<8x64xf32> to vector<8x32xf32>
    %198 = arith.mulf %196, %196 : vector<8x32xf32>
    %199 = arith.mulf %197, %197 : vector<8x32xf32>
    %200 = arith.addf %198, %199 : vector<8x32xf32>
    %cst_118 = arith.constant 9.99999996E-13 : f32
    %201 = vector.broadcast %cst_118 : f32 to vector<8x32xf32>
    %202 = arith.addf %200, %201 : vector<8x32xf32>
    %203 = math.rsqrt %202 : vector<8x32xf32>
    %204 = arith.mulf %196, %203 : vector<8x32xf32>
    %205 = arith.mulf %197, %203 : vector<8x32xf32>
    %206 = arith.addf %132, %168 : vector<8x32xf32>
    %207 = arith.addf %206, %204 : vector<8x32xf32>
    %208 = arith.addf %133, %169 : vector<8x32xf32>
    %209 = arith.addf %208, %205 : vector<8x32xf32>
    %210 = arith.mulf %60, %207 : vector<8x32xf32>
    %211 = arith.mulf %61, %209 : vector<8x32xf32>
    %212 = arith.subf %210, %211 : vector<8x32xf32>
    %213 = arith.mulf %60, %209 : vector<8x32xf32>
    %214 = arith.mulf %61, %207 : vector<8x32xf32>
    %215 = arith.addf %213, %214 : vector<8x32xf32>
    %216 = arith.mulf %212, %96 : vector<8x32xf32>
    %217 = arith.mulf %215, %97 : vector<8x32xf32>
    %218 = arith.subf %216, %217 : vector<8x32xf32>
    %219 = arith.mulf %212, %97 : vector<8x32xf32>
    %220 = arith.mulf %215, %96 : vector<8x32xf32>
    %221 = arith.addf %219, %220 : vector<8x32xf32>
    %222 = arith.mulf %60, %60 : vector<8x32xf32>
    %223 = arith.mulf %61, %61 : vector<8x32xf32>
    %224 = arith.addf %222, %223 : vector<8x32xf32>
    %225 = arith.mulf %96, %96 : vector<8x32xf32>
    %226 = arith.mulf %97, %97 : vector<8x32xf32>
    %227 = arith.addf %225, %226 : vector<8x32xf32>
    %228 = arith.mulf %132, %132 : vector<8x32xf32>
    %229 = arith.mulf %133, %133 : vector<8x32xf32>
    %230 = arith.addf %228, %229 : vector<8x32xf32>
    %231 = arith.mulf %168, %168 : vector<8x32xf32>
    %232 = arith.addf %230, %231 : vector<8x32xf32>
    %233 = arith.mulf %169, %169 : vector<8x32xf32>
    %234 = arith.addf %232, %233 : vector<8x32xf32>
    %235 = arith.mulf %224, %234 : vector<8x32xf32>
    %236 = arith.mulf %204, %204 : vector<8x32xf32>
    %237 = arith.mulf %205, %205 : vector<8x32xf32>
    %238 = arith.addf %236, %237 : vector<8x32xf32>
    %239 = arith.mulf %227, %238 : vector<8x32xf32>
    %240 = arith.addf %235, %239 : vector<8x32xf32>
    %241 = arith.mulf %240, %24 : vector<8x32xf32>
    %242 = arith.subf %218, %241 : vector<8x32xf32>
    %243 = arith.truncf %242 : vector<8x32xf32> to vector<8x32xbf16>
    %244 = arith.mulf %240, %25 : vector<8x32xf32>
    %245 = arith.subf %221, %244 : vector<8x32xf32>
    %246 = arith.truncf %245 : vector<8x32xf32> to vector<8x32xbf16>
    %c0_119 = arith.constant 0 : index
    %c0_120 = arith.constant 0 : index
    %247 = vector.load %arg9[%c0_119, %c0_120] : memref<32x32xbf16, #tpu.memory_space<vmem>>, vector<32x32xbf16>
    %cst_121 = arith.constant dense<0.000000e+00> : vector<8x32xf32>
    %248 = tpu.matmul %243, %247, %cst_121 {dimension_numbers = #tpu.dot_dimension_numbers<[1], [0], [0], [1], [0, 0, 1, 1], [], []>} : vector<8x32xbf16>, vector<32x32xbf16>, vector<8x32xf32> -> vector<8x32xf32>
    %c0_122 = arith.constant 0 : index
    %c0_123 = arith.constant 0 : index
    %249 = vector.load %arg10[%c0_122, %c0_123] : memref<32x32xbf16, #tpu.memory_space<vmem>>, vector<32x32xbf16>
    %cst_124 = arith.constant dense<0.000000e+00> : vector<8x32xf32>
    %250 = tpu.matmul %246, %249, %cst_124 {dimension_numbers = #tpu.dot_dimension_numbers<[1], [0], [0], [1], [0, 0, 1, 1], [], []>} : vector<8x32xbf16>, vector<32x32xbf16>, vector<8x32xf32> -> vector<8x32xf32>
    %251 = arith.subf %248, %250 : vector<8x32xf32>
    %c0_125 = arith.constant 0 : index
    %c0_126 = arith.constant 0 : index
    %c0_127 = arith.constant 0 : index
    %252 = vector.load %arg11[%c0_125, %c0_126, %c0_127] : memref<1x8x32xf32, #tpu.memory_space<vmem>>, vector<1x8x32xf32>
    %253 = vector.shape_cast %252 : vector<1x8x32xf32> to vector<8x32xf32>
    %254 = vector.shape_cast %251 : vector<8x32xf32> to vector<1x8x32xf32>
    tpu.vector_store %arg11[%c0_125, %c0_126, %c0_127], %254 {strides = array<i32>} : memref<1x8x32xf32, #tpu.memory_space<vmem>>, vector<1x8x32xf32>,
    return
  }
  func.func @transform_0(%arg0: i32, %arg1: i32) -> (i32, i32, i32) {
    %c0_i32 = arith.constant 0 : i32
    %c0_i32_0 = arith.constant 0 : i32
    return %arg0, %arg1, %c0_i32 : i32, i32, i32
  }
  func.func @transform_1(%arg0: i32, %arg1: i32) -> (i32, i32, i32) {
    %c0_i32 = arith.constant 0 : i32
    %c0_i32_0 = arith.constant 0 : i32
    %c0_i32_1 = arith.constant 0 : i32
    %c0_i32_2 = arith.constant 0 : i32
    return %c0_i32, %c0_i32_0, %c0_i32_1 : i32, i32, i32
  }
  func.func @transform_2(%arg0: i32, %arg1: i32) -> (i32, i32, i32) {
    %c0_i32 = arith.constant 0 : i32
    %c0_i32_0 = arith.constant 0 : i32
    %c0_i32_1 = arith.constant 0 : i32
    %c0_i32_2 = arith.constant 0 : i32
    return %c0_i32, %c0_i32_0, %c0_i32_1 : i32, i32, i32
  }
  func.func @transform_3(%arg0: i32, %arg1: i32) -> (i32, i32, i32) {
    %c0_i32 = arith.constant 0 : i32
    %c0_i32_0 = arith.constant 0 : i32
    %c0_i32_1 = arith.constant 0 : i32
    %c0_i32_2 = arith.constant 0 : i32
    return %c0_i32, %c0_i32_0, %c0_i32_1 : i32, i32, i32
  }
  func.func @transform_4(%arg0: i32, %arg1: i32) -> (i32, i32, i32) {
    %c0_i32 = arith.constant 0 : i32
    %c0_i32_0 = arith.constant 0 : i32
    %c0_i32_1 = arith.constant 0 : i32
    %c0_i32_2 = arith.constant 0 : i32
    return %c0_i32, %c0_i32_0, %c0_i32_1 : i32, i32, i32
  }
  func.func @transform_5(%arg0: i32, %arg1: i32) -> (i32, i32, i32) {
    %c0_i32 = arith.constant 0 : i32
    %c0_i32_0 = arith.constant 0 : i32
    %c0_i32_1 = arith.constant 0 : i32
    %c0_i32_2 = arith.constant 0 : i32
    return %c0_i32, %c0_i32_0, %c0_i32_1 : i32, i32, i32
  }
  func.func @transform_6(%arg0: i32, %arg1: i32) -> (i32, i32) {
    %c0_i32 = arith.constant 0 : i32
    %c0_i32_0 = arith.constant 0 : i32
    %c0_i32_1 = arith.constant 0 : i32
    return %c0_i32, %c0_i32_0 : i32, i32
  }
  func.func @transform_7(%arg0: i32, %arg1: i32) -> (i32, i32) {
    %c0_i32 = arith.constant 0 : i32
    %c0_i32_0 = arith.constant 0 : i32
    %c0_i32_1 = arith.constant 0 : i32
    return %c0_i32, %c0_i32_0 : i32, i32
  }
  func.func @transform_8(%arg0: i32, %arg1: i32) -> (i32, i32) {
    %c0_i32 = arith.constant 0 : i32
    %c0_i32_0 = arith.constant 0 : i32
    %c0_i32_1 = arith.constant 0 : i32
    return %c0_i32, %c0_i32_0 : i32, i32
  }
  func.func @transform_9(%arg0: i32, %arg1: i32) -> (i32, i32, i32) {
    %c0_i32 = arith.constant 0 : i32
    %c0_i32_0 = arith.constant 0 : i32
    return %arg0, %arg1, %c0_i32 : i32, i32, i32
  }
}

module attributes {stable_mosaic.version = 11 : i64} {
  func.func @_holo_qkv_kernel(%arg0: i32, %arg1: i32, %arg2: memref<1x8x32xf32, #tpu.memory_space<vmem>>, %arg3: memref<5x32x128xbf16, #tpu.memory_space<vmem>>, %arg4: memref<5x32x128xbf16, #tpu.memory_space<vmem>>, %arg5: memref<5x1x128xf32, #tpu.memory_space<vmem>>, %arg6: memref<5x128x32xbf16, #tpu.memory_space<vmem>>, %arg7: memref<5x1x32xf32, #tpu.memory_space<vmem>>, %arg8: memref<32x64xbf16, #tpu.memory_space<vmem>>, %arg9: memref<32x32xbf16, #tpu.memory_space<vmem>>, %arg10: memref<32x32xbf16, #tpu.memory_space<vmem>>, %arg11: memref<1x8x32xf32, #tpu.memory_space<vmem>>, %arg12: memref<1x32xf32, #tpu.memory_space<vmem>>) attributes {dimension_semantics = [#tpu.dimension_semantics<parallel>, #tpu.dimension_semantics<arbitrary>], iteration_bounds = array<i64: 2, 1>, scalar_prefetch = 0 : i64, scratch_operands = 1 : i64, tpu.core_type = #tpu.core_type<tc>, window_params = [{transform_indices = @transform_0, window_bounds = array<i64: 1, 8, 32>}, {pipeline_mode = #tpu.pipeline_mode<synchronous>, transform_indices = @transform_1, window_bounds = array<i64: 5, 32, 128>}, {pipeline_mode = #tpu.pipeline_mode<synchronous>, transform_indices = @transform_2, window_bounds = array<i64: 5, 32, 128>}, {pipeline_mode = #tpu.pipeline_mode<synchronous>, transform_indices = @transform_3, window_bounds = array<i64: 5, 1, 128>}, {pipeline_mode = #tpu.pipeline_mode<synchronous>, transform_indices = @transform_4, window_bounds = array<i64: 5, 128, 32>}, {pipeline_mode = #tpu.pipeline_mode<synchronous>, transform_indices = @transform_5, window_bounds = array<i64: 5, 1, 32>}, {pipeline_mode = #tpu.pipeline_mode<synchronous>, transform_indices = @transform_6, window_bounds = array<i64: 32, 64>}, {pipeline_mode = #tpu.pipeline_mode<synchronous>, transform_indices = @transform_7, window_bounds = array<i64: 32, 32>}, {pipeline_mode = #tpu.pipeline_mode<synchronous>, transform_indices = @transform_8, window_bounds = array<i64: 32, 32>}, {transform_indices = @transform_9, window_bounds = array<i64: 1, 8, 32>}]} {
    %c0_i32 = arith.constant 0 : i32
    %0 = arith.cmpi eq, %arg1, %c0_i32 : i32
    %1 = arith.extui %0 : i1 to i32
    %c0_i32_0 = arith.constant 0 : i32
    %2 = arith.cmpi ne, %1, %c0_i32_0 : i32
    scf.if %2 {
      %cst_128 = arith.constant 0.000000e+00 : f32
      %255 = vector.broadcast %cst_128 : f32 to vector<1x32xf32>
      %c0_129 = arith.constant 0 : index
      %c0_130 = arith.constant 0 : index
      %256 = vector.load %arg12[%c0_129, %c0_130] : memref<1x32xf32, #tpu.memory_space<vmem>>, vector<1x32xf32>
      tpu.vector_store %arg12[%c0_129, %c0_130], %255 {strides = array<i32>} : memref<1x32xf32, #tpu.memory_space<vmem>>, vector<1x32xf32>,
    } else {
    }
    %c0 = arith.constant 0 : index
    %c0_1 = arith.constant 0 : index
    %c0_2 = arith.constant 0 : index
    %3 = vector.load %arg2[%c0, %c0_1, %c0_2] : memref<1x8x32xf32, #tpu.memory_space<vmem>>, vector<1x8x32xf32>
    %4 = vector.shape_cast %3 : vector<1x8x32xf32> to vector<8x32xf32>
    %5 = arith.truncf %4 : vector<8x32xf32> to vector<8x32xbf16>
    %6 = tpu.iota {dimensions = array<i32: 0>} : vector<8x8xi32>
    %7 = tpu.iota {dimensions = array<i32: 1>} : vector<8x8xi32>
    %8 = arith.cmpi sgt, %6, %7 : vector<8x8xi32>
    %9 = arith.extui %8 : vector<8x8xi1> to vector<8x8xi32>
    %10 = arith.sitofp %9 : vector<8x8xi32> to vector<8x8xf32>
    %11 = arith.truncf %10 : vector<8x8xf32> to vector<8x8xbf16>
    %cst = arith.constant dense<0.000000e+00> : vector<8x32xf32>
    %12 = tpu.matmul %11, %5, %cst {dimension_numbers = #tpu.dot_dimension_numbers<[1], [0], [0], [1], [0, 0, 1, 1], [], []>} : vector<8x8xbf16>, vector<8x32xbf16>, vector<8x32xf32> -> vector<8x32xf32>
    %c0_3 = arith.constant 0 : index
    %c0_4 = arith.constant 0 : index
    %13 = vector.load %arg12[%c0_3, %c0_4] : memref<1x32xf32, #tpu.memory_space<vmem>>, vector<1x32xf32>
    %14 = vector.broadcast %13 : vector<1x32xf32> to vector<8x32xf32>
    %15 = arith.addf %12, %14 : vector<8x32xf32>
    %c0_5 = arith.constant 0 : index
    %c0_6 = arith.constant 0 : index
    %16 = vector.load %arg12[%c0_5, %c0_6] : memref<1x32xf32, #tpu.memory_space<vmem>>, vector<1x32xf32>
    %cst_7 = arith.constant dense<0.000000e+00> : vector<32xf32>
    %17 = vector.multi_reduction <add>, %4, %cst_7 [0] : vector<8x32xf32> to vector<32xf32>
    %18 = vector.shape_cast %17 : vector<32xf32> to vector<1x32xf32>
    %19 = arith.addf %16, %18 : vector<1x32xf32>
    %c0_8 = arith.constant 0 : index
    %c0_9 = arith.constant 0 : index
    %20 = vector.load %arg12[%c0_8, %c0_9] : memref<1x32xf32, #tpu.memory_space<vmem>>, vector<1x32xf32>
    tpu.vector_store %arg12[%c0_8, %c0_9], %19 {strides = array<i32>} : memref<1x32xf32, #tpu.memory_space<vmem>>, vector<1x32xf32>,
    %21 = arith.truncf %15 : vector<8x32xf32> to vector<8x32xbf16>
    %c0_10 = arith.constant 0 : index
    %c0_11 = arith.constant 0 : index
    %22 = vector.load %arg8[%c0_10, %c0_11] : memref<32x64xbf16, #tpu.memory_space<vmem>>, vector<32x64xbf16>
    %cst_12 = arith.constant dense<0.000000e+00> : vector<8x64xf32>
    %23 = tpu.matmul %21, %22, %cst_12 {dimension_numbers = #tpu.dot_dimension_numbers<[1], [0], [0], [1], [0, 0, 1, 1], [], []>} : vector<8x32xbf16>, vector<32x64xbf16>, vector<8x64xf32> -> vector<8x64xf32>
    %24 = vector.extract_strided_slice %23 {offsets = [0, 0], sizes = [8, 32], strides = [1, 1]} : vector<8x64xf32> to vector<8x32xf32>
    %25 = vector.extract_strided_slice %23 {offsets = [0, 32], sizes = [8, 32], strides = [1, 1]} : vector<8x64xf32> to vector<8x32xf32>
    %c0_13 = arith.constant 0 : index
    %c0_14 = arith.constant 0 : index
    %c0_15 = arith.constant 0 : index
    %26 = vector.load %arg3[%c0_13, %c0_14, %c0_15] : memref<5x32x128xbf16, #tpu.memory_space<vmem>>, vector<1x32x128xbf16>
    %27 = vector.shape_cast %26 : vector<1x32x128xbf16> to vector<32x128xbf16>
    %cst_16 = arith.constant dense<0.000000e+00> : vector<8x128xf32>
    %28 = tpu.matmul %21, %27, %cst_16 {dimension_numbers = #tpu.dot_dimension_numbers<[1], [0], [0], [1], [0, 0, 1, 1], [], []>} : vector<8x32xbf16>, vector<32x128xbf16>, vector<8x128xf32> -> vector<8x128xf32>
    %c0_17 = arith.constant 0 : index
    %c0_18 = arith.constant 0 : index
    %c0_19 = arith.constant 0 : index
    %29 = vector.load %arg4[%c0_17, %c0_18, %c0_19] : memref<5x32x128xbf16, #tpu.memory_space<vmem>>, vector<1x32x128xbf16>
    %30 = vector.shape_cast %29 : vector<1x32x128xbf16> to vector<32x128xbf16>
    %cst_20 = arith.constant dense<0.000000e+00> : vector<8x128xf32>
    %31 = tpu.matmul %5, %30, %cst_20 {dimension_numbers = #tpu.dot_dimension_numbers<[1], [0], [0], [1], [0, 0, 1, 1], [], []>} : vector<8x32xbf16>, vector<32x128xbf16>, vector<8x128xf32> -> vector<8x128xf32>
    %32 = arith.addf %28, %31 : vector<8x128xf32>
    %c0_21 = arith.constant 0 : index
    %c0_22 = arith.constant 0 : index
    %c0_23 = arith.constant 0 : index
    %33 = vector.load %arg5[%c0_21, %c0_22, %c0_23] : memref<5x1x128xf32, #tpu.memory_space<vmem>>, vector<1x1x128xf32>
    %34 = vector.shape_cast %33 : vector<1x1x128xf32> to vector<1x128xf32>
    %35 = vector.broadcast %34 : vector<1x128xf32> to vector<8x128xf32>
    %36 = arith.addf %32, %35 : vector<8x128xf32>
    %cst_24 = arith.constant 0.000000e+00 : f32
    %37 = vector.broadcast %cst_24 : f32 to vector<8x128xf32>
    %38 = arith.cmpf oge, %36, %37 : vector<8x128xf32>
    %cst_25 = arith.constant 0.00999999977 : f32
    %39 = vector.broadcast %cst_25 : f32 to vector<8x128xf32>
    %40 = arith.mulf %39, %36 : vector<8x128xf32>
    %41 = arith.select %38, %36, %40 : vector<8x128xi1>, vector<8x128xf32>
    %42 = arith.truncf %41 : vector<8x128xf32> to vector<8x128xbf16>
    %c0_26 = arith.constant 0 : index
    %c0_27 = arith.constant 0 : index
    %c0_28 = arith.constant 0 : index
    %43 = vector.load %arg6[%c0_26, %c0_27, %c0_28] : memref<5x128x32xbf16, #tpu.memory_space<vmem>>, vector<1x128x32xbf16>
    %44 = vector.shape_cast %43 : vector<1x128x32xbf16> to vector<128x32xbf16>
    %cst_29 = arith.constant dense<0.000000e+00> : vector<8x32xf32>
    %45 = tpu.matmul %42, %44, %cst_29 {dimension_numbers = #tpu.dot_dimension_numbers<[1], [0], [0], [1], [0, 0, 1, 1], [], []>} : vector<8x128xbf16>, vector<128x32xbf16>, vector<8x32xf32> -> vector<8x32xf32>
    %c0_30 = arith.constant 0 : index
    %c0_31 = arith.constant 0 : index
    %c0_32 = arith.constant 0 : index
    %46 = vector.load %arg7[%c0_30, %c0_31, %c0_32] : memref<5x1x32xf32, #tpu.memory_space<vmem>>, vector<1x1x32xf32>
    %47 = vector.shape_cast %46 : vector<1x1x32xf32> to vector<1x32xf32>
    %48 = vector.broadcast %47 : vector<1x32xf32> to vector<8x32xf32>
    %49 = arith.addf %45, %48 : vector<8x32xf32>
    %50 = arith.truncf %49 : vector<8x32xf32> to vector<8x32xbf16>
    %cst_33 = arith.constant dense<0.000000e+00> : vector<8x64xf32>
    %51 = tpu.matmul %50, %22, %cst_33 {dimension_numbers = #tpu.dot_dimension_numbers<[1], [0], [0], [1], [0, 0, 1, 1], [], []>} : vector<8x32xbf16>, vector<32x64xbf16>, vector<8x64xf32> -> vector<8x64xf32>
    %52 = vector.extract_strided_slice %51 {offsets = [0, 0], sizes = [8, 32], strides = [1, 1]} : vector<8x64xf32> to vector<8x32xf32>
    %53 = vector.extract_strided_slice %51 {offsets = [0, 32], sizes = [8, 32], strides = [1, 1]} : vector<8x64xf32> to vector<8x32xf32>
    %54 = arith.mulf %52, %52 : vector<8x32xf32>
    %55 = arith.mulf %53, %53 : vector<8x32xf32>
    %56 = arith.addf %54, %55 : vector<8x32xf32>
    %cst_34 = arith.constant 9.99999996E-13 : f32
    %57 = vector.broadcast %cst_34 : f32 to vector<8x32xf32>
    %58 = arith.addf %56, %57 : vector<8x32xf32>
    %59 = math.rsqrt %58 : vector<8x32xf32>
    %60 = arith.mulf %52, %59 : vector<8x32xf32>
    %61 = arith.mulf %53, %59 : vector<8x32xf32>
    %c1 = arith.constant 1 : index
    %c0_35 = arith.constant 0 : index
    %c0_36 = arith.constant 0 : index
    %62 = vector.load %arg3[%c1, %c0_35, %c0_36] : memref<5x32x128xbf16, #tpu.memory_space<vmem>>, vector<1x32x128xbf16>
    %63 = vector.shape_cast %62 : vector<1x32x128xbf16> to vector<32x128xbf16>
    %cst_37 = arith.constant dense<0.000000e+00> : vector<8x128xf32>
    %64 = tpu.matmul %21, %63, %cst_37 {dimension_numbers = #tpu.dot_dimension_numbers<[1], [0], [0], [1], [0, 0, 1, 1], [], []>} : vector<8x32xbf16>, vector<32x128xbf16>, vector<8x128xf32> -> vector<8x128xf32>
    %c1_38 = arith.constant 1 : index
    %c0_39 = arith.constant 0 : index
    %c0_40 = arith.constant 0 : index
    %65 = vector.load %arg4[%c1_38, %c0_39, %c0_40] : memref<5x32x128xbf16, #tpu.memory_space<vmem>>, vector<1x32x128xbf16>
    %66 = vector.shape_cast %65 : vector<1x32x128xbf16> to vector<32x128xbf16>
    %cst_41 = arith.constant dense<0.000000e+00> : vector<8x128xf32>
    %67 = tpu.matmul %5, %66, %cst_41 {dimension_numbers = #tpu.dot_dimension_numbers<[1], [0], [0], [1], [0, 0, 1, 1], [], []>} : vector<8x32xbf16>, vector<32x128xbf16>, vector<8x128xf32> -> vector<8x128xf32>
    %68 = arith.addf %64, %67 : vector<8x128xf32>
    %c1_42 = arith.constant 1 : index
    %c0_43 = arith.constant 0 : index
    %c0_44 = arith.constant 0 : index
    %69 = vector.load %arg5[%c1_42, %c0_43, %c0_44] : memref<5x1x128xf32, #tpu.memory_space<vmem>>, vector<1x1x128xf32>
    %70 = vector.shape_cast %69 : vector<1x1x128xf32> to vector<1x128xf32>
    %71 = vector.broadcast %70 : vector<1x128xf32> to vector<8x128xf32>
    %72 = arith.addf %68, %71 : vector<8x128xf32>
    %cst_45 = arith.constant 0.000000e+00 : f32
    %73 = vector.broadcast %cst_45 : f32 to vector<8x128xf32>
    %74 = arith.cmpf oge, %72, %73 : vector<8x128xf32>
    %cst_46 = arith.constant 0.00999999977 : f32
    %75 = vector.broadcast %cst_46 : f32 to vector<8x128xf32>
    %76 = arith.mulf %75, %72 : vector<8x128xf32>
    %77 = arith.select %74, %72, %76 : vector<8x128xi1>, vector<8x128xf32>
    %78 = arith.truncf %77 : vector<8x128xf32> to vector<8x128xbf16>
    %c1_47 = arith.constant 1 : index
    %c0_48 = arith.constant 0 : index
    %c0_49 = arith.constant 0 : index
    %79 = vector.load %arg6[%c1_47, %c0_48, %c0_49] : memref<5x128x32xbf16, #tpu.memory_space<vmem>>, vector<1x128x32xbf16>
    %80 = vector.shape_cast %79 : vector<1x128x32xbf16> to vector<128x32xbf16>
    %cst_50 = arith.constant dense<0.000000e+00> : vector<8x32xf32>
    %81 = tpu.matmul %78, %80, %cst_50 {dimension_numbers = #tpu.dot_dimension_numbers<[1], [0], [0], [1], [0, 0, 1, 1], [], []>} : vector<8x128xbf16>, vector<128x32xbf16>, vector<8x32xf32> -> vector<8x32xf32>
    %c1_51 = arith.constant 1 : index
    %c0_52 = arith.constant 0 : index
    %c0_53 = arith.constant 0 : index
    %82 = vector.load %arg7[%c1_51, %c0_52, %c0_53] : memref<5x1x32xf32, #tpu.memory_space<vmem>>, vector<1x1x32xf32>
    %83 = vector.shape_cast %82 : vector<1x1x32xf32> to vector<1x32xf32>
    %84 = vector.broadcast %83 : vector<1x32xf32> to vector<8x32xf32>
    %85 = arith.addf %81, %84 : vector<8x32xf32>
    %86 = arith.truncf %85 : vector<8x32xf32> to vector<8x32xbf16>
    %cst_54 = arith.constant dense<0.000000e+00> : vector<8x64xf32>
    %87 = tpu.matmul %86, %22, %cst_54 {dimension_numbers = #tpu.dot_dimension_numbers<[1], [0], [0], [1], [0, 0, 1, 1], [], []>} : vector<8x32xbf16>, vector<32x64xbf16>, vector<8x64xf32> -> vector<8x64xf32>
    %88 = vector.extract_strided_slice %87 {offsets = [0, 0], sizes = [8, 32], strides = [1, 1]} : vector<8x64xf32> to vector<8x32xf32>
    %89 = vector.extract_strided_slice %87 {offsets = [0, 32], sizes = [8, 32], strides = [1, 1]} : vector<8x64xf32> to vector<8x32xf32>
    %90 = arith.mulf %88, %88 : vector<8x32xf32>
    %91 = arith.mulf %89, %89 : vector<8x32xf32>
    %92 = arith.addf %90, %91 : vector<8x32xf32>
    %cst_55 = arith.constant 9.99999996E-13 : f32
    %93 = vector.broadcast %cst_55 : f32 to vector<8x32xf32>
    %94 = arith.addf %92, %93 : vector<8x32xf32>
    %95 = math.rsqrt %94 : vector<8x32xf32>
    %96 = arith.mulf %88, %95 : vector<8x32xf32>
    %97 = arith.mulf %89, %95 : vector<8x32xf32>
    %c2 = arith.constant 2 : index
    %c0_56 = arith.constant 0 : index
    %c0_57 = arith.constant 0 : index
    %98 = vector.load %arg3[%c2, %c0_56, %c0_57] : memref<5x32x128xbf16, #tpu.memory_space<vmem>>, vector<1x32x128xbf16>
    %99 = vector.shape_cast %98 : vector<1x32x128xbf16> to vector<32x128xbf16>
    %cst_58 = arith.constant dense<0.000000e+00> : vector<8x128xf32>
    %100 = tpu.matmul %21, %99, %cst_58 {dimension_numbers = #tpu.dot_dimension_numbers<[1], [0], [0], [1], [0, 0, 1, 1], [], []>} : vector<8x32xbf16>, vector<32x128xbf16>, vector<8x128xf32> -> vector<8x128xf32>
    %c2_59 = arith.constant 2 : index
    %c0_60 = arith.constant 0 : index
    %c0_61 = arith.constant 0 : index
    %101 = vector.load %arg4[%c2_59, %c0_60, %c0_61] : memref<5x32x128xbf16, #tpu.memory_space<vmem>>, vector<1x32x128xbf16>
    %102 = vector.shape_cast %101 : vector<1x32x128xbf16> to vector<32x128xbf16>
    %cst_62 = arith.constant dense<0.000000e+00> : vector<8x128xf32>
    %103 = tpu.matmul %5, %102, %cst_62 {dimension_numbers = #tpu.dot_dimension_numbers<[1], [0], [0], [1], [0, 0, 1, 1], [], []>} : vector<8x32xbf16>, vector<32x128xbf16>, vector<8x128xf32> -> vector<8x128xf32>
    %104 = arith.addf %100, %103 : vector<8x128xf32>
    %c2_63 = arith.constant 2 : index
    %c0_64 = arith.constant 0 : index
    %c0_65 = arith.constant 0 : index
    %105 = vector.load %arg5[%c2_63, %c0_64, %c0_65] : memref<5x1x128xf32, #tpu.memory_space<vmem>>, vector<1x1x128xf32>
    %106 = vector.shape_cast %105 : vector<1x1x128xf32> to vector<1x128xf32>
    %107 = vector.broadcast %106 : vector<1x128xf32> to vector<8x128xf32>
    %108 = arith.addf %104, %107 : vector<8x128xf32>
    %cst_66 = arith.constant 0.000000e+00 : f32
    %109 = vector.broadcast %cst_66 : f32 to vector<8x128xf32>
    %110 = arith.cmpf oge, %108, %109 : vector<8x128xf32>
    %cst_67 = arith.constant 0.00999999977 : f32
    %111 = vector.broadcast %cst_67 : f32 to vector<8x128xf32>
    %112 = arith.mulf %111, %108 : vector<8x128xf32>
    %113 = arith.select %110, %108, %112 : vector<8x128xi1>, vector<8x128xf32>
    %114 = arith.truncf %113 : vector<8x128xf32> to vector<8x128xbf16>
    %c2_68 = arith.constant 2 : index
    %c0_69 = arith.constant 0 : index
    %c0_70 = arith.constant 0 : index
    %115 = vector.load %arg6[%c2_68, %c0_69, %c0_70] : memref<5x128x32xbf16, #tpu.memory_space<vmem>>, vector<1x128x32xbf16>
    %116 = vector.shape_cast %115 : vector<1x128x32xbf16> to vector<128x32xbf16>
    %cst_71 = arith.constant dense<0.000000e+00> : vector<8x32xf32>
    %117 = tpu.matmul %114, %116, %cst_71 {dimension_numbers = #tpu.dot_dimension_numbers<[1], [0], [0], [1], [0, 0, 1, 1], [], []>} : vector<8x128xbf16>, vector<128x32xbf16>, vector<8x32xf32> -> vector<8x32xf32>
    %c2_72 = arith.constant 2 : index
    %c0_73 = arith.constant 0 : index
    %c0_74 = arith.constant 0 : index
    %118 = vector.load %arg7[%c2_72, %c0_73, %c0_74] : memref<5x1x32xf32, #tpu.memory_space<vmem>>, vector<1x1x32xf32>
    %119 = vector.shape_cast %118 : vector<1x1x32xf32> to vector<1x32xf32>
    %120 = vector.broadcast %119 : vector<1x32xf32> to vector<8x32xf32>
    %121 = arith.addf %117, %120 : vector<8x32xf32>
    %122 = arith.truncf %121 : vector<8x32xf32> to vector<8x32xbf16>
    %cst_75 = arith.constant dense<0.000000e+00> : vector<8x64xf32>
    %123 = tpu.matmul %122, %22, %cst_75 {dimension_numbers = #tpu.dot_dimension_numbers<[1], [0], [0], [1], [0, 0, 1, 1], [], []>} : vector<8x32xbf16>, vector<32x64xbf16>, vector<8x64xf32> -> vector<8x64xf32>
    %124 = vector.extract_strided_slice %123 {offsets = [0, 0], sizes = [8, 32], strides = [1, 1]} : vector<8x64xf32> to vector<8x32xf32>
    %125 = vector.extract_strided_slice %123 {offsets = [0, 32], sizes = [8, 32], strides = [1, 1]} : vector<8x64xf32> to vector<8x32xf32>
    %126 = arith.mulf %124, %124 : vector<8x32xf32>
    %127 = arith.mulf %125, %125 : vector<8x32xf32>
    %128 = arith.addf %126, %127 : vector<8x32xf32>
    %cst_76 = arith.constant 9.99999996E-13 : f32
    %129 = vector.broadcast %cst_76 : f32 to vector<8x32xf32>
    %130 = arith.addf %128, %129 : vector<8x32xf32>
    %131 = math.rsqrt %130 : vector<8x32xf32>
    %132 = arith.mulf %124, %131 : vector<8x32xf32>
    %133 = arith.mulf %125, %131 : vector<8x32xf32>
    %c3 = arith.constant 3 : index
    %c0_77 = arith.constant 0 : index
    %c0_78 = arith.constant 0 : index
    %134 = vector.load %arg3[%c3, %c0_77, %c0_78] : memref<5x32x128xbf16, #tpu.memory_space<vmem>>, vector<1x32x128xbf16>
    %135 = vector.shape_cast %134 : vector<1x32x128xbf16> to vector<32x128xbf16>
    %cst_79 = arith.constant dense<0.000000e+00> : vector<8x128xf32>
    %136 = tpu.matmul %21, %135, %cst_79 {dimension_numbers = #tpu.dot_dimension_numbers<[1], [0], [0], [1], [0, 0, 1, 1], [], []>} : vector<8x32xbf16>, vector<32x128xbf16>, vector<8x128xf32> -> vector<8x128xf32>
    %c3_80 = arith.constant 3 : index
    %c0_81 = arith.constant 0 : index
    %c0_82 = arith.constant 0 : index
    %137 = vector.load %arg4[%c3_80, %c0_81, %c0_82] : memref<5x32x128xbf16, #tpu.memory_space<vmem>>, vector<1x32x128xbf16>
    %138 = vector.shape_cast %137 : vector<1x32x128xbf16> to vector<32x128xbf16>
    %cst_83 = arith.constant dense<0.000000e+00> : vector<8x128xf32>
    %139 = tpu.matmul %5, %138, %cst_83 {dimension_numbers = #tpu.dot_dimension_numbers<[1], [0], [0], [1], [0, 0, 1, 1], [], []>} : vector<8x32xbf16>, vector<32x128xbf16>, vector<8x128xf32> -> vector<8x128xf32>
    %140 = arith.addf %136, %139 : vector<8x128xf32>
    %c3_84 = arith.constant 3 : index
    %c0_85 = arith.constant 0 : index
    %c0_86 = arith.constant 0 : index
    %141 = vector.load %arg5[%c3_84, %c0_85, %c0_86] : memref<5x1x128xf32, #tpu.memory_space<vmem>>, vector<1x1x128xf32>
    %142 = vector.shape_cast %141 : vector<1x1x128xf32> to vector<1x128xf32>
    %143 = vector.broadcast %142 : vector<1x128xf32> to vector<8x128xf32>
    %144 = arith.addf %140, %143 : vector<8x128xf32>
    %cst_87 = arith.constant 0.000000e+00 : f32
    %145 = vector.broadcast %cst_87 : f32 to vector<8x128xf32>
    %146 = arith.cmpf oge, %144, %145 : vector<8x128xf32>
    %cst_88 = arith.constant 0.00999999977 : f32
    %147 = vector.broadcast %cst_88 : f32 to vector<8x128xf32>
    %148 = arith.mulf %147, %144 : vector<8x128xf32>
    %149 = arith.select %146, %144, %148 : vector<8x128xi1>, vector<8x128xf32>
    %150 = arith.truncf %149 : vector<8x128xf32> to vector<8x128xbf16>
    %c3_89 = arith.constant 3 : index
    %c0_90 = arith.constant 0 : index
    %c0_91 = arith.constant 0 : index
    %151 = vector.load %arg6[%c3_89, %c0_90, %c0_91] : memref<5x128x32xbf16, #tpu.memory_space<vmem>>, vector<1x128x32xbf16>
    %152 = vector.shape_cast %151 : vector<1x128x32xbf16> to vector<128x32xbf16>
    %cst_92 = arith.constant dense<0.000000e+00> : vector<8x32xf32>
    %153 = tpu.matmul %150, %152, %cst_92 {dimension_numbers = #tpu.dot_dimension_numbers<[1], [0], [0], [1], [0, 0, 1, 1], [], []>} : vector<8x128xbf16>, vector<128x32xbf16>, vector<8x32xf32> -> vector<8x32xf32>
    %c3_93 = arith.constant 3 : index
    %c0_94 = arith.constant 0 : index
    %c0_95 = arith.constant 0 : index
    %154 = vector.load %arg7[%c3_93, %c0_94, %c0_95] : memref<5x1x32xf32, #tpu.memory_space<vmem>>, vector<1x1x32xf32>
    %155 = vector.shape_cast %154 : vector<1x1x32xf32> to vector<1x32xf32>
    %156 = vector.broadcast %155 : vector<1x32xf32> to vector<8x32xf32>
    %157 = arith.addf %153, %156 : vector<8x32xf32>
    %158 = arith.truncf %157 : vector<8x32xf32> to vector<8x32xbf16>
    %cst_96 = arith.constant dense<0.000000e+00> : vector<8x64xf32>
    %159 = tpu.matmul %158, %22, %cst_96 {dimension_numbers = #tpu.dot_dimension_numbers<[1], [0], [0], [1], [0, 0, 1, 1], [], []>} : vector<8x32xbf16>, vector<32x64xbf16>, vector<8x64xf32> -> vector<8x64xf32>
    %160 = vector.extract_strided_slice %159 {offsets = [0, 0], sizes = [8, 32], strides = [1, 1]} : vector<8x64xf32> to vector<8x32xf32>
    %161 = vector.extract_strided_slice %159 {offsets = [0, 32], sizes = [8, 32], strides = [1, 1]} : vector<8x64xf32> to vector<8x32xf32>
    %162 = arith.mulf %160, %160 : vector<8x32xf32>
    %163 = arith.mulf %161, %161 : vector<8x32xf32>
    %164 = arith.addf %162, %163 : vector<8x32xf32>
    %cst_97 = arith.constant 9.99999996E-13 : f32
    %165 = vector.broadcast %cst_97 : f32 to vector<8x32xf32>
    %166 = arith.addf %164, %165 : vector<8x32xf32>
    %167 = math.rsqrt %166 : vector<8x32xf32>
    %168 = arith.mulf %160, %167 : vector<8x32xf32>
    %169 = arith.mulf %161, %167 : vector<8x32xf32>
    %c4 = arith.constant 4 : index
    %c0_98 = arith.constant 0 : index
    %c0_99 = arith.constant 0 : index
    %170 = vector.load %arg3[%c4, %c0_98, %c0_99] : memref<5x32x128xbf16, #tpu.memory_space<vmem>>, vector<1x32x128xbf16>
    %171 = vector.shape_cast %170 : vector<1x32x128xbf16> to vector<32x128xbf16>
    %cst_100 = arith.constant dense<0.000000e+00> : vector<8x128xf32>
    %172 = tpu.matmul %21, %171, %cst_100 {dimension_numbers = #tpu.dot_dimension_numbers<[1], [0], [0], [1], [0, 0, 1, 1], [], []>} : vector<8x32xbf16>, vector<32x128xbf16>, vector<8x128xf32> -> vector<8x128xf32>
    %c4_101 = arith.constant 4 : index
    %c0_102 = arith.constant 0 : index
    %c0_103 = arith.constant 0 : index
    %173 = vector.load %arg4[%c4_101, %c0_102, %c0_103] : memref<5x32x128xbf16, #tpu.memory_space<vmem>>, vector<1x32x128xbf16>
    %174 = vector.shape_cast %173 : vector<1x32x128xbf16> to vector<32x128xbf16>
    %cst_104 = arith.constant dense<0.000000e+00> : vector<8x128xf32>
    %175 = tpu.matmul %5, %174, %cst_104 {dimension_numbers = #tpu.dot_dimension_numbers<[1], [0], [0], [1], [0, 0, 1, 1], [], []>} : vector<8x32xbf16>, vector<32x128xbf16>, vector<8x128xf32> -> vector<8x128xf32>
    %176 = arith.addf %172, %175 : vector<8x128xf32>
    %c4_105 = arith.constant 4 : index
    %c0_106 = arith.constant 0 : index
    %c0_107 = arith.constant 0 : index
    %177 = vector.load %arg5[%c4_105, %c0_106, %c0_107] : memref<5x1x128xf32, #tpu.memory_space<vmem>>, vector<1x1x128xf32>
    %178 = vector.shape_cast %177 : vector<1x1x128xf32> to vector<1x128xf32>
    %179 = vector.broadcast %178 : vector<1x128xf32> to vector<8x128xf32>
    %180 = arith.addf %176, %179 : vector<8x128xf32>
    %cst_108 = arith.constant 0.000000e+00 : f32
    %181 = vector.broadcast %cst_108 : f32 to vector<8x128xf32>
    %182 = arith.cmpf oge, %180, %181 : vector<8x128xf32>
    %cst_109 = arith.constant 0.00999999977 : f32
    %183 = vector.broadcast %cst_109 : f32 to vector<8x128xf32>
    %184 = arith.mulf %183, %180 : vector<8x128xf32>
    %185 = arith.select %182, %180, %184 : vector<8x128xi1>, vector<8x128xf32>
    %186 = arith.truncf %185 : vector<8x128xf32> to vector<8x128xbf16>
    %c4_110 = arith.constant 4 : index
    %c0_111 = arith.constant 0 : index
    %c0_112 = arith.constant 0 : index
    %187 = vector.load %arg6[%c4_110, %c0_111, %c0_112] : memref<5x128x32xbf16, #tpu.memory_space<vmem>>, vector<1x128x32xbf16>
    %188 = vector.shape_cast %187 : vector<1x128x32xbf16> to vector<128x32xbf16>
    %cst_113 = arith.constant dense<0.000000e+00> : vector<8x32xf32>
    %189 = tpu.matmul %186, %188, %cst_113 {dimension_numbers = #tpu.dot_dimension_numbers<[1], [0], [0], [1], [0, 0, 1, 1], [], []>} : vector<8x128xbf16>, vector<128x32xbf16>, vector<8x32xf32> -> vector<8x32xf32>
    %c4_114 = arith.constant 4 : index
    %c0_115 = arith.constant 0 : index
    %c0_116 = arith.constant 0 : index
    %190 = vector.load %arg7[%c4_114, %c0_115, %c0_116] : memref<5x1x32xf32, #tpu.memory_space<vmem>>, vector<1x1x32xf32>
    %191 = vector.shape_cast %190 : vector<1x1x32xf32> to vector<1x32xf32>
    %192 = vector.broadcast %191 : vector<1x32xf32> to vector<8x32xf32>
    %193 = arith.addf %189, %192 : vector<8x32xf32>
    %194 = arith.truncf %193 : vector<8x32xf32> to vector<8x32xbf16>
    %cst_117 = arith.constant dense<0.000000e+00> : vector<8x64xf32>
    %195 = tpu.matmul %194, %22, %cst_117 {dimension_numbers = #tpu.dot_dimension_numbers<[1], [0], [0], [1], [0, 0, 1, 1], [], []>} : vector<8x32xbf16>, vector<32x64xbf16>, vector<8x64xf32> -> vector<8x64xf32>
    %196 = vector.extract_strided_slice %195 {offsets = [0, 0], sizes = [8, 32], strides = [1, 1]} : vector<8x64xf32> to vector<8x32xf32>
    %197 = vector.extract_strided_slice %195 {offsets = [0, 32], sizes = [8, 32], strides = [1, 1]} : vector<8x64xf32> to vector<8x32xf32>
    %198 = arith.mulf %196, %196 : vector<8x32xf32>
    %199 = arith.mulf %197, %197 : vector<8x32xf32>
    %200 = arith.addf %198, %199 : vector<8x32xf32>
    %cst_118 = arith.constant 9.99999996E-13 : f32
    %201 = vector.broadcast %cst_118 : f32 to vector<8x32xf32>
    %202 = arith.addf %200, %201 : vector<8x32xf32>
    %203 = math.rsqrt %202 : vector<8x32xf32>
    %204 = arith.mulf %196, %203 : vector<8x32xf32>
    %205 = arith.mulf %197, %203 : vector<8x32xf32>
    %206 = arith.addf %132, %168 : vector<8x32xf32>
    %207 = arith.addf %206, %204 : vector<8x32xf32>
    %208 = arith.addf %133, %169 : vector<8x32xf32>
    %209 = arith.addf %208, %205 : vector<8x32xf32>
    %210 = arith.mulf %60, %207 : vector<8x32xf32>
    %211 = arith.mulf %61, %209 : vector<8x32xf32>
    %212 = arith.subf %210, %211 : vector<8x32xf32>
    %213 = arith.mulf %60, %209 : vector<8x32xf32>
    %214 = arith.mulf %61, %207 : vector<8x32xf32>
    %215 = arith.addf %213, %214 : vector<8x32xf32>
    %216 = arith.mulf %212, %96 : vector<8x32xf32>
    %217 = arith.mulf %215, %97 : vector<8x32xf32>
    %218 = arith.subf %216, %217 : vector<8x32xf32>
    %219 = arith.mulf %212, %97 : vector<8x32xf32>
    %220 = arith.mulf %215, %96 : vector<8x32xf32>
    %221 = arith.addf %219, %220 : vector<8x32xf32>
    %222 = arith.mulf %60, %60 : vector<8x32xf32>
    %223 = arith.mulf %61, %61 : vector<8x32xf32>
    %224 = arith.addf %222, %223 : vector<8x32xf32>
    %225 = arith.mulf %96, %96 : vector<8x32xf32>
    %226 = arith.mulf %97, %97 : vector<8x32xf32>
    %227 = arith.addf %225, %226 : vector<8x32xf32>
    %228 = arith.mulf %132, %132 : vector<8x32xf32>
    %229 = arith.mulf %133, %133 : vector<8x32xf32>
    %230 = arith.addf %228, %229 : vector<8x32xf32>
    %231 = arith.mulf %168, %168 : vector<8x32xf32>
    %232 = arith.addf %230, %231 : vector<8x32xf32>
    %233 = arith.mulf %169, %169 : vector<8x32xf32>
    %234 = arith.addf %232, %233 : vector<8x32xf32>
    %235 = arith.mulf %224, %234 : vector<8x32xf32>
    %236 = arith.mulf %204, %204 : vector<8x32xf32>
    %237 = arith.mulf %205, %205 : vector<8x32xf32>
    %238 = arith.addf %236, %237 : vector<8x32xf32>
    %239 = arith.mulf %227, %238 : vector<8x32xf32>
    %240 = arith.addf %235, %239 : vector<8x32xf32>
    %241 = arith.mulf %240, %24 : vector<8x32xf32>
    %242 = arith.subf %218, %241 : vector<8x32xf32>
    %243 = arith.truncf %242 : vector<8x32xf32> to vector<8x32xbf16>
    %244 = arith.mulf %240, %25 : vector<8x32xf32>
    %245 = arith.subf %221, %244 : vector<8x32xf32>
    %246 = arith.truncf %245 : vector<8x32xf32> to vector<8x32xbf16>
    %c0_119 = arith.constant 0 : index
    %c0_120 = arith.constant 0 : index
    %247 = vector.load %arg9[%c0_119, %c0_120] : memref<32x32xbf16, #tpu.memory_space<vmem>>, vector<32x32xbf16>
    %cst_121 = arith.constant dense<0.000000e+00> : vector<8x32xf32>
    %248 = tpu.matmul %243, %247, %cst_121 {dimension_numbers = #tpu.dot_dimension_numbers<[1], [0], [0], [1], [0, 0, 1, 1], [], []>} : vector<8x32xbf16>, vector<32x32xbf16>, vector<8x32xf32> -> vector<8x32xf32>
    %c0_122 = arith.constant 0 : index
    %c0_123 = arith.constant 0 : index
    %249 = vector.load %arg10[%c0_122, %c0_123] : memref<32x32xbf16, #tpu.memory_space<vmem>>, vector<32x32xbf16>
    %cst_124 = arith.constant dense<0.000000e+00> : vector<8x32xf32>
    %250 = tpu.matmul %246, %249, %cst_124 {dimension_numbers = #tpu.dot_dimension_numbers<[1], [0], [0], [1], [0, 0, 1, 1], [], []>} : vector<8x32xbf16>, vector<32x32xbf16>, vector<8x32xf32> -> vector<8x32xf32>
    %251 = arith.subf %248, %250 : vector<8x32xf32>
    %c0_125 = arith.constant 0 : index
    %c0_126 = arith.constant 0 : index
    %c0_127 = arith.constant 0 : index
    %252 = vector.load %arg11[%c0_125, %c0_126, %c0_127] : memref<1x8x32xf32, #tpu.memory_space<vmem>>, vector<1x8x32xf32>
    %253 = vector.shape_cast %252 : vector<1x8x32xf32> to vector<8x32xf32>
    %254 = vector.shape_cast %251 : vector<8x32xf32> to vector<1x8x32xf32>
    tpu.vector_store %arg11[%c0_125, %c0_126, %c0_127], %254 {strides = array<i32>} : memref<1x8x32xf32, #tpu.memory_space<vmem>>, vector<1x8x32xf32>,
    return
  }
  func.func @transform_0(%arg0: i32, %arg1: i32) -> (i32, i32, i32) {
    %c0_i32 = arith.constant 0 : i32
    %c0_i32_0 = arith.constant 0 : i32
    return %arg0, %arg1, %c0_i32 : i32, i32, i32
  }
  func.func @transform_1(%arg0: i32, %arg1: i32) -> (i32, i32, i32) {
    %c0_i32 = arith.constant 0 : i32
    %c0_i32_0 = arith.constant 0 : i32
    %c0_i32_1 = arith.constant 0 : i32
    %c0_i32_2 = arith.constant 0 : i32
    return %c0_i32, %c0_i32_0, %c0_i32_1 : i32, i32, i32
  }
  func.func @transform_2(%arg0: i32, %arg1: i32) -> (i32, i32, i32) {
    %c0_i32 = arith.constant 0 : i32
    %c0_i32_0 = arith.constant 0 : i32
    %c0_i32_1 = arith.constant 0 : i32
    %c0_i32_2 = arith.constant 0 : i32
    return %c0_i32, %c0_i32_0, %c0_i32_1 : i32, i32, i32
  }
  func.func @transform_3(%arg0: i32, %arg1: i32) -> (i32, i32, i32) {
    %c0_i32 = arith.constant 0 : i32
    %c0_i32_0 = arith.constant 0 : i32
    %c0_i32_1 = arith.constant 0 : i32
    %c0_i32_2 = arith.constant 0 : i32
    return %c0_i32, %c0_i32_0, %c0_i32_1 : i32, i32, i32
  }
  func.func @transform_4(%arg0: i32, %arg1: i32) -> (i32, i32, i32) {
    %c0_i32 = arith.constant 0 : i32
    %c0_i32_0 = arith.constant 0 : i32
    %c0_i32_1 = arith.constant 0 : i32
    %c0_i32_2 = arith.constant 0 : i32
    return %c0_i32, %c0_i32_0, %c0_i32_1 : i32, i32, i32
  }
  func.func @transform_5(%arg0: i32, %arg1: i32) -> (i32, i32, i32) {
    %c0_i32 = arith.constant 0 : i32
    %c0_i32_0 = arith.constant 0 : i32
    %c0_i32_1 = arith.constant 0 : i32
    %c0_i32_2 = arith.constant 0 : i32
    return %c0_i32, %c0_i32_0, %c0_i32_1 : i32, i32, i32
  }
  func.func @transform_6(%arg0: i32, %arg1: i32) -> (i32, i32) {
    %c0_i32 = arith.constant 0 : i32
    %c0_i32_0 = arith.constant 0 : i32
    %c0_i32_1 = arith.constant 0 : i32
    return %c0_i32, %c0_i32_0 : i32, i32
  }
  func.func @transform_7(%arg0: i32, %arg1: i32) -> (i32, i32) {
    %c0_i32 = arith.constant 0 : i32
    %c0_i32_0 = arith.constant 0 : i32
    %c0_i32_1 = arith.constant 0 : i32
    return %c0_i32, %c0_i32_0 : i32, i32
  }
  func.func @transform_8(%arg0: i32, %arg1: i32) -> (i32, i32) {
    %c0_i32 = arith.constant 0 : i32
    %c0_i32_0 = arith.constant 0 : i32
    %c0_i32_1 = arith.constant 0 : i32
    return %c0_i32, %c0_i32_0 : i32, i32
  }
  func.func @transform_9(%arg0: i32, %arg1: i32) -> (i32, i32, i32) {
    %c0_i32 = arith.constant 0 : i32
    %c0_i32_0 = arith.constant 0 : i32
    return %arg0, %arg1, %c0_i32 : i32, i32, i32
  }
}

</mosaic_0001>

<llo_original>
// kernel: tpu_custom_call.1
$region0: #{tpu_custom_call.1}
  #allocation0 [shape = 'u32[]', space=smem, size = 0x4, offset = 0x4, fixed_abs, tag = 'smem constant byte address 0x4 - core index']
  #allocation1 [shape = 'u32[144,128]{1,0:T(1,128)}', space=vmem, size = 0x12000, scoped, tag = 'internal scratch']
  #allocation2 [shape = 'f32[1,32]{1,0:T(1,128)}', space=vmem, size = 0x200, scoped, tag = 'scratch operand']
  %s0 = inlined_call_operand.vmem [shape: f32[2,8,32], index: 0, kind: input, shape index: {}]
  %s1 = inlined_call_operand.vmem [shape: bf16[5,32,128], index: 1, kind: input, shape index: {}]
  %s2 = inlined_call_operand.vmem [shape: bf16[5,32,128], index: 2, kind: input, shape index: {}]
  %s3 = inlined_call_operand.vmem [shape: f32[5,1,128], index: 3, kind: input, shape index: {}]
  %s4 = inlined_call_operand.vmem [shape: bf16[5,128,32], index: 4, kind: input, shape index: {}]
  %s5 = inlined_call_operand.vmem [shape: f32[5,1,32], index: 5, kind: input, shape index: {}]
  %s6 = inlined_call_operand.vmem [shape: bf16[32,64], index: 6, kind: input, shape index: {}]
  %s7 = inlined_call_operand.vmem [shape: bf16[32,32], index: 7, kind: input, shape index: {}]
  %s8 = inlined_call_operand.vmem [shape: bf16[32,32], index: 8, kind: input, shape index: {}]
  %s9 = inlined_call_operand.hbm [shape: f32[2,8,32], index: 9, kind: output, shape index: {}]
  %s10 = sld [smem:[#allocation0]]
  $region73: #{tpu_custom_call.1} parent=0
    _
  %s12 = ssub.s32 1, %s10
  %s13 = scalar_select 0, %s12, %s10
  $region1: #{tpu_custom_call.1} parent=0
    #allocation3 [shape = 'u8[8192]{0}', space=vmem, size = 0x2000, scoped, tag = 'output window, operand 0']
    #allocation4 [shape = 's32[2]{0}', space=sflag, size = 0x8, scoped, tag = 'scoped memory for tpu_custom_call.1']
    %14 = vsyncpa [#allocation4], 0
    %s15 = scalar_lea.sflag [#allocation4], 1
    %16 = vsyncpa %s15, 0
    loop: start=0, step=1, limit=4
    $region2: #{tpu_custom_call.1} parent=1 // loop_pre_header
      _
    $region3: #{tpu_custom_call.1} parent=1 // loop_header
      %s18 = sphi 0, %s22
      %p19 = scmp.ge.s32.totalorder %s18, 4
      %s25 = sphi 0, %s37
      %s26 = sphi 0, %s33
      %s27 = sphi 0, %s25
      %s28 = sphi 0, %s26
      %s29 = sphi 0, %s27
      %s30 = sphi 0, %s28
      %s42 = sphi 0, %s44
      %s45 = sphi 0, %s42
      %s46 = sphi 0, %s45
      %s62 = sphi 0, %s46
      %s66 = sphi 0, %s66
      %s68 = sphi 0, %s66
      %s69 = sphi 0, %s68
      %s83 = sphi 0, %s69
      %s87 = sphi 0, %s87
      %s89 = sphi 0, %s87
      %s90 = sphi 0, %s89
      %s104 = sphi 0, %s90
      %s108 = sphi 0, %s108
      %s110 = sphi 0, %s108
      %s111 = sphi 0, %s110
      %s125 = sphi 0, %s111
      %s129 = sphi 0, %s129
      %s131 = sphi 0, %s129
      %s132 = sphi 0, %s131
      %s146 = sphi 0, %s132
      %s150 = sphi 0, %s150
      %s152 = sphi 0, %s150
      %s153 = sphi 0, %s152
      %s167 = sphi 0, %s153
      %s171 = sphi 0, %s171
      %s173 = sphi 0, %s171
      %s174 = sphi 0, %s173
      %s188 = sphi 0, %s174
      %s192 = sphi 0, %s192
      %s194 = sphi 0, %s192
      %s195 = sphi 0, %s194
      %s209 = sphi 0, %s195
      %s213 = sphi 0, %s213
      %s215 = sphi 0, %s213
      %s216 = sphi 0, %s215
      %s230 = sphi 0, %s216
      %s238 = sphi 0, %s240
      %s241 = sphi 0, %s238
      %s242 = sphi 0, %s241
      %s258 = sphi 0, %s242
    $region4: #{tpu_custom_call.1} parent=1 // loop_header_branch
      %21 = sbr.rel (%p19) target = $region8
    $region5: #{tpu_custom_call.1} parent=1 // loop_body
      %s23 = ssub.s32 %s18, 1
      %s24 = ssub.s32 %s18, 2
      %s31 = sadd.s32 1, %s26
      %p32 = scmp.ge.s32.totalorder %s31, 1
      %s33 = scalar_select %p32, 0, %s31
      %s34 = sadd.s32 1, %s25
      %s35 = scalar_select %p32, %s34, %s25
      %p36 = scmp.ge.s32.totalorder %s35, 2
      %s37 = scalar_select %p36, 0, %s35
      %s38 = ssub.s32 %s25, %s37
      %s39 = ssub.s32 %s26, %s33
      %s40 = sor.u32 %s38, %s39
      %p41 = scmp.eq.s32.totalorder %s40, 0
      %s43 = sadd.s32 %s42, 1
      %s44 = scalar_select %p41, %s42, %s43
      %p47 = pneg %p41
      %p48 = scmp.eq.s32.totalorder %s18, 1
      %p49 = por %p47, %p48
      %p50 = scmp.ne.s32.totalorder %s42, %s45
      %p51 = scmp.eq.s32.totalorder %s18, 0
      %p52 = por %p50, %p51
      %p53 = scmp.ne.s32.totalorder %s42, %s45
      %p54 = scmp.eq.s32.totalorder %s23, 1
      %p55 = por %p53, %p54
      %p56 = scmp.ne.s32.totalorder %s45, %s46
      %p57 = scmp.eq.s32.totalorder %s23, 0
      %p58 = por %p56, %p57
      %p59 = scmp.ne.s32.totalorder %s45, %s46
      %p60 = scmp.eq.s32.totalorder %s24, 1
      %p61 = por %p59, %p60
      %p63 = scmp.ne.s32.totalorder %s46, %s62
      %p64 = scmp.eq.s32.totalorder %s24, 0
      %p65 = por %p63, %p64
      %s67 = sadd.s32 %s66, 1
      %p70 = scmp.eq.s32.totalorder %s18, 1
      %p71 = scmp.ne.s32.totalorder %s66, %s68
      %p72 = scmp.eq.s32.totalorder %s18, 0
      %p73 = por %p71, %p72
      %p74 = scmp.ne.s32.totalorder %s66, %s68
      %p75 = scmp.eq.s32.totalorder %s23, 1
      %p76 = por %p74, %p75
      %p77 = scmp.ne.s32.totalorder %s68, %s69
      %p78 = scmp.eq.s32.totalorder %s23, 0
      %p79 = por %p77, %p78
      %p80 = scmp.ne.s32.totalorder %s68, %s69
      %p81 = scmp.eq.s32.totalorder %s24, 1
      %p82 = por %p80, %p81
      %p84 = scmp.ne.s32.totalorder %s69, %s83
      %p85 = scmp.eq.s32.totalorder %s24, 0
      %p86 = por %p84, %p85
      %s88 = sadd.s32 %s87, 1
      %p91 = scmp.eq.s32.totalorder %s18, 1
      %p92 = scmp.ne.s32.totalorder %s87, %s89
      %p93 = scmp.eq.s32.totalorder %s18, 0
      %p94 = por %p92, %p93
      %p95 = scmp.ne.s32.totalorder %s87, %s89
      %p96 = scmp.eq.s32.totalorder %s23, 1
      %p97 = por %p95, %p96
      %p98 = scmp.ne.s32.totalorder %s89, %s90
      %p99 = scmp.eq.s32.totalorder %s23, 0
      %p100 = por %p98, %p99
      %p101 = scmp.ne.s32.totalorder %s89, %s90
      %p102 = scmp.eq.s32.totalorder %s24, 1
      %p103 = por %p101, %p102
      %p105 = scmp.ne.s32.totalorder %s90, %s104
      %p106 = scmp.eq.s32.totalorder %s24, 0
      %p107 = por %p105, %p106
      %s109 = sadd.s32 %s108, 1
      %p112 = scmp.eq.s32.totalorder %s18, 1
      %p113 = scmp.ne.s32.totalorder %s108, %s110
      %p114 = scmp.eq.s32.totalorder %s18, 0
      %p115 = por %p113, %p114
      %p116 = scmp.ne.s32.totalorder %s108, %s110
      %p117 = scmp.eq.s32.totalorder %s23, 1
      %p118 = por %p116, %p117
      %p119 = scmp.ne.s32.totalorder %s110, %s111
      %p120 = scmp.eq.s32.totalorder %s23, 0
      %p121 = por %p119, %p120
      %p122 = scmp.ne.s32.totalorder %s110, %s111
      %p123 = scmp.eq.s32.totalorder %s24, 1
      %p124 = por %p122, %p123
      %p126 = scmp.ne.s32.totalorder %s111, %s125
      %p127 = scmp.eq.s32.totalorder %s24, 0
      %p128 = por %p126, %p127
      %s130 = sadd.s32 %s129, 1
      %p133 = scmp.eq.s32.totalorder %s18, 1
      %p134 = scmp.ne.s32.totalorder %s129, %s131
      %p135 = scmp.eq.s32.totalorder %s18, 0
      %p136 = por %p134, %p135
      %p137 = scmp.ne.s32.totalorder %s129, %s131
      %p138 = scmp.eq.s32.totalorder %s23, 1
      %p139 = por %p137, %p138
      %p140 = scmp.ne.s32.totalorder %s131, %s132
      %p141 = scmp.eq.s32.totalorder %s23, 0
      %p142 = por %p140, %p141
      %p143 = scmp.ne.s32.totalorder %s131, %s132
      %p144 = scmp.eq.s32.totalorder %s24, 1
      %p145 = por %p143, %p144
      %p147 = scmp.ne.s32.totalorder %s132, %s146
      %p148 = scmp.eq.s32.totalorder %s24, 0
      %p149 = por %p147, %p148
      %s151 = sadd.s32 %s150, 1
      %p154 = scmp.eq.s32.totalorder %s18, 1
      %p155 = scmp.ne.s32.totalorder %s150, %s152
      %p156 = scmp.eq.s32.totalorder %s18, 0
      %p157 = por %p155, %p156
      %p158 = scmp.ne.s32.totalorder %s150, %s152
      %p159 = scmp.eq.s32.totalorder %s23, 1
      %p160 = por %p158, %p159
      %p161 = scmp.ne.s32.totalorder %s152, %s153
      %p162 = scmp.eq.s32.totalorder %s23, 0
      %p163 = por %p161, %p162
      %p164 = scmp.ne.s32.totalorder %s152, %s153
      %p165 = scmp.eq.s32.totalorder %s24, 1
      %p166 = por %p164, %p165
      %p168 = scmp.ne.s32.totalorder %s153, %s167
      %p169 = scmp.eq.s32.totalorder %s24, 0
      %p170 = por %p168, %p169
      %s172 = sadd.s32 %s171, 1
      %p175 = scmp.eq.s32.totalorder %s18, 1
      %p176 = scmp.ne.s32.totalorder %s171, %s173
      %p177 = scmp.eq.s32.totalorder %s18, 0
      %p178 = por %p176, %p177
      %p179 = scmp.ne.s32.totalorder %s171, %s173
      %p180 = scmp.eq.s32.totalorder %s23, 1
      %p181 = por %p179, %p180
      %p182 = scmp.ne.s32.totalorder %s173, %s174
      %p183 = scmp.eq.s32.totalorder %s23, 0
      %p184 = por %p182, %p183
      %p185 = scmp.ne.s32.totalorder %s173, %s174
      %p186 = scmp.eq.s32.totalorder %s24, 1
      %p187 = por %p185, %p186
      %p189 = scmp.ne.s32.totalorder %s174, %s188
      %p190 = scmp.eq.s32.totalorder %s24, 0
      %p191 = por %p189, %p190
      %s193 = sadd.s32 %s192, 1
      %p196 = scmp.eq.s32.totalorder %s18, 1
      %p197 = scmp.ne.s32.totalorder %s192, %s194
      %p198 = scmp.eq.s32.totalorder %s18, 0
      %p199 = por %p197, %p198
      %p200 = scmp.ne.s32.totalorder %s192, %s194
      %p201 = scmp.eq.s32.totalorder %s23, 1
      %p202 = por %p200, %p201
      %p203 = scmp.ne.s32.totalorder %s194, %s195
      %p204 = scmp.eq.s32.totalorder %s23, 0
      %p205 = por %p203, %p204
      %p206 = scmp.ne.s32.totalorder %s194, %s195
      %p207 = scmp.eq.s32.totalorder %s24, 1
      %p208 = por %p206, %p207
      %p210 = scmp.ne.s32.totalorder %s195, %s209
      %p211 = scmp.eq.s32.totalorder %s24, 0
      %p212 = por %p210, %p211
      %s214 = sadd.s32 %s213, 1
      %p217 = scmp.eq.s32.totalorder %s18, 1
      %p218 = scmp.ne.s32.totalorder %s213, %s215
      %p219 = scmp.eq.s32.totalorder %s18, 0
      %p220 = por %p218, %p219
      %p221 = scmp.ne.s32.totalorder %s213, %s215
      %p222 = scmp.eq.s32.totalorder %s23, 1
      %p223 = por %p221, %p222
      %p224 = scmp.ne.s32.totalorder %s215, %s216
      %p225 = scmp.eq.s32.totalorder %s23, 0
      %p226 = por %p224, %p225
      %p227 = scmp.ne.s32.totalorder %s215, %s216
      %p228 = scmp.eq.s32.totalorder %s24, 1
      %p229 = por %p227, %p228
      %p231 = scmp.ne.s32.totalorder %s216, %s230
      %p232 = scmp.eq.s32.totalorder %s24, 0
      %p233 = por %p231, %p232
      %s234 = ssub.s32 %s25, %s37
      %s235 = ssub.s32 %s26, %s33
      %s236 = sor.u32 %s234, %s235
      %p237 = scmp.eq.s32.totalorder %s236, 0
      %s239 = sadd.s32 %s238, 1
      %s240 = scalar_select %p237, %s238, %s239
      %p243 = pneg %p237
      %p244 = scmp.eq.s32.totalorder %s18, 1
      %p245 = por %p243, %p244
      %p246 = scmp.ne.s32.totalorder %s238, %s241
      %p247 = scmp.eq.s32.totalorder %s18, 0
      %p248 = por %p246, %p247
      %p249 = scmp.ne.s32.totalorder %s238, %s241
      %p250 = scmp.eq.s32.totalorder %s23, 1
      %p251 = por %p249, %p250
      %p252 = scmp.ne.s32.totalorder %s241, %s242
      %p253 = scmp.eq.s32.totalorder %s23, 0
      %p254 = por %p252, %p253
      %p255 = scmp.ne.s32.totalorder %s241, %s242
      %p256 = scmp.eq.s32.totalorder %s24, 1
      %p257 = por %p255, %p256
      %p259 = scmp.ne.s32.totalorder %s242, %s258
      %p260 = scmp.eq.s32.totalorder %s24, 0
      %p261 = por %p259, %p260
      %p262 = scmp.le.s32.totalorder 1, %s18
      %p263 = scmp.lt.s32.totalorder %s18, 3
      %p264 = pnand %p262, %p263
      %p265 = pneg %p264
      // Predicated region
      $region9: #{tpu_custom_call.1} parent=5 // pred_check
        _
      $region10: #{tpu_custom_call.1} parent=5 // pred_check_branch
        %267 = sbr.rel (%p264) target = $region12
      $region11: #{tpu_custom_call.1} parent=5 // pred_region
        %s268 = ssub.s32 %s18, 1
        // Predicated region
        $region13: #{tpu_custom_call.1} parent=11 // pred_check
          %p269 = pneg %p79
        $region14: #{tpu_custom_call.1} parent=11 // pred_check_branch
          %271 = sbr.rel (%p269) target = $region16
        $region15: #{tpu_custom_call.1} parent=11 // pred_region
          _
        $region16: #{tpu_custom_call.1} parent=11 // pred_fallthru
          _
        // Predicated region
        $region17: #{tpu_custom_call.1} parent=11 // pred_check
          %p272 = pneg %p100
        $region18: #{tpu_custom_call.1} parent=11 // pred_check_branch
          %274 = sbr.rel (%p272) target = $region20
        $region19: #{tpu_custom_call.1} parent=11 // pred_region
          _
        $region20: #{tpu_custom_call.1} parent=11 // pred_fallthru
          _
        // Predicated region
        $region21: #{tpu_custom_call.1} parent=11 // pred_check
          %p275 = pneg %p121
        $region22: #{tpu_custom_call.1} parent=11 // pred_check_branch
          %277 = sbr.rel (%p275) target = $region24
        $region23: #{tpu_custom_call.1} parent=11 // pred_region
          _
        $region24: #{tpu_custom_call.1} parent=11 // pred_fallthru
          _
        // Predicated region
        $region25: #{tpu_custom_call.1} parent=11 // pred_check
          %p278 = pneg %p142
        $region26: #{tpu_custom_call.1} parent=11 // pred_check_branch
          %280 = sbr.rel (%p278) target = $region28
        $region27: #{tpu_custom_call.1} parent=11 // pred_region
          _
        $region28: #{tpu_custom_call.1} parent=11 // pred_fallthru
          _
        // Predicated region
        $region29: #{tpu_custom_call.1} parent=11 // pred_check
          %p281 = pneg %p163
        $region30: #{tpu_custom_call.1} parent=11 // pred_check_branch
          %283 = sbr.rel (%p281) target = $region32
        $region31: #{tpu_custom_call.1} parent=11 // pred_region
          _
        $region32: #{tpu_custom_call.1} parent=11 // pred_fallthru
          _
        // Predicated region
        $region33: #{tpu_custom_call.1} parent=11 // pred_check
          %p284 = pneg %p184
        $region34: #{tpu_custom_call.1} parent=11 // pred_check_branch
          %286 = sbr.rel (%p284) target = $region36
        $region35: #{tpu_custom_call.1} parent=11 // pred_region
          _
        $region36: #{tpu_custom_call.1} parent=11 // pred_fallthru
          _
        // Predicated region
        $region37: #{tpu_custom_call.1} parent=11 // pred_check
          %p287 = pneg %p205
        $region38: #{tpu_custom_call.1} parent=11 // pred_check_branch
          %289 = sbr.rel (%p287) target = $region40
        $region39: #{tpu_custom_call.1} parent=11 // pred_region
          _
        $region40: #{tpu_custom_call.1} parent=11 // pred_fallthru
          _
        // Predicated region
        $region41: #{tpu_custom_call.1} parent=11 // pred_check
          %p290 = pneg %p226
        $region42: #{tpu_custom_call.1} parent=11 // pred_check_branch
          %292 = sbr.rel (%p290) target = $region44
        $region43: #{tpu_custom_call.1} parent=11 // pred_region
          _
        $region44: #{tpu_custom_call.1} parent=11 // pred_fallthru
          _
      $region12: #{tpu_custom_call.1} parent=5 // pred_fallthru
        _
      %p293 = scmp.lt.s32.totalorder %s18, 2
      // Predicated region
      $region45: #{tpu_custom_call.1} parent=5 // pred_check
        %p294 = pneg %p293
      $region46: #{tpu_custom_call.1} parent=5 // pred_check_branch
        %296 = sbr.rel (%p294) target = $region48
      $region47: #{tpu_custom_call.1} parent=5 // pred_region
        // Predicated region
        $region49: #{tpu_custom_call.1} parent=47 // pred_check
          %p297 = pneg %p52
        $region50: #{tpu_custom_call.1} parent=47 // pred_check_branch
          %299 = sbr.rel (%p297) target = $region52
        $region51: #{tpu_custom_call.1} parent=47 // pred_region
          %p300 = scmp.lt.s32.totalorder %s25, 1
          %s301 = scalar_select %p300, %s25, 1
          %p302 = scmp.lt.s32.totalorder %s26, 0
          %s303 = scalar_select %p302, %s26, 0
          %s304 = sadd.s32 %s303, %s301
          %s305 = smul.addr %s304, 8
          %s306 = scalar_lea.vmem %s0, %s305
        $region52: #{tpu_custom_call.1} parent=47 // pred_fallthru
          _
      $region48: #{tpu_custom_call.1} parent=5 // pred_fallthru
        _
      %p307 = scmp.le.s32.totalorder 1, %s18
      %p308 = scmp.lt.s32.totalorder %s18, 3
      %p309 = pnand %p307, %p308
      %p310 = pneg %p309
      // Predicated region
      $region53: #{tpu_custom_call.1} parent=5 // pred_check
        _
      $region54: #{tpu_custom_call.1} parent=5 // pred_check_branch
        %312 = sbr.rel (%p309) target = $region56
      $region55: #{tpu_custom_call.1} parent=5 // pred_region
        %s313 = ssub.s32 %s18, 1
        %p314 = scmp.lt.s32.totalorder %s27, 1
        %s315 = scalar_select %p314, %s27, 1
        %p316 = scmp.lt.s32.totalorder %s28, 0
        %s317 = scalar_select %p316, %s28, 0
        %s318 = sadd.s32 %s317, %s315
        %s319 = smul.addr %s318, 8
        %s320 = scalar_lea.vmem %s0, %s319
        %p321 = pneg %p58
        %p322 = pneg %p55
        %p323 = pneg %p79
        %p324 = pneg %p76
        %p325 = pneg %p100
        %p326 = pneg %p97
        %p327 = pneg %p121
        %p328 = pneg %p118
        %p329 = pneg %p142
        %p330 = pneg %p139
        %p331 = pneg %p163
        %p332 = pneg %p160
        %p333 = pneg %p184
        %p334 = pneg %p181
        %p335 = pneg %p205
        %p336 = pneg %p202
        %p337 = pneg %p226
        %p338 = pneg %p223
        %p339 = pneg %p254
        %p340 = pneg %p251
        %s341 = sand.u32 %s241, 1
        %s342 = scalar_lea.sflag [#allocation4], %s341
        %s343 = sand.u32 %s241, 1
        %s344 = smul.addr %s343, 8
        %s345 = scalar_lea.vmem [#allocation3], %s344
        %p346 = scmp.lt.s32.totalorder %s27, 1
        %s347 = scalar_select %p346, %s27, 1
        %p348 = scmp.lt.s32.totalorder %s28, 0
        %s349 = scalar_select %p348, %s28, 0
        %s350 = sadd.s32 %s349, %s347
        %s351 = smul.addr %s350, 8
        %s352 = scalar_lea.vmem %s0, %s351
        %p354 = scmp.eq.s32.totalorder %s28, 0
        // Predicated region
        $region57: #{tpu_custom_call.1} parent=55 // pred_check
          %p355 = pneg %p354
        $region58: #{tpu_custom_call.1} parent=55 // pred_check_branch
          %357 = sbr.rel (%p355) target = $region60
        $region59: #{tpu_custom_call.1} parent=55 // pred_region
          %vm358 = vcmask 253952
          %359 = vst.msk [vmem:[#allocation2] sm:$0x1] %vm358, 0.0
        $region60: #{tpu_custom_call.1} parent=55 // pred_fallthru
          _
        %v360 = vld [vmem:[%s352] sm:$0xff]
        %v361 = vpack.c.bf16 %v360, %v360
        %v362 = vlaneseq
        %v363 = vshrl.u32 %v362, 7
        %v364 = vlaneseq
        %v365 = vand.u32 %v364, 127
        %vm366 = vcmp.gt.s32.totalorder %v363, %v365
        %v367 = vsel %vm366, 1, 0
        %v368 = vcvt.s32.f32 %v367
        %v369 = vpack.c.bf16 %v368, %v368
        %v370 = vld [vmem:[#allocation2] sm:$0x1]
        %v372 = vlaneseq
        %v373 = vshrl.u32 %v372, 7
        %v374 = vsub.s32 0, %v373
        %v375 = vrot.slane %v370, %v374
        %vm377 = vcmask 64512
        %v379 = vsel %vm377, %v369, 0
        %vm381 = vcmask 1043456
        %v383 = vsel %vm381, %v361, 0
        %385 = vmatprep.subr.bf16.mxu0 0
        %386 = vmatpush1.bf16.msra.mxu0 0
        %387 = vmatprep.subr.bf16.mxu0 0
        %388 = vmatpush1.bf16.msra.mxu0 0
        %389 = vmatprep.subr.bf16.mxu0 0
        %390 = vmatpush1.bf16.msra.mxu0 0
        %391 = vmatprep.subr.bf16.mxu0 0
        %392 = vmatpush1.bf16.msra.mxu0 0
        %393 = vmatprep.subr.bf16.mxu0 0
        %394 = vmatpush1.bf16.msra.mxu0 0
        %395 = vmatprep.subr.bf16.mxu0 0
        %396 = vmatpush1.bf16.msra.mxu0 0
        %397 = vmatprep.subr.bf16.mxu0 0
        %398 = vmatpush1.bf16.msra.mxu0 0
        %399 = vmatprep.subr.bf16.mxu0 0
        %400 = vmatpush1.bf16.msra.mxu0 %v383
        %401 = vmatprep.subr.bf16.mxu0 0
        %402 = vmatpush2.bf16.msra.mxu0 0
        %403 = vmatprep.subr.bf16.mxu0 0
        %404 = vmatpush2.bf16.msra.mxu0 0
        %405 = vmatprep.subr.bf16.mxu0 0
        %406 = vmatpush2.bf16.msra.mxu0 0
        %407 = vmatprep.subr.bf16.mxu0 0
        %408 = vmatpush2.bf16.msra.mxu0 0
        %409 = vmatprep.subr.bf16.mxu0 0
        %410 = vmatpush2.bf16.msra.mxu0 0
        %411 = vmatprep.subr.bf16.mxu0 0
        %412 = vmatpush2.bf16.msra.mxu0 0
        %413 = vmatprep.subr.bf16.mxu0 0
        %414 = vmatpush2.bf16.msra.mxu0 0
        %415 = vmatprep.subr.bf16.mxu0 0
        %416 = vmatpush2.bf16.msra.mxu0 0
        %417 = vmatprep.mubr.bf16.mxu0 0
        %418 = vmatmul.mubr.bf16.gmra.mxu0 %v379
        %v419 = vpop.f32.mrf.mxu0
        %v420 = vadd.f32 %v375, %v419
        %v421 = vpop.f32.mrf.mxu0
        %v422 = vpop.f32.mrf.mxu0
        %v423 = vpop.f32.mrf.mxu0
        %424 = vdwg.mxu0
        %vm425 = vcmask 261120
        %v426 = vsel %vm425, %v360, 0.0
        %v427 = vrot.slane %v426, 4
        %v428 = vadd.f32 %v426, %v427
        %v429 = vrot.slane %v428, 2
        %v430 = vadd.f32 %v428, %v429
        %v431 = vrot.slane %v430, 1
        %v432 = vadd.f32 %v430, %v431
        %v433 = vadd.f32 %v370, %v432
        %vm434 = vcmask 253952
        %435 = vst.msk [vmem:[#allocation2] sm:$0x1] %vm434, %v433
        %v436 = vpack.c.bf16 %v420, %v420
        %v437 = vld [vmem:[%s6] sm:$0xf]
        %v438 = vld [vmem:[%s6 + $0x4] sm:$0xf]
        %v439 = vld [vmem:[%s6 + $0x8] sm:$0xf]
        %v440 = vld [vmem:[%s6 + $0xc] sm:$0xf]
        %v445 = vunpack.c.l.b16 %v437
        %v446 = vunpack.c.l.b16 %v438
        %v447 = vunpack.c.l.b16 %v439
        %v448 = vunpack.c.l.b16 %v440
        %v449 = vpack.c.b16 %v446, %v445
        %v450 = vpack.c.b16 %v448, %v447
        %v454 = vsel %vm425, %v436, 0
        %456 = vmatprep.subr.bf16.mxu0 0
        %457 = vmatpush1.bf16.msra.mxu0 0
        %458 = vmatprep.subr.bf16.mxu0 0
        %459 = vmatpush1.bf16.msra.mxu0 0
        %460 = vmatprep.subr.bf16.mxu0 0
        %461 = vmatpush1.bf16.msra.mxu0 0
        %462 = vmatprep.subr.bf16.mxu0 0
        %463 = vmatpush1.bf16.msra.mxu0 0
        %464 = vmatprep.subr.bf16.mxu0 0
        %465 = vmatpush1.bf16.msra.mxu0 0
        %466 = vmatprep.subr.bf16.mxu0 0
        %467 = vmatpush1.bf16.msra.mxu0 0
        %468 = vmatprep.subr.bf16.mxu0 0
        %469 = vmatpush1.bf16.msra.mxu0 %v450
        %470 = vmatprep.subr.bf16.mxu0 0
        %471 = vmatpush1.bf16.msra.mxu0 %v449
        %472 = vmatprep.subr.bf16.mxu0 0
        %473 = vmatpush2.bf16.msra.mxu0 0
        %474 = vmatprep.subr.bf16.mxu0 0
        %475 = vmatpush2.bf16.msra.mxu0 0
        %476 = vmatprep.subr.bf16.mxu0 0
        %477 = vmatpush2.bf16.msra.mxu0 0
        %478 = vmatprep.subr.bf16.mxu0 0
        %479 = vmatpush2.bf16.msra.mxu0 0
        %480 = vmatprep.subr.bf16.mxu0 0
        %481 = vmatpush2.bf16.msra.mxu0 0
        %482 = vmatprep.subr.bf16.mxu0 0
        %483 = vmatpush2.bf16.msra.mxu0 0
        %484 = vmatprep.subr.bf16.mxu0 0
        %485 = vmatpush2.bf16.msra.mxu0 0
        %486 = vmatprep.subr.bf16.mxu0 0
        %487 = vmatpush2.bf16.msra.mxu0 0
        %488 = vmatprep.mubr.bf16.mxu0 0
        %489 = vmatmul.mubr.bf16.gmra.mxu0 %v454
        %v490 = vpop.f32.mrf.mxu0
        %v491 = vadd.f32 0.0, %v490
        %v492 = vpop.f32.mrf.mxu0
        %v493 = vpop.f32.mrf.mxu0
        %v494 = vpop.f32.mrf.mxu0
        %495 = vdwg.mxu0
        %v496 = vld [vmem:[%s1] sm:$0xf]
        %v497 = vld [vmem:[%s1 + $0x4] sm:$0xf]
        %v498 = vld [vmem:[%s1 + $0x8] sm:$0xf]
        %v499 = vld [vmem:[%s1 + $0xc] sm:$0xf]
        %v500 = vld [vmem:[%s2] sm:$0xf]
        %v501 = vld [vmem:[%s2 + $0x4] sm:$0xf]
        %v502 = vld [vmem:[%s2 + $0x8] sm:$0xf]
        %v503 = vld [vmem:[%s2 + $0xc] sm:$0xf]
        %v508 = vunpack.c.l.b16 %v500
        %v509 = vunpack.c.l.b16 %v501
        %v510 = vunpack.c.l.b16 %v502
        %v511 = vunpack.c.l.b16 %v503
        %v512 = vpack.c.b16 %v509, %v508
        %v513 = vpack.c.b16 %v511, %v510
        %v516 = vsel %vm425, %v361, 0
        %518 = vmatprep.subr.bf16.mxu0 0
        %519 = vmatpush1.bf16.msra.mxu0 0
        %520 = vmatprep.subr.bf16.mxu0 0
        %521 = vmatpush1.bf16.msra.mxu0 0
        %522 = vmatprep.subr.bf16.mxu0 0
        %523 = vmatpush1.bf16.msra.mxu0 0
        %524 = vmatprep.subr.bf16.mxu0 0
        %525 = vmatpush1.bf16.msra.mxu0 0
        %526 = vmatprep.subr.bf16.mxu0 0
        %527 = vmatpush1.bf16.msra.mxu0 0
        %528 = vmatprep.subr.bf16.mxu0 0
        %529 = vmatpush1.bf16.msra.mxu0 0
        %530 = vmatprep.subr.bf16.mxu0 0
        %531 = vmatpush1.bf16.msra.mxu0 %v513
        %532 = vmatprep.subr.bf16.mxu0 0
        %533 = vmatpush1.bf16.msra.mxu0 %v512
        %534 = vmatprep.subr.bf16.mxu0 0
        %535 = vmatpush2.bf16.msra.mxu0 0
        %536 = vmatprep.subr.bf16.mxu0 0
        %537 = vmatpush2.bf16.msra.mxu0 0
        %538 = vmatprep.subr.bf16.mxu0 0
        %539 = vmatpush2.bf16.msra.mxu0 0
        %540 = vmatprep.subr.bf16.mxu0 0
        %541 = vmatpush2.bf16.msra.mxu0 0
        %542 = vmatprep.subr.bf16.mxu0 0
        %543 = vmatpush2.bf16.msra.mxu0 0
        %544 = vmatprep.subr.bf16.mxu0 0
        %545 = vmatpush2.bf16.msra.mxu0 0
        %546 = vmatprep.subr.bf16.mxu0 0
        %547 = vmatpush2.bf16.msra.mxu0 0
        %548 = vmatprep.subr.bf16.mxu0 0
        %549 = vmatpush2.bf16.msra.mxu0 0
        %550 = vmatprep.mubr.bf16.mxu0 0
        %551 = vmatmul.mubr.bf16.gmra.mxu0 %v516
        %v552 = vpop.f32.mrf.mxu0
        %v553 = vadd.f32 0.0, %v552
        %v554 = vpop.f32.mrf.mxu0
        %v555 = vpop.f32.mrf.mxu0
        %v556 = vpop.f32.mrf.mxu0
        %557 = vdwg.mxu0
        %v562 = vunpack.c.l.b16 %v496
        %v563 = vunpack.c.l.b16 %v497
        %v564 = vunpack.c.l.b16 %v498
        %v565 = vunpack.c.l.b16 %v499
        %v566 = vpack.c.b16 %v563, %v562
        %v567 = vpack.c.b16 %v565, %v564
        %570 = vmatprep.subr.bf16.mxu0 0
        %571 = vmatpush1.bf16.msra.mxu0 0
        %572 = vmatprep.subr.bf16.mxu0 0
        %573 = vmatpush1.bf16.msra.mxu0 0
        %574 = vmatprep.subr.bf16.mxu0 0
        %575 = vmatpush1.bf16.msra.mxu0 0
        %576 = vmatprep.subr.bf16.mxu0 0
        %577 = vmatpush1.bf16.msra.mxu0 0
        %578 = vmatprep.subr.bf16.mxu0 0
        %579 = vmatpush1.bf16.msra.mxu0 0
        %580 = vmatprep.subr.bf16.mxu0 0
        %581 = vmatpush1.bf16.msra.mxu0 0
        %582 = vmatprep.subr.bf16.mxu0 0
        %583 = vmatpush1.bf16.msra.mxu0 %v567
        %584 = vmatprep.subr.bf16.mxu0 0
        %585 = vmatpush1.bf16.msra.mxu0 %v566
        %586 = vmatprep.subr.bf16.mxu0 0
        %587 = vmatpush2.bf16.msra.mxu0 0
        %588 = vmatprep.subr.bf16.mxu0 0
        %589 = vmatpush2.bf16.msra.mxu0 0
        %590 = vmatprep.subr.bf16.mxu0 0
        %591 = vmatpush2.bf16.msra.mxu0 0
        %592 = vmatprep.subr.bf16.mxu0 0
        %593 = vmatpush2.bf16.msra.mxu0 0
        %594 = vmatprep.subr.bf16.mxu0 0
        %595 = vmatpush2.bf16.msra.mxu0 0
        %596 = vmatprep.subr.bf16.mxu0 0
        %597 = vmatpush2.bf16.msra.mxu0 0
        %598 = vmatprep.subr.bf16.mxu0 0
        %599 = vmatpush2.bf16.msra.mxu0 0
        %600 = vmatprep.subr.bf16.mxu0 0
        %601 = vmatpush2.bf16.msra.mxu0 0
        %602 = vmatprep.mubr.bf16.mxu0 0
        %603 = vmatmul.mubr.bf16.gmra.mxu0 %v454
        %v604 = vpop.f32.mrf.mxu0
        %v605 = vadd.f32 %v553, %v604
        %v606 = vpop.f32.mrf.mxu0
        %v607 = vpop.f32.mrf.mxu0
        %v608 = vpop.f32.mrf.mxu0
        %609 = vdwg.mxu0
        %v610 = vld [vmem:[%s3] sm:$0x1]
        %v612 = vlaneseq
        %v613 = vshrl.u32 %v612, 7
        %v614 = vsub.s32 0, %v613
        %v615 = vrot.slane %v610, %v614
        %v617 = vadd.f32 %v605, %v615
        %vm618 = vcmp.ge.f32.partialorder %v617, 0.0
        %v619 = vmul.f32 %v617, 0.01
        %v620 = vsel %vm618, %v617, %v619
        %v621 = vpack.c.bf16 %v620, %v620
        %v622 = vld [vmem:[%s4] sm:$0xf]
        %v623 = vld [vmem:[%s4 + $0x4] sm:$0xf]
        %v624 = vld [vmem:[%s4 + $0x8] sm:$0xf]
        %v625 = vld [vmem:[%s4 + $0xc] sm:$0xf]
        %v626 = vld [vmem:[%s4 + $0x10] sm:$0xf]
        %v627 = vld [vmem:[%s4 + $0x14] sm:$0xf]
        %v628 = vld [vmem:[%s4 + $0x18] sm:$0xf]
        %v629 = vld [vmem:[%s4 + $0x1c] sm:$0xf]
        %v630 = vld [vmem:[%s4 + $0x20] sm:$0xf]
        %v631 = vld [vmem:[%s4 + $0x24] sm:$0xf]
        %v632 = vld [vmem:[%s4 + $0x28] sm:$0xf]
        %v633 = vld [vmem:[%s4 + $0x2c] sm:$0xf]
        %v634 = vld [vmem:[%s4 + $0x30] sm:$0xf]
        %v635 = vld [vmem:[%s4 + $0x34] sm:$0xf]
        %v636 = vld [vmem:[%s4 + $0x38] sm:$0xf]
        %v637 = vld [vmem:[%s4 + $0x3c] sm:$0xf]
        %v638 = vld [vmem:[%s5] sm:$0x1]
        %v640 = vlaneseq
        %v641 = vshrl.u32 %v640, 7
        %v642 = vsub.s32 0, %v641
        %v643 = vrot.slane %v638, %v642
        %v661 = vunpack.c.l.b16 %v622
        %v662 = vunpack.c.l.b16 %v623
        %v663 = vunpack.c.l.b16 %v624
        %v664 = vunpack.c.l.b16 %v625
        %v665 = vunpack.c.l.b16 %v626
        %v666 = vunpack.c.l.b16 %v627
        %v667 = vunpack.c.l.b16 %v628
        %v668 = vunpack.c.l.b16 %v629
        %v669 = vunpack.c.l.b16 %v630
        %v670 = vunpack.c.l.b16 %v631
        %v671 = vunpack.c.l.b16 %v632
        %v672 = vunpack.c.l.b16 %v633
        %v673 = vunpack.c.l.b16 %v634
        %v674 = vunpack.c.l.b16 %v635
        %v675 = vunpack.c.l.b16 %v636
        %v676 = vunpack.c.l.b16 %v637
        %v677 = vpack.c.b16 %v662, %v661
        %v678 = vpack.c.b16 %v664, %v663
        %v679 = vpack.c.b16 %v666, %v665
        %v680 = vpack.c.b16 %v668, %v667
        %v681 = vpack.c.b16 %v670, %v669
        %v682 = vpack.c.b16 %v672, %v671
        %v683 = vpack.c.b16 %v674, %v673
        %v684 = vpack.c.b16 %v676, %v675
        %693 = vmatprep.subr.bf16.mxu0 0
        %694 = vmatpush1.bf16.msra.mxu0 %v684
        %695 = vmatprep.subr.bf16.mxu0 0
        %696 = vmatpush1.bf16.msra.mxu0 %v683
        %697 = vmatprep.subr.bf16.mxu0 0
        %698 = vmatpush1.bf16.msra.mxu0 %v682
        %699 = vmatprep.subr.bf16.mxu0 0
        %700 = vmatpush1.bf16.msra.mxu0 %v681
        %701 = vmatprep.subr.bf16.mxu0 0
        %702 = vmatpush1.bf16.msra.mxu0 %v680
        %703 = vmatprep.subr.bf16.mxu0 0
        %704 = vmatpush1.bf16.msra.mxu0 %v679
        %705 = vmatprep.subr.bf16.mxu0 0
        %706 = vmatpush1.bf16.msra.mxu0 %v678
        %707 = vmatprep.subr.bf16.mxu0 0
        %708 = vmatpush1.bf16.msra.mxu0 %v677
        %709 = vmatprep.subr.bf16.mxu0 0
        %710 = vmatpush2.bf16.msra.mxu0 0
        %711 = vmatprep.subr.bf16.mxu0 0
        %712 = vmatpush2.bf16.msra.mxu0 0
        %713 = vmatprep.subr.bf16.mxu0 0
        %714 = vmatpush2.bf16.msra.mxu0 0
        %715 = vmatprep.subr.bf16.mxu0 0
        %716 = vmatpush2.bf16.msra.mxu0 0
        %717 = vmatprep.subr.bf16.mxu0 0
        %718 = vmatpush2.bf16.msra.mxu0 0
        %719 = vmatprep.subr.bf16.mxu0 0
        %720 = vmatpush2.bf16.msra.mxu0 0
        %721 = vmatprep.subr.bf16.mxu0 0
        %722 = vmatpush2.bf16.msra.mxu0 0
        %723 = vmatprep.subr.bf16.mxu0 0
        %724 = vmatpush2.bf16.msra.mxu0 0
        %725 = vmatprep.mubr.bf16.mxu0 0
        %726 = vmatmul.mubr.bf16.gmra.mxu0 %v621
        %v727 = vpop.f32.mrf.mxu0
        %v728 = vadd.f32 %v643, %v727
        %v729 = vpop.f32.mrf.mxu0
        %v730 = vpop.f32.mrf.mxu0
        %v731 = vpop.f32.mrf.mxu0
        %732 = vdwg.mxu0
        %v733 = vpack.c.bf16 %v728, %v728
        %v735 = vsel %vm425, %v733, 0
        %737 = vmatprep.subr.bf16.mxu0 0
        %738 = vmatpush1.bf16.msra.mxu0 0
        %739 = vmatprep.subr.bf16.mxu0 0
        %740 = vmatpush1.bf16.msra.mxu0 0
        %741 = vmatprep.subr.bf16.mxu0 0
        %742 = vmatpush1.bf16.msra.mxu0 0
        %743 = vmatprep.subr.bf16.mxu0 0
        %744 = vmatpush1.bf16.msra.mxu0 0
        %745 = vmatprep.subr.bf16.mxu0 0
        %746 = vmatpush1.bf16.msra.mxu0 0
        %747 = vmatprep.subr.bf16.mxu0 0
        %748 = vmatpush1.bf16.msra.mxu0 0
        %749 = vmatprep.subr.bf16.mxu0 0
        %750 = vmatpush1.bf16.msra.mxu0 %v450
        %751 = vmatprep.subr.bf16.mxu0 0
        %752 = vmatpush1.bf16.msra.mxu0 %v449
        %753 = vmatprep.subr.bf16.mxu0 0
        %754 = vmatpush2.bf16.msra.mxu0 0
        %755 = vmatprep.subr.bf16.mxu0 0
        %756 = vmatpush2.bf16.msra.mxu0 0
        %757 = vmatprep.subr.bf16.mxu0 0
        %758 = vmatpush2.bf16.msra.mxu0 0
        %759 = vmatprep.subr.bf16.mxu0 0
        %760 = vmatpush2.bf16.msra.mxu0 0
        %761 = vmatprep.subr.bf16.mxu0 0
        %762 = vmatpush2.bf16.msra.mxu0 0
        %763 = vmatprep.subr.bf16.mxu0 0
        %764 = vmatpush2.bf16.msra.mxu0 0
        %765 = vmatprep.subr.bf16.mxu0 0
        %766 = vmatpush2.bf16.msra.mxu0 0
        %767 = vmatprep.subr.bf16.mxu0 0
        %768 = vmatpush2.bf16.msra.mxu0 0
        %769 = vmatprep.mubr.bf16.mxu0 0
        %770 = vmatmul.mubr.bf16.gmra.mxu0 %v735
        %v771 = vpop.f32.mrf.mxu0
        %v772 = vadd.f32 0.0, %v771
        %v773 = vpop.f32.mrf.mxu0
        %v774 = vpop.f32.mrf.mxu0
        %v775 = vpop.f32.mrf.mxu0
        %776 = vdwg.mxu0
        %v777 = vmul.f32 %v772, %v772
        %779 = vrot.lane.b32.xlu0 %v777, 96
        %v780 = vpop.permute.xlu0 %779
        %v782 = vadd.f32 %v777, %v780
        %v783 = vadd.f32 %v782, 1e-12
        %v784 = vrsqrt.pop %v783
        %v785 = vmul.f32 %v772, %v784
        %787 = vrot.lane.b32.xlu0 %v784, 32
        %v788 = vpop.permute.xlu0 %787
        %v790 = vmul.f32 %v772, %v788
        %s791 = scalar_lea.vmem %s1, 16
        %v792 = vld [vmem:[%s791] sm:$0xf]
        %v793 = vld [vmem:[%s791 + $0x4] sm:$0xf]
        %v794 = vld [vmem:[%s791 + $0x8] sm:$0xf]
        %v795 = vld [vmem:[%s791 + $0xc] sm:$0xf]
        %s796 = scalar_lea.vmem %s2, 16
        %v797 = vld [vmem:[%s796] sm:$0xf]
        %v798 = vld [vmem:[%s796 + $0x4] sm:$0xf]
        %v799 = vld [vmem:[%s796 + $0x8] sm:$0xf]
        %v800 = vld [vmem:[%s796 + $0xc] sm:$0xf]
        %v805 = vunpack.c.l.b16 %v797
        %v806 = vunpack.c.l.b16 %v798
        %v807 = vunpack.c.l.b16 %v799
        %v808 = vunpack.c.l.b16 %v800
        %v809 = vpack.c.b16 %v806, %v805
        %v810 = vpack.c.b16 %v808, %v807
        %813 = vmatprep.subr.bf16.mxu0 0
        %814 = vmatpush1.bf16.msra.mxu0 0
        %815 = vmatprep.subr.bf16.mxu0 0
        %816 = vmatpush1.bf16.msra.mxu0 0
        %817 = vmatprep.subr.bf16.mxu0 0
        %818 = vmatpush1.bf16.msra.mxu0 0
        %819 = vmatprep.subr.bf16.mxu0 0
        %820 = vmatpush1.bf16.msra.mxu0 0
        %821 = vmatprep.subr.bf16.mxu0 0
        %822 = vmatpush1.bf16.msra.mxu0 0
        %823 = vmatprep.subr.bf16.mxu0 0
        %824 = vmatpush1.bf16.msra.mxu0 0
        %825 = vmatprep.subr.bf16.mxu0 0
        %826 = vmatpush1.bf16.msra.mxu0 %v810
        %827 = vmatprep.subr.bf16.mxu0 0
        %828 = vmatpush1.bf16.msra.mxu0 %v809
        %829 = vmatprep.subr.bf16.mxu0 0
        %830 = vmatpush2.bf16.msra.mxu0 0
        %831 = vmatprep.subr.bf16.mxu0 0
        %832 = vmatpush2.bf16.msra.mxu0 0
        %833 = vmatprep.subr.bf16.mxu0 0
        %834 = vmatpush2.bf16.msra.mxu0 0
        %835 = vmatprep.subr.bf16.mxu0 0
        %836 = vmatpush2.bf16.msra.mxu0 0
        %837 = vmatprep.subr.bf16.mxu0 0
        %838 = vmatpush2.bf16.msra.mxu0 0
        %839 = vmatprep.subr.bf16.mxu0 0
        %840 = vmatpush2.bf16.msra.mxu0 0
        %841 = vmatprep.subr.bf16.mxu0 0
        %842 = vmatpush2.bf16.msra.mxu0 0
        %843 = vmatprep.subr.bf16.mxu0 0
        %844 = vmatpush2.bf16.msra.mxu0 0
        %845 = vmatprep.mubr.bf16.mxu0 0
        %846 = vmatmul.mubr.bf16.gmra.mxu0 %v516
        %v847 = vpop.f32.mrf.mxu0
        %v848 = vadd.f32 0.0, %v847
        %v849 = vpop.f32.mrf.mxu0
        %v850 = vpop.f32.mrf.mxu0
        %v851 = vpop.f32.mrf.mxu0
        %852 = vdwg.mxu0
        %v857 = vunpack.c.l.b16 %v792
        %v858 = vunpack.c.l.b16 %v793
        %v859 = vunpack.c.l.b16 %v794
        %v860 = vunpack.c.l.b16 %v795
        %v861 = vpack.c.b16 %v858, %v857
        %v862 = vpack.c.b16 %v860, %v859
        %865 = vmatprep.subr.bf16.mxu0 0
        %866 = vmatpush1.bf16.msra.mxu0 0
        %867 = vmatprep.subr.bf16.mxu0 0
        %868 = vmatpush1.bf16.msra.mxu0 0
        %869 = vmatprep.subr.bf16.mxu0 0
        %870 = vmatpush1.bf16.msra.mxu0 0
        %871 = vmatprep.subr.bf16.mxu0 0
        %872 = vmatpush1.bf16.msra.mxu0 0
        %873 = vmatprep.subr.bf16.mxu0 0
        %874 = vmatpush1.bf16.msra.mxu0 0
        %875 = vmatprep.subr.bf16.mxu0 0
        %876 = vmatpush1.bf16.msra.mxu0 0
        %877 = vmatprep.subr.bf16.mxu0 0
        %878 = vmatpush1.bf16.msra.mxu0 %v862
        %879 = vmatprep.subr.bf16.mxu0 0
        %880 = vmatpush1.bf16.msra.mxu0 %v861
        %881 = vmatprep.subr.bf16.mxu0 0
        %882 = vmatpush2.bf16.msra.mxu0 0
        %883 = vmatprep.subr.bf16.mxu0 0
        %884 = vmatpush2.bf16.msra.mxu0 0
        %885 = vmatprep.subr.bf16.mxu0 0
        %886 = vmatpush2.bf16.msra.mxu0 0
        %887 = vmatprep.subr.bf16.mxu0 0
        %888 = vmatpush2.bf16.msra.mxu0 0
        %889 = vmatprep.subr.bf16.mxu0 0
        %890 = vmatpush2.bf16.msra.mxu0 0
        %891 = vmatprep.subr.bf16.mxu0 0
        %892 = vmatpush2.bf16.msra.mxu0 0
        %893 = vmatprep.subr.bf16.mxu0 0
        %894 = vmatpush2.bf16.msra.mxu0 0
        %895 = vmatprep.subr.bf16.mxu0 0
        %896 = vmatpush2.bf16.msra.mxu0 0
        %897 = vmatprep.mubr.bf16.mxu0 0
        %898 = vmatmul.mubr.bf16.gmra.mxu0 %v454
        %v899 = vpop.f32.mrf.mxu0
        %v900 = vadd.f32 %v848, %v899
        %v901 = vpop.f32.mrf.mxu0
        %v902 = vpop.f32.mrf.mxu0
        %v903 = vpop.f32.mrf.mxu0
        %904 = vdwg.mxu0
        %s905 = scalar_lea.vmem %s3, 1
        %v906 = vld [vmem:[%s905] sm:$0x1]
        %v908 = vlaneseq
        %v909 = vshrl.u32 %v908, 7
        %v910 = vsub.s32 0, %v909
        %v911 = vrot.slane %v906, %v910
        %v913 = vadd.f32 %v900, %v911
        %vm914 = vcmp.ge.f32.partialorder %v913, 0.0
        %v915 = vmul.f32 %v913, 0.01
        %v916 = vsel %vm914, %v913, %v915
        %v917 = vpack.c.bf16 %v916, %v916
        %s918 = scalar_lea.vmem %s4, 64
        %v919 = vld [vmem:[%s918] sm:$0xf]
        %v920 = vld [vmem:[%s918 + $0x4] sm:$0xf]
        %v921 = vld [vmem:[%s918 + $0x8] sm:$0xf]
        %v922 = vld [vmem:[%s918 + $0xc] sm:$0xf]
        %v923 = vld [vmem:[%s918 + $0x10] sm:$0xf]
        %v924 = vld [vmem:[%s918 + $0x14] sm:$0xf]
        %v925 = vld [vmem:[%s918 + $0x18] sm:$0xf]
        %v926 = vld [vmem:[%s918 + $0x1c] sm:$0xf]
        %v927 = vld [vmem:[%s918 + $0x20] sm:$0xf]
        %v928 = vld [vmem:[%s918 + $0x24] sm:$0xf]
        %v929 = vld [vmem:[%s918 + $0x28] sm:$0xf]
        %v930 = vld [vmem:[%s918 + $0x2c] sm:$0xf]
        %v931 = vld [vmem:[%s918 + $0x30] sm:$0xf]
        %v932 = vld [vmem:[%s918 + $0x34] sm:$0xf]
        %v933 = vld [vmem:[%s918 + $0x38] sm:$0xf]
        %v934 = vld [vmem:[%s918 + $0x3c] sm:$0xf]
        %s935 = scalar_lea.vmem %s5, 1
        %v936 = vld [vmem:[%s935] sm:$0x1]
        %v938 = vlaneseq
        %v939 = vshrl.u32 %v938, 7
        %v940 = vsub.s32 0, %v939
        %v941 = vrot.slane %v936, %v940
        %v959 = vunpack.c.l.b16 %v919
        %v960 = vunpack.c.l.b16 %v920
        %v961 = vunpack.c.l.b16 %v921
        %v962 = vunpack.c.l.b16 %v922
        %v963 = vunpack.c.l.b16 %v923
        %v964 = vunpack.c.l.b16 %v924
        %v965 = vunpack.c.l.b16 %v925
        %v966 = vunpack.c.l.b16 %v926
        %v967 = vunpack.c.l.b16 %v927
        %v968 = vunpack.c.l.b16 %v928
        %v969 = vunpack.c.l.b16 %v929
        %v970 = vunpack.c.l.b16 %v930
        %v971 = vunpack.c.l.b16 %v931
        %v972 = vunpack.c.l.b16 %v932
        %v973 = vunpack.c.l.b16 %v933
        %v974 = vunpack.c.l.b16 %v934
        %v975 = vpack.c.b16 %v960, %v959
        %v976 = vpack.c.b16 %v962, %v961
        %v977 = vpack.c.b16 %v964, %v963
        %v978 = vpack.c.b16 %v966, %v965
        %v979 = vpack.c.b16 %v968, %v967
        %v980 = vpack.c.b16 %v970, %v969
        %v981 = vpack.c.b16 %v972, %v971
        %v982 = vpack.c.b16 %v974, %v973
        %991 = vmatprep.subr.bf16.mxu0 0
        %992 = vmatpush1.bf16.msra.mxu0 %v982
        %993 = vmatprep.subr.bf16.mxu0 0
        %994 = vmatpush1.bf16.msra.mxu0 %v981
        %995 = vmatprep.subr.bf16.mxu0 0
        %996 = vmatpush1.bf16.msra.mxu0 %v980
        %997 = vmatprep.subr.bf16.mxu0 0
        %998 = vmatpush1.bf16.msra.mxu0 %v979
        %999 = vmatprep.subr.bf16.mxu0 0
        %1000 = vmatpush1.bf16.msra.mxu0 %v978
        %1001 = vmatprep.subr.bf16.mxu0 0
        %1002 = vmatpush1.bf16.msra.mxu0 %v977
        %1003 = vmatprep.subr.bf16.mxu0 0
        %1004 = vmatpush1.bf16.msra.mxu0 %v976
        %1005 = vmatprep.subr.bf16.mxu0 0
        %1006 = vmatpush1.bf16.msra.mxu0 %v975
        %1007 = vmatprep.subr.bf16.mxu0 0
        %1008 = vmatpush2.bf16.msra.mxu0 0
        %1009 = vmatprep.subr.bf16.mxu0 0
        %1010 = vmatpush2.bf16.msra.mxu0 0
        %1011 = vmatprep.subr.bf16.mxu0 0
        %1012 = vmatpush2.bf16.msra.mxu0 0
        %1013 = vmatprep.subr.bf16.mxu0 0
        %1014 = vmatpush2.bf16.msra.mxu0 0
        %1015 = vmatprep.subr.bf16.mxu0 0
        %1016 = vmatpush2.bf16.msra.mxu0 0
        %1017 = vmatprep.subr.bf16.mxu0 0
        %1018 = vmatpush2.bf16.msra.mxu0 0
        %1019 = vmatprep.subr.bf16.mxu0 0
        %1020 = vmatpush2.bf16.msra.mxu0 0
        %1021 = vmatprep.subr.bf16.mxu0 0
        %1022 = vmatpush2.bf16.msra.mxu0 0
        %1023 = vmatprep.mubr.bf16.mxu0 0
        %1024 = vmatmul.mubr.bf16.gmra.mxu0 %v917
        %v1025 = vpop.f32.mrf.mxu0
        %v1026 = vadd.f32 %v941, %v1025
        %v1027 = vpop.f32.mrf.mxu0
        %v1028 = vpop.f32.mrf.mxu0
        %v1029 = vpop.f32.mrf.mxu0
        %1030 = vdwg.mxu0
        %v1031 = vpack.c.bf16 %v1026, %v1026
        %v1033 = vsel %vm425, %v1031, 0
        %1035 = vmatprep.subr.bf16.mxu0 0
        %1036 = vmatpush1.bf16.msra.mxu0 0
        %1037 = vmatprep.subr.bf16.mxu0 0
        %1038 = vmatpush1.bf16.msra.mxu0 0
        %1039 = vmatprep.subr.bf16.mxu0 0
        %1040 = vmatpush1.bf16.msra.mxu0 0
        %1041 = vmatprep.subr.bf16.mxu0 0
        %1042 = vmatpush1.bf16.msra.mxu0 0
        %1043 = vmatprep.subr.bf16.mxu0 0
        %1044 = vmatpush1.bf16.msra.mxu0 0
        %1045 = vmatprep.subr.bf16.mxu0 0
        %1046 = vmatpush1.bf16.msra.mxu0 0
        %1047 = vmatprep.subr.bf16.mxu0 0
        %1048 = vmatpush1.bf16.msra.mxu0 %v450
        %1049 = vmatprep.subr.bf16.mxu0 0
        %1050 = vmatpush1.bf16.msra.mxu0 %v449
        %1051 = vmatprep.subr.bf16.mxu0 0
        %1052 = vmatpush2.bf16.msra.mxu0 0
        %1053 = vmatprep.subr.bf16.mxu0 0
        %1054 = vmatpush2.bf16.msra.mxu0 0
        %1055 = vmatprep.subr.bf16.mxu0 0
        %1056 = vmatpush2.bf16.msra.mxu0 0
        %1057 = vmatprep.subr.bf16.mxu0 0
        %1058 = vmatpush2.bf16.msra.mxu0 0
        %1059 = vmatprep.subr.bf16.mxu0 0
        %1060 = vmatpush2.bf16.msra.mxu0 0
        %1061 = vmatprep.subr.bf16.mxu0 0
        %1062 = vmatpush2.bf16.msra.mxu0 0
        %1063 = vmatprep.subr.bf16.mxu0 0
        %1064 = vmatpush2.bf16.msra.mxu0 0
        %1065 = vmatprep.subr.bf16.mxu0 0
        %1066 = vmatpush2.bf16.msra.mxu0 0
        %1067 = vmatprep.mubr.bf16.mxu0 0
        %1068 = vmatmul.mubr.bf16.gmra.mxu0 %v1033
        %v1069 = vpop.f32.mrf.mxu0
        %v1070 = vadd.f32 0.0, %v1069
        %v1071 = vpop.f32.mrf.mxu0
        %v1072 = vpop.f32.mrf.mxu0
        %v1073 = vpop.f32.mrf.mxu0
        %1074 = vdwg.mxu0
        %v1075 = vmul.f32 %v1070, %v1070
        %1077 = vrot.lane.b32.xlu0 %v1075, 96
        %v1078 = vpop.permute.xlu0 %1077
        %v1080 = vadd.f32 %v1075, %v1078
        %v1081 = vadd.f32 %v1080, 1e-12
        %v1082 = vrsqrt.pop %v1081
        %v1083 = vmul.f32 %v1070, %v1082
        %1085 = vrot.lane.b32.xlu0 %v1082, 32
        %v1086 = vpop.permute.xlu0 %1085
        %v1088 = vmul.f32 %v1070, %v1086
        %s1089 = scalar_lea.vmem %s1, 32
        %v1090 = vld [vmem:[%s1089] sm:$0xf]
        %v1091 = vld [vmem:[%s1089 + $0x4] sm:$0xf]
        %v1092 = vld [vmem:[%s1089 + $0x8] sm:$0xf]
        %v1093 = vld [vmem:[%s1089 + $0xc] sm:$0xf]
        %s1094 = scalar_lea.vmem %s2, 32
        %v1095 = vld [vmem:[%s1094] sm:$0xf]
        %v1096 = vld [vmem:[%s1094 + $0x4] sm:$0xf]
        %v1097 = vld [vmem:[%s1094 + $0x8] sm:$0xf]
        %v1098 = vld [vmem:[%s1094 + $0xc] sm:$0xf]
        %v1103 = vunpack.c.l.b16 %v1095
        %v1104 = vunpack.c.l.b16 %v1096
        %v1105 = vunpack.c.l.b16 %v1097
        %v1106 = vunpack.c.l.b16 %v1098
        %v1107 = vpack.c.b16 %v1104, %v1103
        %v1108 = vpack.c.b16 %v1106, %v1105
        %1111 = vmatprep.subr.bf16.mxu0 0
        %1112 = vmatpush1.bf16.msra.mxu0 0
        %1113 = vmatprep.subr.bf16.mxu0 0
        %1114 = vmatpush1.bf16.msra.mxu0 0
        %1115 = vmatprep.subr.bf16.mxu0 0
        %1116 = vmatpush1.bf16.msra.mxu0 0
        %1117 = vmatprep.subr.bf16.mxu0 0
        %1118 = vmatpush1.bf16.msra.mxu0 0
        %1119 = vmatprep.subr.bf16.mxu0 0
        %1120 = vmatpush1.bf16.msra.mxu0 0
        %1121 = vmatprep.subr.bf16.mxu0 0
        %1122 = vmatpush1.bf16.msra.mxu0 0
        %1123 = vmatprep.subr.bf16.mxu0 0
        %1124 = vmatpush1.bf16.msra.mxu0 %v1108
        %1125 = vmatprep.subr.bf16.mxu0 0
        %1126 = vmatpush1.bf16.msra.mxu0 %v1107
        %1127 = vmatprep.subr.bf16.mxu0 0
        %1128 = vmatpush2.bf16.msra.mxu0 0
        %1129 = vmatprep.subr.bf16.mxu0 0
        %1130 = vmatpush2.bf16.msra.mxu0 0
        %1131 = vmatprep.subr.bf16.mxu0 0
        %1132 = vmatpush2.bf16.msra.mxu0 0
        %1133 = vmatprep.subr.bf16.mxu0 0
        %1134 = vmatpush2.bf16.msra.mxu0 0
        %1135 = vmatprep.subr.bf16.mxu0 0
        %1136 = vmatpush2.bf16.msra.mxu0 0
        %1137 = vmatprep.subr.bf16.mxu0 0
        %1138 = vmatpush2.bf16.msra.mxu0 0
        %1139 = vmatprep.subr.bf16.mxu0 0
        %1140 = vmatpush2.bf16.msra.mxu0 0
        %1141 = vmatprep.subr.bf16.mxu0 0
        %1142 = vmatpush2.bf16.msra.mxu0 0
        %1143 = vmatprep.mubr.bf16.mxu0 0
        %1144 = vmatmul.mubr.bf16.gmra.mxu0 %v516
        %v1145 = vpop.f32.mrf.mxu0
        %v1146 = vadd.f32 0.0, %v1145
        %v1147 = vpop.f32.mrf.mxu0
        %v1148 = vpop.f32.mrf.mxu0
        %v1149 = vpop.f32.mrf.mxu0
        %1150 = vdwg.mxu0
        %v1155 = vunpack.c.l.b16 %v1090
        %v1156 = vunpack.c.l.b16 %v1091
        %v1157 = vunpack.c.l.b16 %v1092
        %v1158 = vunpack.c.l.b16 %v1093
        %v1159 = vpack.c.b16 %v1156, %v1155
        %v1160 = vpack.c.b16 %v1158, %v1157
        %1163 = vmatprep.subr.bf16.mxu0 0
        %1164 = vmatpush1.bf16.msra.mxu0 0
        %1165 = vmatprep.subr.bf16.mxu0 0
        %1166 = vmatpush1.bf16.msra.mxu0 0
        %1167 = vmatprep.subr.bf16.mxu0 0
        %1168 = vmatpush1.bf16.msra.mxu0 0
        %1169 = vmatprep.subr.bf16.mxu0 0
        %1170 = vmatpush1.bf16.msra.mxu0 0
        %1171 = vmatprep.subr.bf16.mxu0 0
        %1172 = vmatpush1.bf16.msra.mxu0 0
        %1173 = vmatprep.subr.bf16.mxu0 0
        %1174 = vmatpush1.bf16.msra.mxu0 0
        %1175 = vmatprep.subr.bf16.mxu0 0
        %1176 = vmatpush1.bf16.msra.mxu0 %v1160
        %1177 = vmatprep.subr.bf16.mxu0 0
        %1178 = vmatpush1.bf16.msra.mxu0 %v1159
        %1179 = vmatprep.subr.bf16.mxu0 0
        %1180 = vmatpush2.bf16.msra.mxu0 0
        %1181 = vmatprep.subr.bf16.mxu0 0
        %1182 = vmatpush2.bf16.msra.mxu0 0
        %1183 = vmatprep.subr.bf16.mxu0 0
        %1184 = vmatpush2.bf16.msra.mxu0 0
        %1185 = vmatprep.subr.bf16.mxu0 0
        %1186 = vmatpush2.bf16.msra.mxu0 0
        %1187 = vmatprep.subr.bf16.mxu0 0
        %1188 = vmatpush2.bf16.msra.mxu0 0
        %1189 = vmatprep.subr.bf16.mxu0 0
        %1190 = vmatpush2.bf16.msra.mxu0 0
        %1191 = vmatprep.subr.bf16.mxu0 0
        %1192 = vmatpush2.bf16.msra.mxu0 0
        %1193 = vmatprep.subr.bf16.mxu0 0
        %1194 = vmatpush2.bf16.msra.mxu0 0
        %1195 = vmatprep.mubr.bf16.mxu0 0
        %1196 = vmatmul.mubr.bf16.gmra.mxu0 %v454
        %v1197 = vpop.f32.mrf.mxu0
        %v1198 = vadd.f32 %v1146, %v1197
        %v1199 = vpop.f32.mrf.mxu0
        %v1200 = vpop.f32.mrf.mxu0
        %v1201 = vpop.f32.mrf.mxu0
        %1202 = vdwg.mxu0
        %s1203 = scalar_lea.vmem %s3, 2
        %v1204 = vld [vmem:[%s1203] sm:$0x1]
        %v1206 = vlaneseq
        %v1207 = vshrl.u32 %v1206, 7
        %v1208 = vsub.s32 0, %v1207
        %v1209 = vrot.slane %v1204, %v1208
        %v1211 = vadd.f32 %v1198, %v1209
        %vm1212 = vcmp.ge.f32.partialorder %v1211, 0.0
        %v1213 = vmul.f32 %v1211, 0.01
        %v1214 = vsel %vm1212, %v1211, %v1213
        %v1215 = vpack.c.bf16 %v1214, %v1214
        %s1216 = scalar_lea.vmem %s4, 128
        %v1217 = vld [vmem:[%s1216] sm:$0xf]
        %v1218 = vld [vmem:[%s1216 + $0x4] sm:$0xf]
        %v1219 = vld [vmem:[%s1216 + $0x8] sm:$0xf]
        %v1220 = vld [vmem:[%s1216 + $0xc] sm:$0xf]
        %v1221 = vld [vmem:[%s1216 + $0x10] sm:$0xf]
        %v1222 = vld [vmem:[%s1216 + $0x14] sm:$0xf]
        %v1223 = vld [vmem:[%s1216 + $0x18] sm:$0xf]
        %v1224 = vld [vmem:[%s1216 + $0x1c] sm:$0xf]
        %v1225 = vld [vmem:[%s1216 + $0x20] sm:$0xf]
        %v1226 = vld [vmem:[%s1216 + $0x24] sm:$0xf]
        %v1227 = vld [vmem:[%s1216 + $0x28] sm:$0xf]
        %v1228 = vld [vmem:[%s1216 + $0x2c] sm:$0xf]
        %v1229 = vld [vmem:[%s1216 + $0x30] sm:$0xf]
        %v1230 = vld [vmem:[%s1216 + $0x34] sm:$0xf]
        %v1231 = vld [vmem:[%s1216 + $0x38] sm:$0xf]
        %v1232 = vld [vmem:[%s1216 + $0x3c] sm:$0xf]
        %s1233 = scalar_lea.vmem %s5, 2
        %v1234 = vld [vmem:[%s1233] sm:$0x1]
        %v1236 = vlaneseq
        %v1237 = vshrl.u32 %v1236, 7
        %v1238 = vsub.s32 0, %v1237
        %v1239 = vrot.slane %v1234, %v1238
        %v1257 = vunpack.c.l.b16 %v1217
        %v1258 = vunpack.c.l.b16 %v1218
        %v1259 = vunpack.c.l.b16 %v1219
        %v1260 = vunpack.c.l.b16 %v1220
        %v1261 = vunpack.c.l.b16 %v1221
        %v1262 = vunpack.c.l.b16 %v1222
        %v1263 = vunpack.c.l.b16 %v1223
        %v1264 = vunpack.c.l.b16 %v1224
        %v1265 = vunpack.c.l.b16 %v1225
        %v1266 = vunpack.c.l.b16 %v1226
        %v1267 = vunpack.c.l.b16 %v1227
        %v1268 = vunpack.c.l.b16 %v1228
        %v1269 = vunpack.c.l.b16 %v1229
        %v1270 = vunpack.c.l.b16 %v1230
        %v1271 = vunpack.c.l.b16 %v1231
        %v1272 = vunpack.c.l.b16 %v1232
        %v1273 = vpack.c.b16 %v1258, %v1257
        %v1274 = vpack.c.b16 %v1260, %v1259
        %v1275 = vpack.c.b16 %v1262, %v1261
        %v1276 = vpack.c.b16 %v1264, %v1263
        %v1277 = vpack.c.b16 %v1266, %v1265
        %v1278 = vpack.c.b16 %v1268, %v1267
        %v1279 = vpack.c.b16 %v1270, %v1269
        %v1280 = vpack.c.b16 %v1272, %v1271
        %1289 = vmatprep.subr.bf16.mxu0 0
        %1290 = vmatpush1.bf16.msra.mxu0 %v1280
        %1291 = vmatprep.subr.bf16.mxu0 0
        %1292 = vmatpush1.bf16.msra.mxu0 %v1279
        %1293 = vmatprep.subr.bf16.mxu0 0
        %1294 = vmatpush1.bf16.msra.mxu0 %v1278
        %1295 = vmatprep.subr.bf16.mxu0 0
        %1296 = vmatpush1.bf16.msra.mxu0 %v1277
        %1297 = vmatprep.subr.bf16.mxu0 0
        %1298 = vmatpush1.bf16.msra.mxu0 %v1276
        %1299 = vmatprep.subr.bf16.mxu0 0
        %1300 = vmatpush1.bf16.msra.mxu0 %v1275
        %1301 = vmatprep.subr.bf16.mxu0 0
        %1302 = vmatpush1.bf16.msra.mxu0 %v1274
        %1303 = vmatprep.subr.bf16.mxu0 0
        %1304 = vmatpush1.bf16.msra.mxu0 %v1273
        %1305 = vmatprep.subr.bf16.mxu0 0
        %1306 = vmatpush2.bf16.msra.mxu0 0
        %1307 = vmatprep.subr.bf16.mxu0 0
        %1308 = vmatpush2.bf16.msra.mxu0 0
        %1309 = vmatprep.subr.bf16.mxu0 0
        %1310 = vmatpush2.bf16.msra.mxu0 0
        %1311 = vmatprep.subr.bf16.mxu0 0
        %1312 = vmatpush2.bf16.msra.mxu0 0
        %1313 = vmatprep.subr.bf16.mxu0 0
        %1314 = vmatpush2.bf16.msra.mxu0 0
        %1315 = vmatprep.subr.bf16.mxu0 0
        %1316 = vmatpush2.bf16.msra.mxu0 0
        %1317 = vmatprep.subr.bf16.mxu0 0
        %1318 = vmatpush2.bf16.msra.mxu0 0
        %1319 = vmatprep.subr.bf16.mxu0 0
        %1320 = vmatpush2.bf16.msra.mxu0 0
        %1321 = vmatprep.mubr.bf16.mxu0 0
        %1322 = vmatmul.mubr.bf16.gmra.mxu0 %v1215
        %v1323 = vpop.f32.mrf.mxu0
        %v1324 = vadd.f32 %v1239, %v1323
        %v1325 = vpop.f32.mrf.mxu0
        %v1326 = vpop.f32.mrf.mxu0
        %v1327 = vpop.f32.mrf.mxu0
        %1328 = vdwg.mxu0
        %v1329 = vpack.c.bf16 %v1324, %v1324
        %v1331 = vsel %vm425, %v1329, 0
        %1333 = vmatprep.subr.bf16.mxu0 0
        %1334 = vmatpush1.bf16.msra.mxu0 0
        %1335 = vmatprep.subr.bf16.mxu0 0
        %1336 = vmatpush1.bf16.msra.mxu0 0
        %1337 = vmatprep.subr.bf16.mxu0 0
        %1338 = vmatpush1.bf16.msra.mxu0 0
        %1339 = vmatprep.subr.bf16.mxu0 0
        %1340 = vmatpush1.bf16.msra.mxu0 0
        %1341 = vmatprep.subr.bf16.mxu0 0
        %1342 = vmatpush1.bf16.msra.mxu0 0
        %1343 = vmatprep.subr.bf16.mxu0 0
        %1344 = vmatpush1.bf16.msra.mxu0 0
        %1345 = vmatprep.subr.bf16.mxu0 0
        %1346 = vmatpush1.bf16.msra.mxu0 %v450
        %1347 = vmatprep.subr.bf16.mxu0 0
        %1348 = vmatpush1.bf16.msra.mxu0 %v449
        %1349 = vmatprep.subr.bf16.mxu0 0
        %1350 = vmatpush2.bf16.msra.mxu0 0
        %1351 = vmatprep.subr.bf16.mxu0 0
        %1352 = vmatpush2.bf16.msra.mxu0 0
        %1353 = vmatprep.subr.bf16.mxu0 0
        %1354 = vmatpush2.bf16.msra.mxu0 0
        %1355 = vmatprep.subr.bf16.mxu0 0
        %1356 = vmatpush2.bf16.msra.mxu0 0
        %1357 = vmatprep.subr.bf16.mxu0 0
        %1358 = vmatpush2.bf16.msra.mxu0 0
        %1359 = vmatprep.subr.bf16.mxu0 0
        %1360 = vmatpush2.bf16.msra.mxu0 0
        %1361 = vmatprep.subr.bf16.mxu0 0
        %1362 = vmatpush2.bf16.msra.mxu0 0
        %1363 = vmatprep.subr.bf16.mxu0 0
        %1364 = vmatpush2.bf16.msra.mxu0 0
        %1365 = vmatprep.mubr.bf16.mxu0 0
        %1366 = vmatmul.mubr.bf16.gmra.mxu0 %v1331
        %v1367 = vpop.f32.mrf.mxu0
        %v1368 = vadd.f32 0.0, %v1367
        %v1369 = vpop.f32.mrf.mxu0
        %v1370 = vpop.f32.mrf.mxu0
        %v1371 = vpop.f32.mrf.mxu0
        %1372 = vdwg.mxu0
        %v1373 = vmul.f32 %v1368, %v1368
        %1375 = vrot.lane.b32.xlu0 %v1373, 96
        %v1376 = vpop.permute.xlu0 %1375
        %v1378 = vadd.f32 %v1373, %v1376
        %v1379 = vadd.f32 %v1378, 1e-12
        %v1380 = vrsqrt.pop %v1379
        %v1381 = vmul.f32 %v1368, %v1380
        %1383 = vrot.lane.b32.xlu0 %v1380, 32
        %v1384 = vpop.permute.xlu0 %1383
        %v1386 = vmul.f32 %v1368, %v1384
        %s1387 = scalar_lea.vmem %s1, 48
        %v1388 = vld [vmem:[%s1387] sm:$0xf]
        %v1389 = vld [vmem:[%s1387 + $0x4] sm:$0xf]
        %v1390 = vld [vmem:[%s1387 + $0x8] sm:$0xf]
        %v1391 = vld [vmem:[%s1387 + $0xc] sm:$0xf]
        %s1392 = scalar_lea.vmem %s2, 48
        %v1393 = vld [vmem:[%s1392] sm:$0xf]
        %v1394 = vld [vmem:[%s1392 + $0x4] sm:$0xf]
        %v1395 = vld [vmem:[%s1392 + $0x8] sm:$0xf]
        %v1396 = vld [vmem:[%s1392 + $0xc] sm:$0xf]
        %v1401 = vunpack.c.l.b16 %v1393
        %v1402 = vunpack.c.l.b16 %v1394
        %v1403 = vunpack.c.l.b16 %v1395
        %v1404 = vunpack.c.l.b16 %v1396
        %v1405 = vpack.c.b16 %v1402, %v1401
        %v1406 = vpack.c.b16 %v1404, %v1403
        %1409 = vmatprep.subr.bf16.mxu0 0
        %1410 = vmatpush1.bf16.msra.mxu0 0
        %1411 = vmatprep.subr.bf16.mxu0 0
        %1412 = vmatpush1.bf16.msra.mxu0 0
        %1413 = vmatprep.subr.bf16.mxu0 0
        %1414 = vmatpush1.bf16.msra.mxu0 0
        %1415 = vmatprep.subr.bf16.mxu0 0
        %1416 = vmatpush1.bf16.msra.mxu0 0
        %1417 = vmatprep.subr.bf16.mxu0 0
        %1418 = vmatpush1.bf16.msra.mxu0 0
        %1419 = vmatprep.subr.bf16.mxu0 0
        %1420 = vmatpush1.bf16.msra.mxu0 0
        %1421 = vmatprep.subr.bf16.mxu0 0
        %1422 = vmatpush1.bf16.msra.mxu0 %v1406
        %1423 = vmatprep.subr.bf16.mxu0 0
        %1424 = vmatpush1.bf16.msra.mxu0 %v1405
        %1425 = vmatprep.subr.bf16.mxu0 0
        %1426 = vmatpush2.bf16.msra.mxu0 0
        %1427 = vmatprep.subr.bf16.mxu0 0
        %1428 = vmatpush2.bf16.msra.mxu0 0
        %1429 = vmatprep.subr.bf16.mxu0 0
        %1430 = vmatpush2.bf16.msra.mxu0 0
        %1431 = vmatprep.subr.bf16.mxu0 0
        %1432 = vmatpush2.bf16.msra.mxu0 0
        %1433 = vmatprep.subr.bf16.mxu0 0
        %1434 = vmatpush2.bf16.msra.mxu0 0
        %1435 = vmatprep.subr.bf16.mxu0 0
        %1436 = vmatpush2.bf16.msra.mxu0 0
        %1437 = vmatprep.subr.bf16.mxu0 0
        %1438 = vmatpush2.bf16.msra.mxu0 0
        %1439 = vmatprep.subr.bf16.mxu0 0
        %1440 = vmatpush2.bf16.msra.mxu0 0
        %1441 = vmatprep.mubr.bf16.mxu0 0
        %1442 = vmatmul.mubr.bf16.gmra.mxu0 %v516
        %v1443 = vpop.f32.mrf.mxu0
        %v1444 = vadd.f32 0.0, %v1443
        %v1445 = vpop.f32.mrf.mxu0
        %v1446 = vpop.f32.mrf.mxu0
        %v1447 = vpop.f32.mrf.mxu0
        %1448 = vdwg.mxu0
        %v1453 = vunpack.c.l.b16 %v1388
        %v1454 = vunpack.c.l.b16 %v1389
        %v1455 = vunpack.c.l.b16 %v1390
        %v1456 = vunpack.c.l.b16 %v1391
        %v1457 = vpack.c.b16 %v1454, %v1453
        %v1458 = vpack.c.b16 %v1456, %v1455
        %1461 = vmatprep.subr.bf16.mxu0 0
        %1462 = vmatpush1.bf16.msra.mxu0 0
        %1463 = vmatprep.subr.bf16.mxu0 0
        %1464 = vmatpush1.bf16.msra.mxu0 0
        %1465 = vmatprep.subr.bf16.mxu0 0
        %1466 = vmatpush1.bf16.msra.mxu0 0
        %1467 = vmatprep.subr.bf16.mxu0 0
        %1468 = vmatpush1.bf16.msra.mxu0 0
        %1469 = vmatprep.subr.bf16.mxu0 0
        %1470 = vmatpush1.bf16.msra.mxu0 0
        %1471 = vmatprep.subr.bf16.mxu0 0
        %1472 = vmatpush1.bf16.msra.mxu0 0
        %1473 = vmatprep.subr.bf16.mxu0 0
        %1474 = vmatpush1.bf16.msra.mxu0 %v1458
        %1475 = vmatprep.subr.bf16.mxu0 0
        %1476 = vmatpush1.bf16.msra.mxu0 %v1457
        %1477 = vmatprep.subr.bf16.mxu0 0
        %1478 = vmatpush2.bf16.msra.mxu0 0
        %1479 = vmatprep.subr.bf16.mxu0 0
        %1480 = vmatpush2.bf16.msra.mxu0 0
        %1481 = vmatprep.subr.bf16.mxu0 0
        %1482 = vmatpush2.bf16.msra.mxu0 0
        %1483 = vmatprep.subr.bf16.mxu0 0
        %1484 = vmatpush2.bf16.msra.mxu0 0
        %1485 = vmatprep.subr.bf16.mxu0 0
        %1486 = vmatpush2.bf16.msra.mxu0 0
        %1487 = vmatprep.subr.bf16.mxu0 0
        %1488 = vmatpush2.bf16.msra.mxu0 0
        %1489 = vmatprep.subr.bf16.mxu0 0
        %1490 = vmatpush2.bf16.msra.mxu0 0
        %1491 = vmatprep.subr.bf16.mxu0 0
        %1492 = vmatpush2.bf16.msra.mxu0 0
        %1493 = vmatprep.mubr.bf16.mxu0 0
        %1494 = vmatmul.mubr.bf16.gmra.mxu0 %v454
        %v1495 = vpop.f32.mrf.mxu0
        %v1496 = vadd.f32 %v1444, %v1495
        %v1497 = vpop.f32.mrf.mxu0
        %v1498 = vpop.f32.mrf.mxu0
        %v1499 = vpop.f32.mrf.mxu0
        %1500 = vdwg.mxu0
        %s1501 = scalar_lea.vmem %s3, 3
        %v1502 = vld [vmem:[%s1501] sm:$0x1]
        %v1504 = vlaneseq
        %v1505 = vshrl.u32 %v1504, 7
        %v1506 = vsub.s32 0, %v1505
        %v1507 = vrot.slane %v1502, %v1506
        %v1509 = vadd.f32 %v1496, %v1507
        %vm1510 = vcmp.ge.f32.partialorder %v1509, 0.0
        %v1511 = vmul.f32 %v1509, 0.01
        %v1512 = vsel %vm1510, %v1509, %v1511
        %v1513 = vpack.c.bf16 %v1512, %v1512
        %s1514 = scalar_lea.vmem %s4, 192
        %v1515 = vld [vmem:[%s1514] sm:$0xf]
        %v1516 = vld [vmem:[%s1514 + $0x4] sm:$0xf]
        %v1517 = vld [vmem:[%s1514 + $0x8] sm:$0xf]
        %v1518 = vld [vmem:[%s1514 + $0xc] sm:$0xf]
        %v1519 = vld [vmem:[%s1514 + $0x10] sm:$0xf]
        %v1520 = vld [vmem:[%s1514 + $0x14] sm:$0xf]
        %v1521 = vld [vmem:[%s1514 + $0x18] sm:$0xf]
        %v1522 = vld [vmem:[%s1514 + $0x1c] sm:$0xf]
        %v1523 = vld [vmem:[%s1514 + $0x20] sm:$0xf]
        %v1524 = vld [vmem:[%s1514 + $0x24] sm:$0xf]
        %v1525 = vld [vmem:[%s1514 + $0x28] sm:$0xf]
        %v1526 = vld [vmem:[%s1514 + $0x2c] sm:$0xf]
        %v1527 = vld [vmem:[%s1514 + $0x30] sm:$0xf]
        %v1528 = vld [vmem:[%s1514 + $0x34] sm:$0xf]
        %v1529 = vld [vmem:[%s1514 + $0x38] sm:$0xf]
        %v1530 = vld [vmem:[%s1514 + $0x3c] sm:$0xf]
        %s1531 = scalar_lea.vmem %s5, 3
        %v1532 = vld [vmem:[%s1531] sm:$0x1]
        %v1534 = vlaneseq
        %v1535 = vshrl.u32 %v1534, 7
        %v1536 = vsub.s32 0, %v1535
        %v1537 = vrot.slane %v1532, %v1536
        %v1555 = vunpack.c.l.b16 %v1515
        %v1556 = vunpack.c.l.b16 %v1516
        %v1557 = vunpack.c.l.b16 %v1517
        %v1558 = vunpack.c.l.b16 %v1518
        %v1559 = vunpack.c.l.b16 %v1519
        %v1560 = vunpack.c.l.b16 %v1520
        %v1561 = vunpack.c.l.b16 %v1521
        %v1562 = vunpack.c.l.b16 %v1522
        %v1563 = vunpack.c.l.b16 %v1523
        %v1564 = vunpack.c.l.b16 %v1524
        %v1565 = vunpack.c.l.b16 %v1525
        %v1566 = vunpack.c.l.b16 %v1526
        %v1567 = vunpack.c.l.b16 %v1527
        %v1568 = vunpack.c.l.b16 %v1528
        %v1569 = vunpack.c.l.b16 %v1529
        %v1570 = vunpack.c.l.b16 %v1530
        %v1571 = vpack.c.b16 %v1556, %v1555
        %v1572 = vpack.c.b16 %v1558, %v1557
        %v1573 = vpack.c.b16 %v1560, %v1559
        %v1574 = vpack.c.b16 %v1562, %v1561
        %v1575 = vpack.c.b16 %v1564, %v1563
        %v1576 = vpack.c.b16 %v1566, %v1565
        %v1577 = vpack.c.b16 %v1568, %v1567
        %v1578 = vpack.c.b16 %v1570, %v1569
        %1587 = vmatprep.subr.bf16.mxu0 0
        %1588 = vmatpush1.bf16.msra.mxu0 %v1578
        %1589 = vmatprep.subr.bf16.mxu0 0
        %1590 = vmatpush1.bf16.msra.mxu0 %v1577
        %1591 = vmatprep.subr.bf16.mxu0 0
        %1592 = vmatpush1.bf16.msra.mxu0 %v1576
        %1593 = vmatprep.subr.bf16.mxu0 0
        %1594 = vmatpush1.bf16.msra.mxu0 %v1575
        %1595 = vmatprep.subr.bf16.mxu0 0
        %1596 = vmatpush1.bf16.msra.mxu0 %v1574
        %1597 = vmatprep.subr.bf16.mxu0 0
        %1598 = vmatpush1.bf16.msra.mxu0 %v1573
        %1599 = vmatprep.subr.bf16.mxu0 0
        %1600 = vmatpush1.bf16.msra.mxu0 %v1572
        %1601 = vmatprep.subr.bf16.mxu0 0
        %1602 = vmatpush1.bf16.msra.mxu0 %v1571
        %1603 = vmatprep.subr.bf16.mxu0 0
        %1604 = vmatpush2.bf16.msra.mxu0 0
        %1605 = vmatprep.subr.bf16.mxu0 0
        %1606 = vmatpush2.bf16.msra.mxu0 0
        %1607 = vmatprep.subr.bf16.mxu0 0
        %1608 = vmatpush2.bf16.msra.mxu0 0
        %1609 = vmatprep.subr.bf16.mxu0 0
        %1610 = vmatpush2.bf16.msra.mxu0 0
        %1611 = vmatprep.subr.bf16.mxu0 0
        %1612 = vmatpush2.bf16.msra.mxu0 0
        %1613 = vmatprep.subr.bf16.mxu0 0
        %1614 = vmatpush2.bf16.msra.mxu0 0
        %1615 = vmatprep.subr.bf16.mxu0 0
        %1616 = vmatpush2.bf16.msra.mxu0 0
        %1617 = vmatprep.subr.bf16.mxu0 0
        %1618 = vmatpush2.bf16.msra.mxu0 0
        %1619 = vmatprep.mubr.bf16.mxu0 0
        %1620 = vmatmul.mubr.bf16.gmra.mxu0 %v1513
        %v1621 = vpop.f32.mrf.mxu0
        %v1622 = vadd.f32 %v1537, %v1621
        %v1623 = vpop.f32.mrf.mxu0
        %v1624 = vpop.f32.mrf.mxu0
        %v1625 = vpop.f32.mrf.mxu0
        %1626 = vdwg.mxu0
        %v1627 = vpack.c.bf16 %v1622, %v1622
        %v1629 = vsel %vm425, %v1627, 0
        %1631 = vmatprep.subr.bf16.mxu0 0
        %1632 = vmatpush1.bf16.msra.mxu0 0
        %1633 = vmatprep.subr.bf16.mxu0 0
        %1634 = vmatpush1.bf16.msra.mxu0 0
        %1635 = vmatprep.subr.bf16.mxu0 0
        %1636 = vmatpush1.bf16.msra.mxu0 0
        %1637 = vmatprep.subr.bf16.mxu0 0
        %1638 = vmatpush1.bf16.msra.mxu0 0
        %1639 = vmatprep.subr.bf16.mxu0 0
        %1640 = vmatpush1.bf16.msra.mxu0 0
        %1641 = vmatprep.subr.bf16.mxu0 0
        %1642 = vmatpush1.bf16.msra.mxu0 0
        %1643 = vmatprep.subr.bf16.mxu0 0
        %1644 = vmatpush1.bf16.msra.mxu0 %v450
        %1645 = vmatprep.subr.bf16.mxu0 0
        %1646 = vmatpush1.bf16.msra.mxu0 %v449
        %1647 = vmatprep.subr.bf16.mxu0 0
        %1648 = vmatpush2.bf16.msra.mxu0 0
        %1649 = vmatprep.subr.bf16.mxu0 0
        %1650 = vmatpush2.bf16.msra.mxu0 0
        %1651 = vmatprep.subr.bf16.mxu0 0
        %1652 = vmatpush2.bf16.msra.mxu0 0
        %1653 = vmatprep.subr.bf16.mxu0 0
        %1654 = vmatpush2.bf16.msra.mxu0 0
        %1655 = vmatprep.subr.bf16.mxu0 0
        %1656 = vmatpush2.bf16.msra.mxu0 0
        %1657 = vmatprep.subr.bf16.mxu0 0
        %1658 = vmatpush2.bf16.msra.mxu0 0
        %1659 = vmatprep.subr.bf16.mxu0 0
        %1660 = vmatpush2.bf16.msra.mxu0 0
        %1661 = vmatprep.subr.bf16.mxu0 0
        %1662 = vmatpush2.bf16.msra.mxu0 0
        %1663 = vmatprep.mubr.bf16.mxu0 0
        %1664 = vmatmul.mubr.bf16.gmra.mxu0 %v1629
        %v1665 = vpop.f32.mrf.mxu0
        %v1666 = vadd.f32 0.0, %v1665
        %v1667 = vpop.f32.mrf.mxu0
        %v1668 = vpop.f32.mrf.mxu0
        %v1669 = vpop.f32.mrf.mxu0
        %1670 = vdwg.mxu0
        %v1671 = vmul.f32 %v1666, %v1666
        %1673 = vrot.lane.b32.xlu0 %v1671, 96
        %v1674 = vpop.permute.xlu0 %1673
        %v1676 = vadd.f32 %v1671, %v1674
        %v1677 = vadd.f32 %v1676, 1e-12
        %v1678 = vrsqrt.pop %v1677
        %v1679 = vmul.f32 %v1666, %v1678
        %1681 = vrot.lane.b32.xlu0 %v1678, 32
        %v1682 = vpop.permute.xlu0 %1681
        %v1684 = vmul.f32 %v1666, %v1682
        %s1685 = scalar_lea.vmem %s1, 64
        %v1686 = vld [vmem:[%s1685] sm:$0xf]
        %v1687 = vld [vmem:[%s1685 + $0x4] sm:$0xf]
        %v1688 = vld [vmem:[%s1685 + $0x8] sm:$0xf]
        %v1689 = vld [vmem:[%s1685 + $0xc] sm:$0xf]
        %s1690 = scalar_lea.vmem %s2, 64
        %v1691 = vld [vmem:[%s1690] sm:$0xf]
        %v1692 = vld [vmem:[%s1690 + $0x4] sm:$0xf]
        %v1693 = vld [vmem:[%s1690 + $0x8] sm:$0xf]
        %v1694 = vld [vmem:[%s1690 + $0xc] sm:$0xf]
        %v1699 = vunpack.c.l.b16 %v1691
        %v1700 = vunpack.c.l.b16 %v1692
        %v1701 = vunpack.c.l.b16 %v1693
        %v1702 = vunpack.c.l.b16 %v1694
        %v1703 = vpack.c.b16 %v1700, %v1699
        %v1704 = vpack.c.b16 %v1702, %v1701
        %1707 = vmatprep.subr.bf16.mxu0 0
        %1708 = vmatpush1.bf16.msra.mxu0 0
        %1709 = vmatprep.subr.bf16.mxu0 0
        %1710 = vmatpush1.bf16.msra.mxu0 0
        %1711 = vmatprep.subr.bf16.mxu0 0
        %1712 = vmatpush1.bf16.msra.mxu0 0
        %1713 = vmatprep.subr.bf16.mxu0 0
        %1714 = vmatpush1.bf16.msra.mxu0 0
        %1715 = vmatprep.subr.bf16.mxu0 0
        %1716 = vmatpush1.bf16.msra.mxu0 0
        %1717 = vmatprep.subr.bf16.mxu0 0
        %1718 = vmatpush1.bf16.msra.mxu0 0
        %1719 = vmatprep.subr.bf16.mxu0 0
        %1720 = vmatpush1.bf16.msra.mxu0 %v1704
        %1721 = vmatprep.subr.bf16.mxu0 0
        %1722 = vmatpush1.bf16.msra.mxu0 %v1703
        %1723 = vmatprep.subr.bf16.mxu0 0
        %1724 = vmatpush2.bf16.msra.mxu0 0
        %1725 = vmatprep.subr.bf16.mxu0 0
        %1726 = vmatpush2.bf16.msra.mxu0 0
        %1727 = vmatprep.subr.bf16.mxu0 0
        %1728 = vmatpush2.bf16.msra.mxu0 0
        %1729 = vmatprep.subr.bf16.mxu0 0
        %1730 = vmatpush2.bf16.msra.mxu0 0
        %1731 = vmatprep.subr.bf16.mxu0 0
        %1732 = vmatpush2.bf16.msra.mxu0 0
        %1733 = vmatprep.subr.bf16.mxu0 0
        %1734 = vmatpush2.bf16.msra.mxu0 0
        %1735 = vmatprep.subr.bf16.mxu0 0
        %1736 = vmatpush2.bf16.msra.mxu0 0
        %1737 = vmatprep.subr.bf16.mxu0 0
        %1738 = vmatpush2.bf16.msra.mxu0 0
        %1739 = vmatprep.mubr.bf16.mxu0 0
        %1740 = vmatmul.mubr.bf16.gmra.mxu0 %v516
        %v1741 = vpop.f32.mrf.mxu0
        %v1742 = vadd.f32 0.0, %v1741
        %v1743 = vpop.f32.mrf.mxu0
        %v1744 = vpop.f32.mrf.mxu0
        %v1745 = vpop.f32.mrf.mxu0
        %1746 = vdwg.mxu0
        %v1751 = vunpack.c.l.b16 %v1686
        %v1752 = vunpack.c.l.b16 %v1687
        %v1753 = vunpack.c.l.b16 %v1688
        %v1754 = vunpack.c.l.b16 %v1689
        %v1755 = vpack.c.b16 %v1752, %v1751
        %v1756 = vpack.c.b16 %v1754, %v1753
        %1759 = vmatprep.subr.bf16.mxu0 0
        %1760 = vmatpush1.bf16.msra.mxu0 0
        %1761 = vmatprep.subr.bf16.mxu0 0
        %1762 = vmatpush1.bf16.msra.mxu0 0
        %1763 = vmatprep.subr.bf16.mxu0 0
        %1764 = vmatpush1.bf16.msra.mxu0 0
        %1765 = vmatprep.subr.bf16.mxu0 0
        %1766 = vmatpush1.bf16.msra.mxu0 0
        %1767 = vmatprep.subr.bf16.mxu0 0
        %1768 = vmatpush1.bf16.msra.mxu0 0
        %1769 = vmatprep.subr.bf16.mxu0 0
        %1770 = vmatpush1.bf16.msra.mxu0 0
        %1771 = vmatprep.subr.bf16.mxu0 0
        %1772 = vmatpush1.bf16.msra.mxu0 %v1756
        %1773 = vmatprep.subr.bf16.mxu0 0
        %1774 = vmatpush1.bf16.msra.mxu0 %v1755
        %1775 = vmatprep.subr.bf16.mxu0 0
        %1776 = vmatpush2.bf16.msra.mxu0 0
        %1777 = vmatprep.subr.bf16.mxu0 0
        %1778 = vmatpush2.bf16.msra.mxu0 0
        %1779 = vmatprep.subr.bf16.mxu0 0
        %1780 = vmatpush2.bf16.msra.mxu0 0
        %1781 = vmatprep.subr.bf16.mxu0 0
        %1782 = vmatpush2.bf16.msra.mxu0 0
        %1783 = vmatprep.subr.bf16.mxu0 0
        %1784 = vmatpush2.bf16.msra.mxu0 0
        %1785 = vmatprep.subr.bf16.mxu0 0
        %1786 = vmatpush2.bf16.msra.mxu0 0
        %1787 = vmatprep.subr.bf16.mxu0 0
        %1788 = vmatpush2.bf16.msra.mxu0 0
        %1789 = vmatprep.subr.bf16.mxu0 0
        %1790 = vmatpush2.bf16.msra.mxu0 0
        %1791 = vmatprep.mubr.bf16.mxu0 0
        %1792 = vmatmul.mubr.bf16.gmra.mxu0 %v454
        %v1793 = vpop.f32.mrf.mxu0
        %v1794 = vadd.f32 %v1742, %v1793
        %v1795 = vpop.f32.mrf.mxu0
        %v1796 = vpop.f32.mrf.mxu0
        %v1797 = vpop.f32.mrf.mxu0
        %1798 = vdwg.mxu0
        %s1799 = scalar_lea.vmem %s3, 4
        %v1800 = vld [vmem:[%s1799] sm:$0x1]
        %v1802 = vlaneseq
        %v1803 = vshrl.u32 %v1802, 7
        %v1804 = vsub.s32 0, %v1803
        %v1805 = vrot.slane %v1800, %v1804
        %v1807 = vadd.f32 %v1794, %v1805
        %vm1808 = vcmp.ge.f32.partialorder %v1807, 0.0
        %v1809 = vmul.f32 %v1807, 0.01
        %v1810 = vsel %vm1808, %v1807, %v1809
        %v1811 = vpack.c.bf16 %v1810, %v1810
        %s1812 = scalar_lea.vmem %s4, 256
        %v1813 = vld [vmem:[%s1812] sm:$0xf]
        %v1814 = vld [vmem:[%s1812 + $0x4] sm:$0xf]
        %v1815 = vld [vmem:[%s1812 + $0x8] sm:$0xf]
        %v1816 = vld [vmem:[%s1812 + $0xc] sm:$0xf]
        %v1817 = vld [vmem:[%s1812 + $0x10] sm:$0xf]
        %v1818 = vld [vmem:[%s1812 + $0x14] sm:$0xf]
        %v1819 = vld [vmem:[%s1812 + $0x18] sm:$0xf]
        %v1820 = vld [vmem:[%s1812 + $0x1c] sm:$0xf]
        %v1821 = vld [vmem:[%s1812 + $0x20] sm:$0xf]
        %v1822 = vld [vmem:[%s1812 + $0x24] sm:$0xf]
        %v1823 = vld [vmem:[%s1812 + $0x28] sm:$0xf]
        %v1824 = vld [vmem:[%s1812 + $0x2c] sm:$0xf]
        %v1825 = vld [vmem:[%s1812 + $0x30] sm:$0xf]
        %v1826 = vld [vmem:[%s1812 + $0x34] sm:$0xf]
        %v1827 = vld [vmem:[%s1812 + $0x38] sm:$0xf]
        %v1828 = vld [vmem:[%s1812 + $0x3c] sm:$0xf]
        %s1829 = scalar_lea.vmem %s5, 4
        %v1830 = vld [vmem:[%s1829] sm:$0x1]
        %v1832 = vlaneseq
        %v1833 = vshrl.u32 %v1832, 7
        %v1834 = vsub.s32 0, %v1833
        %v1835 = vrot.slane %v1830, %v1834
        %v1853 = vunpack.c.l.b16 %v1813
        %v1854 = vunpack.c.l.b16 %v1814
        %v1855 = vunpack.c.l.b16 %v1815
        %v1856 = vunpack.c.l.b16 %v1816
        %v1857 = vunpack.c.l.b16 %v1817
        %v1858 = vunpack.c.l.b16 %v1818
        %v1859 = vunpack.c.l.b16 %v1819
        %v1860 = vunpack.c.l.b16 %v1820
        %v1861 = vunpack.c.l.b16 %v1821
        %v1862 = vunpack.c.l.b16 %v1822
        %v1863 = vunpack.c.l.b16 %v1823
        %v1864 = vunpack.c.l.b16 %v1824
        %v1865 = vunpack.c.l.b16 %v1825
        %v1866 = vunpack.c.l.b16 %v1826
        %v1867 = vunpack.c.l.b16 %v1827
        %v1868 = vunpack.c.l.b16 %v1828
        %v1869 = vpack.c.b16 %v1854, %v1853
        %v1870 = vpack.c.b16 %v1856, %v1855
        %v1871 = vpack.c.b16 %v1858, %v1857
        %v1872 = vpack.c.b16 %v1860, %v1859
        %v1873 = vpack.c.b16 %v1862, %v1861
        %v1874 = vpack.c.b16 %v1864, %v1863
        %v1875 = vpack.c.b16 %v1866, %v1865
        %v1876 = vpack.c.b16 %v1868, %v1867
        %1885 = vmatprep.subr.bf16.mxu0 0
        %1886 = vmatpush1.bf16.msra.mxu0 %v1876
        %1887 = vmatprep.subr.bf16.mxu0 0
        %1888 = vmatpush1.bf16.msra.mxu0 %v1875
        %1889 = vmatprep.subr.bf16.mxu0 0
        %1890 = vmatpush1.bf16.msra.mxu0 %v1874
        %1891 = vmatprep.subr.bf16.mxu0 0
        %1892 = vmatpush1.bf16.msra.mxu0 %v1873
        %1893 = vmatprep.subr.bf16.mxu0 0
        %1894 = vmatpush1.bf16.msra.mxu0 %v1872
        %1895 = vmatprep.subr.bf16.mxu0 0
        %1896 = vmatpush1.bf16.msra.mxu0 %v1871
        %1897 = vmatprep.subr.bf16.mxu0 0
        %1898 = vmatpush1.bf16.msra.mxu0 %v1870
        %1899 = vmatprep.subr.bf16.mxu0 0
        %1900 = vmatpush1.bf16.msra.mxu0 %v1869
        %1901 = vmatprep.subr.bf16.mxu0 0
        %1902 = vmatpush2.bf16.msra.mxu0 0
        %1903 = vmatprep.subr.bf16.mxu0 0
        %1904 = vmatpush2.bf16.msra.mxu0 0
        %1905 = vmatprep.subr.bf16.mxu0 0
        %1906 = vmatpush2.bf16.msra.mxu0 0
        %1907 = vmatprep.subr.bf16.mxu0 0
        %1908 = vmatpush2.bf16.msra.mxu0 0
        %1909 = vmatprep.subr.bf16.mxu0 0
        %1910 = vmatpush2.bf16.msra.mxu0 0
        %1911 = vmatprep.subr.bf16.mxu0 0
        %1912 = vmatpush2.bf16.msra.mxu0 0
        %1913 = vmatprep.subr.bf16.mxu0 0
        %1914 = vmatpush2.bf16.msra.mxu0 0
        %1915 = vmatprep.subr.bf16.mxu0 0
        %1916 = vmatpush2.bf16.msra.mxu0 0
        %1917 = vmatprep.mubr.bf16.mxu0 0
        %1918 = vmatmul.mubr.bf16.gmra.mxu0 %v1811
        %v1919 = vpop.f32.mrf.mxu0
        %v1920 = vadd.f32 %v1835, %v1919
        %v1921 = vpop.f32.mrf.mxu0
        %v1922 = vpop.f32.mrf.mxu0
        %v1923 = vpop.f32.mrf.mxu0
        %1924 = vdwg.mxu0
        %v1925 = vpack.c.bf16 %v1920, %v1920
        %v1927 = vsel %vm425, %v1925, 0
        %1929 = vmatprep.subr.bf16.mxu0 0
        %1930 = vmatpush1.bf16.msra.mxu0 0
        %1931 = vmatprep.subr.bf16.mxu0 0
        %1932 = vmatpush1.bf16.msra.mxu0 0
        %1933 = vmatprep.subr.bf16.mxu0 0
        %1934 = vmatpush1.bf16.msra.mxu0 0
        %1935 = vmatprep.subr.bf16.mxu0 0
        %1936 = vmatpush1.bf16.msra.mxu0 0
        %1937 = vmatprep.subr.bf16.mxu0 0
        %1938 = vmatpush1.bf16.msra.mxu0 0
        %1939 = vmatprep.subr.bf16.mxu0 0
        %1940 = vmatpush1.bf16.msra.mxu0 0
        %1941 = vmatprep.subr.bf16.mxu0 0
        %1942 = vmatpush1.bf16.msra.mxu0 %v450
        %1943 = vmatprep.subr.bf16.mxu0 0
        %1944 = vmatpush1.bf16.msra.mxu0 %v449
        %1945 = vmatprep.subr.bf16.mxu0 0
        %1946 = vmatpush2.bf16.msra.mxu0 0
        %1947 = vmatprep.subr.bf16.mxu0 0
        %1948 = vmatpush2.bf16.msra.mxu0 0
        %1949 = vmatprep.subr.bf16.mxu0 0
        %1950 = vmatpush2.bf16.msra.mxu0 0
        %1951 = vmatprep.subr.bf16.mxu0 0
        %1952 = vmatpush2.bf16.msra.mxu0 0
        %1953 = vmatprep.subr.bf16.mxu0 0
        %1954 = vmatpush2.bf16.msra.mxu0 0
        %1955 = vmatprep.subr.bf16.mxu0 0
        %1956 = vmatpush2.bf16.msra.mxu0 0
        %1957 = vmatprep.subr.bf16.mxu0 0
        %1958 = vmatpush2.bf16.msra.mxu0 0
        %1959 = vmatprep.subr.bf16.mxu0 0
        %1960 = vmatpush2.bf16.msra.mxu0 0
        %1961 = vmatprep.mubr.bf16.mxu0 0
        %1962 = vmatmul.mubr.bf16.gmra.mxu0 %v1927
        %v1963 = vpop.f32.mrf.mxu0
        %v1964 = vadd.f32 0.0, %v1963
        %v1965 = vpop.f32.mrf.mxu0
        %v1966 = vpop.f32.mrf.mxu0
        %v1967 = vpop.f32.mrf.mxu0
        %1968 = vdwg.mxu0
        %v1969 = vmul.f32 %v1964, %v1964
        %1971 = vrot.lane.b32.xlu0 %v1969, 96
        %v1972 = vpop.permute.xlu0 %1971
        %v1974 = vadd.f32 %v1969, %v1972
        %v1975 = vadd.f32 %v1974, 1e-12
        %v1976 = vrsqrt.pop %v1975
        %v1977 = vmul.f32 %v1964, %v1976
        %1979 = vrot.lane.b32.xlu0 %v1976, 32
        %v1980 = vpop.permute.xlu0 %1979
        %v1982 = vmul.f32 %v1964, %v1980
        %v1983 = vadd.f32 %v1381, %v1679
        %v1984 = vadd.f32 %v1983, %v1977
        %v1985 = vadd.f32 %v1386, %v1684
        %v1986 = vadd.f32 %v1985, %v1982
        %v1987 = vmul.f32 %v785, %v1984
        %v1988 = vmul.f32 %v790, %v1986
        %1990 = vrot.lane.b32.xlu0 %v1988, 96
        %v1991 = vpop.permute.xlu0 %1990
        %v1993 = vsub.f32 %v1987, %v1991
        %1995 = vrot.lane.b32.xlu0 %v1986, 96
        %v1996 = vpop.permute.xlu0 %1995
        %v1998 = vmul.f32 %v785, %v1996
        %2000 = vrot.lane.b32.xlu0 %v1984, 32
        %v2001 = vpop.permute.xlu0 %2000
        %v2003 = vmul.f32 %v790, %v2001
        %2005 = vrot.lane.b32.xlu0 %v2003, 96
        %v2006 = vpop.permute.xlu0 %2005
        %v2008 = vadd.f32 %v1998, %v2006
        %v2009 = vmul.f32 %v1993, %v1083
        %2011 = vrot.lane.b32.xlu0 %v1088, 96
        %v2012 = vpop.permute.xlu0 %2011
        %v2014 = vmul.f32 %v2008, %v2012
        %v2015 = vsub.f32 %v2009, %v2014
        %v2016 = vmul.f32 %v1993, %v2012
        %v2017 = vmul.f32 %v2008, %v1083
        %v2018 = vadd.f32 %v2016, %v2017
        %v2019 = vmul.f32 %v785, %v785
        %v2020 = vmul.f32 %v790, %v790
        %2022 = vrot.lane.b32.xlu0 %v2020, 96
        %v2023 = vpop.permute.xlu0 %2022
        %v2025 = vadd.f32 %v2019, %v2023
        %v2026 = vmul.f32 %v1083, %v1083
        %v2027 = vmul.f32 %v1088, %v1088
        %2029 = vrot.lane.b32.xlu0 %v2027, 96
        %v2030 = vpop.permute.xlu0 %2029
        %v2032 = vadd.f32 %v2026, %v2030
        %v2033 = vmul.f32 %v1381, %v1381
        %v2034 = vmul.f32 %v1386, %v1386
        %2036 = vrot.lane.b32.xlu0 %v2034, 96
        %v2037 = vpop.permute.xlu0 %2036
        %v2039 = vadd.f32 %v2033, %v2037
        %v2040 = vmul.f32 %v1679, %v1679
        %v2041 = vadd.f32 %v2039, %v2040
        %v2042 = vmul.f32 %v1684, %v1684
        %2044 = vrot.lane.b32.xlu0 %v2042, 96
        %v2045 = vpop.permute.xlu0 %2044
        %v2047 = vadd.f32 %v2041, %v2045
        %v2048 = vmul.f32 %v2025, %v2047
        %v2049 = vmul.f32 %v1977, %v1977
        %v2050 = vmul.f32 %v1982, %v1982
        %2052 = vrot.lane.b32.xlu0 %v2050, 96
        %v2053 = vpop.permute.xlu0 %2052
        %v2055 = vadd.f32 %v2049, %v2053
        %v2056 = vmul.f32 %v2032, %v2055
        %v2057 = vadd.f32 %v2048, %v2056
        %v2058 = vmul.f32 %v2057, %v491
        %v2059 = vsub.f32 %v2015, %v2058
        %v2060 = vpack.c.bf16 %v2059, %v2059
        %2062 = vrot.lane.b32.xlu0 %v491, 96
        %v2063 = vpop.permute.xlu0 %2062
        %v2065 = vmul.f32 %v2057, %v2063
        %v2066 = vsub.f32 %v2018, %v2065
        %v2067 = vpack.c.bf16 %v2066, %v2066
        %v2068 = vld [vmem:[%s7] sm:$0xf]
        %v2069 = vld [vmem:[%s7 + $0x4] sm:$0xf]
        %v2070 = vld [vmem:[%s7 + $0x8] sm:$0xf]
        %v2071 = vld [vmem:[%s7 + $0xc] sm:$0xf]
        %v2076 = vunpack.c.l.b16 %v2068
        %v2077 = vunpack.c.l.b16 %v2069
        %v2078 = vunpack.c.l.b16 %v2070
        %v2079 = vunpack.c.l.b16 %v2071
        %v2080 = vpack.c.b16 %v2077, %v2076
        %v2081 = vpack.c.b16 %v2079, %v2078
        %v2085 = vsel %vm425, %v2060, 0
        %2087 = vmatprep.subr.bf16.mxu0 0
        %2088 = vmatpush1.bf16.msra.mxu0 0
        %2089 = vmatprep.subr.bf16.mxu0 0
        %2090 = vmatpush1.bf16.msra.mxu0 0
        %2091 = vmatprep.subr.bf16.mxu0 0
        %2092 = vmatpush1.bf16.msra.mxu0 0
        %2093 = vmatprep.subr.bf16.mxu0 0
        %2094 = vmatpush1.bf16.msra.mxu0 0
        %2095 = vmatprep.subr.bf16.mxu0 0
        %2096 = vmatpush1.bf16.msra.mxu0 0
        %2097 = vmatprep.subr.bf16.mxu0 0
        %2098 = vmatpush1.bf16.msra.mxu0 0
        %2099 = vmatprep.subr.bf16.mxu0 0
        %2100 = vmatpush1.bf16.msra.mxu0 %v2081
        %2101 = vmatprep.subr.bf16.mxu0 0
        %2102 = vmatpush1.bf16.msra.mxu0 %v2080
        %2103 = vmatprep.subr.bf16.mxu0 0
        %2104 = vmatpush2.bf16.msra.mxu0 0
        %2105 = vmatprep.subr.bf16.mxu0 0
        %2106 = vmatpush2.bf16.msra.mxu0 0
        %2107 = vmatprep.subr.bf16.mxu0 0
        %2108 = vmatpush2.bf16.msra.mxu0 0
        %2109 = vmatprep.subr.bf16.mxu0 0
        %2110 = vmatpush2.bf16.msra.mxu0 0
        %2111 = vmatprep.subr.bf16.mxu0 0
        %2112 = vmatpush2.bf16.msra.mxu0 0
        %2113 = vmatprep.subr.bf16.mxu0 0
        %2114 = vmatpush2.bf16.msra.mxu0 0
        %2115 = vmatprep.subr.bf16.mxu0 0
        %2116 = vmatpush2.bf16.msra.mxu0 0
        %2117 = vmatprep.subr.bf16.mxu0 0
        %2118 = vmatpush2.bf16.msra.mxu0 0
        %2119 = vmatprep.mubr.bf16.mxu0 0
        %2120 = vmatmul.mubr.bf16.gmra.mxu0 %v2085
        %v2121 = vpop.f32.mrf.mxu0
        %v2122 = vadd.f32 0.0, %v2121
        %v2123 = vpop.f32.mrf.mxu0
        %v2124 = vpop.f32.mrf.mxu0
        %v2125 = vpop.f32.mrf.mxu0
        %2126 = vdwg.mxu0
        %v2127 = vld [vmem:[%s8] sm:$0xf]
        %v2128 = vld [vmem:[%s8 + $0x4] sm:$0xf]
        %v2129 = vld [vmem:[%s8 + $0x8] sm:$0xf]
        %v2130 = vld [vmem:[%s8 + $0xc] sm:$0xf]
        %v2135 = vunpack.c.l.b16 %v2127
        %v2136 = vunpack.c.l.b16 %v2128
        %v2137 = vunpack.c.l.b16 %v2129
        %v2138 = vunpack.c.l.b16 %v2130
        %v2139 = vpack.c.b16 %v2136, %v2135
        %v2140 = vpack.c.b16 %v2138, %v2137
        %v2144 = vsel %vm425, %v2067, 0
        %2146 = vmatprep.subr.bf16.mxu0 0
        %2147 = vmatpush1.bf16.msra.mxu0 0
        %2148 = vmatprep.subr.bf16.mxu0 0
        %2149 = vmatpush1.bf16.msra.mxu0 0
        %2150 = vmatprep.subr.bf16.mxu0 0
        %2151 = vmatpush1.bf16.msra.mxu0 0
        %2152 = vmatprep.subr.bf16.mxu0 0
        %2153 = vmatpush1.bf16.msra.mxu0 0
        %2154 = vmatprep.subr.bf16.mxu0 0
        %2155 = vmatpush1.bf16.msra.mxu0 0
        %2156 = vmatprep.subr.bf16.mxu0 0
        %2157 = vmatpush1.bf16.msra.mxu0 0
        %2158 = vmatprep.subr.bf16.mxu0 0
        %2159 = vmatpush1.bf16.msra.mxu0 %v2140
        %2160 = vmatprep.subr.bf16.mxu0 0
        %2161 = vmatpush1.bf16.msra.mxu0 %v2139
        %2162 = vmatprep.subr.bf16.mxu0 0
        %2163 = vmatpush2.bf16.msra.mxu0 0
        %2164 = vmatprep.subr.bf16.mxu0 0
        %2165 = vmatpush2.bf16.msra.mxu0 0
        %2166 = vmatprep.subr.bf16.mxu0 0
        %2167 = vmatpush2.bf16.msra.mxu0 0
        %2168 = vmatprep.subr.bf16.mxu0 0
        %2169 = vmatpush2.bf16.msra.mxu0 0
        %2170 = vmatprep.subr.bf16.mxu0 0
        %2171 = vmatpush2.bf16.msra.mxu0 0
        %2172 = vmatprep.subr.bf16.mxu0 0
        %2173 = vmatpush2.bf16.msra.mxu0 0
        %2174 = vmatprep.subr.bf16.mxu0 0
        %2175 = vmatpush2.bf16.msra.mxu0 0
        %2176 = vmatprep.subr.bf16.mxu0 0
        %2177 = vmatpush2.bf16.msra.mxu0 0
        %2178 = vmatprep.mubr.bf16.mxu0 0
        %2179 = vmatmul.mubr.bf16.gmra.mxu0 %v2144
        %v2180 = vpop.f32.mrf.mxu0
        %v2181 = vadd.f32 0.0, %v2180
        %v2182 = vpop.f32.mrf.mxu0
        %v2183 = vpop.f32.mrf.mxu0
        %v2184 = vpop.f32.mrf.mxu0
        %2185 = vdwg.mxu0
        %v2186 = vsub.f32 %v2122, %v2181
        %2187 = vst.msk [vmem:[%s345] sm:$0xff] %vm425, %v2186
        %s2188 = sand.u32 %s241, 1
        %s2189 = scalar_lea.sflag [#allocation4], %s2188
        %s2190 = sand.u32 %s241, 1
        %s2191 = smul.addr %s2190, 8
        %s2192 = scalar_lea.vmem [#allocation3], %s2191
        // Predicated region
        $region61: #{tpu_custom_call.1} parent=55 // pred_check
          %p2193 = pneg %p251
        $region62: #{tpu_custom_call.1} parent=55 // pred_check_branch
          %2195 = sbr.rel (%p2193) target = $region64
        $region63: #{tpu_custom_call.1} parent=55 // pred_region
          %s2197 = ssub.s32 128, 128
          %2198 = vsyncadd %s2189, %s2197
          %s2199 = sadd.s32 %s28, %s27
          %s2200 = smul.addr %s2199, 128
          %s2201 = scalar_lea.hbm %s9, %s2200
          %s2203 = sshll.u32 %s2192, 4
          %s2204 = int_to_ptr.vmem [resolvable:$true] %s2203
          %2206 = dma.vmem_to_hbm [thread:$0]  %s2204, 128, %s2201, %s2189
        $region64: #{tpu_custom_call.1} parent=55 // pred_fallthru
          _
      $region56: #{tpu_custom_call.1} parent=5 // pred_fallthru
        _
      %p2207 = scmp.le.s32.totalorder 2, %s18
      // Predicated region
      $region65: #{tpu_custom_call.1} parent=5 // pred_check
        %p2208 = pneg %p2207
      $region66: #{tpu_custom_call.1} parent=5 // pred_check_branch
        %2210 = sbr.rel (%p2208) target = $region68
      $region67: #{tpu_custom_call.1} parent=5 // pred_region
        %s2211 = ssub.s32 %s18, 2
        // Predicated region
        $region69: #{tpu_custom_call.1} parent=67 // pred_check
          %p2212 = pneg %p257
        $region70: #{tpu_custom_call.1} parent=67 // pred_check_branch
          %2214 = sbr.rel (%p2212) target = $region72
        $region71: #{tpu_custom_call.1} parent=67 // pred_region
          %s2215 = sand.u32 %s242, 1
          %s2216 = scalar_lea.sflag [#allocation4], %s2215
          %s2217 = sand.u32 %s242, 1
          %s2218 = smul.addr %s2217, 8
          %s2219 = scalar_lea.vmem [#allocation3], %s2218
          %2220 = dma.done %s2216, 128
        $region72: #{tpu_custom_call.1} parent=67 // pred_fallthru
          _
      $region68: #{tpu_custom_call.1} parent=5 // pred_fallthru
        _
    $region6: #{tpu_custom_call.1} parent=1 // loop_footer
      %s22 = sadd.s32 1, %s18
    $region7: #{tpu_custom_call.1} parent=1 // loop_footer_branch
      %17 = sbr.rel target = $region3
    $region8: #{tpu_custom_call.1} parent=1 // loop_exit
      _
    %2221 = vsyncpa [#allocation4], 1
    %s2222 = scalar_lea.sflag [#allocation4], 1
    %2223 = vsyncpa %s2222, 1

// kernel: tpu_custom_call.1
$region0: #{tpu_custom_call.1}
  #allocation0 [shape = 'u32[]', space=smem, size = 0x4, offset = 0x4, fixed_abs, tag = 'smem constant byte address 0x4 - core index']
  #allocation1 [shape = 'u32[144,128]{1,0:T(1,128)}', space=vmem, size = 0x12000, scoped, tag = 'internal scratch']
  #allocation2 [shape = 'f32[1,32]{1,0:T(1,128)}', space=vmem, size = 0x200, scoped, tag = 'scratch operand']
  %s0 = inlined_call_operand.vmem [shape: f32[2,8,32], index: 0, kind: input, shape index: {}]
  %s1 = inlined_call_operand.vmem [shape: bf16[5,32,128], index: 1, kind: input, shape index: {}]
  %s2 = inlined_call_operand.vmem [shape: bf16[5,32,128], index: 2, kind: input, shape index: {}]
  %s3 = inlined_call_operand.vmem [shape: f32[5,1,128], index: 3, kind: input, shape index: {}]
  %s4 = inlined_call_operand.vmem [shape: bf16[5,128,32], index: 4, kind: input, shape index: {}]
  %s5 = inlined_call_operand.vmem [shape: f32[5,1,32], index: 5, kind: input, shape index: {}]
  %s6 = inlined_call_operand.vmem [shape: bf16[32,64], index: 6, kind: input, shape index: {}]
  %s7 = inlined_call_operand.vmem [shape: bf16[32,32], index: 7, kind: input, shape index: {}]
  %s8 = inlined_call_operand.vmem [shape: bf16[32,32], index: 8, kind: input, shape index: {}]
  %s9 = inlined_call_operand.hbm [shape: f32[2,8,32], index: 9, kind: output, shape index: {}]
  %s10 = sld [smem:[#allocation0]]
  $region73: #{tpu_custom_call.1} parent=0
    _
  %s12 = ssub.s32 1, %s10
  %s13 = scalar_select 0, %s12, %s10
  $region1: #{tpu_custom_call.1} parent=0
    #allocation3 [shape = 'u8[8192]{0}', space=vmem, size = 0x2000, scoped, tag = 'output window, operand 0']
    #allocation4 [shape = 's32[2]{0}', space=sflag, size = 0x8, scoped, tag = 'scoped memory for tpu_custom_call.1']
    %14 = vsyncpa [#allocation4], 0
    %s15 = scalar_lea.sflag [#allocation4], 1
    %16 = vsyncpa %s15, 0
    loop: start=0, step=1, limit=4
    $region2: #{tpu_custom_call.1} parent=1 // loop_pre_header
      _
    $region3: #{tpu_custom_call.1} parent=1 // loop_header
      %s18 = sphi 0, %s22
      %p19 = scmp.ge.s32.totalorder %s18, 4
      %s25 = sphi 0, %s37
      %s26 = sphi 0, %s33
      %s27 = sphi 0, %s25
      %s28 = sphi 0, %s26
      %s29 = sphi 0, %s27
      %s30 = sphi 0, %s28
      %s42 = sphi 0, %s44
      %s45 = sphi 0, %s42
      %s46 = sphi 0, %s45
      %s62 = sphi 0, %s46
      %s66 = sphi 0, %s66
      %s68 = sphi 0, %s66
      %s69 = sphi 0, %s68
      %s83 = sphi 0, %s69
      %s87 = sphi 0, %s87
      %s89 = sphi 0, %s87
      %s90 = sphi 0, %s89
      %s104 = sphi 0, %s90
      %s108 = sphi 0, %s108
      %s110 = sphi 0, %s108
      %s111 = sphi 0, %s110
      %s125 = sphi 0, %s111
      %s129 = sphi 0, %s129
      %s131 = sphi 0, %s129
      %s132 = sphi 0, %s131
      %s146 = sphi 0, %s132
      %s150 = sphi 0, %s150
      %s152 = sphi 0, %s150
      %s153 = sphi 0, %s152
      %s167 = sphi 0, %s153
      %s171 = sphi 0, %s171
      %s173 = sphi 0, %s171
      %s174 = sphi 0, %s173
      %s188 = sphi 0, %s174
      %s192 = sphi 0, %s192
      %s194 = sphi 0, %s192
      %s195 = sphi 0, %s194
      %s209 = sphi 0, %s195
      %s213 = sphi 0, %s213
      %s215 = sphi 0, %s213
      %s216 = sphi 0, %s215
      %s230 = sphi 0, %s216
      %s238 = sphi 0, %s240
      %s241 = sphi 0, %s238
      %s242 = sphi 0, %s241
      %s258 = sphi 0, %s242
    $region4: #{tpu_custom_call.1} parent=1 // loop_header_branch
      %21 = sbr.rel (%p19) target = $region8
    $region5: #{tpu_custom_call.1} parent=1 // loop_body
      %s23 = ssub.s32 %s18, 1
      %s24 = ssub.s32 %s18, 2
      %s31 = sadd.s32 1, %s26
      %p32 = scmp.ge.s32.totalorder %s31, 1
      %s33 = scalar_select %p32, 0, %s31
      %s34 = sadd.s32 1, %s25
      %s35 = scalar_select %p32, %s34, %s25
      %p36 = scmp.ge.s32.totalorder %s35, 2
      %s37 = scalar_select %p36, 0, %s35
      %s38 = ssub.s32 %s25, %s37
      %s39 = ssub.s32 %s26, %s33
      %s40 = sor.u32 %s38, %s39
      %p41 = scmp.eq.s32.totalorder %s40, 0
      %s43 = sadd.s32 %s42, 1
      %s44 = scalar_select %p41, %s42, %s43
      %p47 = pneg %p41
      %p48 = scmp.eq.s32.totalorder %s18, 1
      %p49 = por %p47, %p48
      %p50 = scmp.ne.s32.totalorder %s42, %s45
      %p51 = scmp.eq.s32.totalorder %s18, 0
      %p52 = por %p50, %p51
      %p53 = scmp.ne.s32.totalorder %s42, %s45
      %p54 = scmp.eq.s32.totalorder %s23, 1
      %p55 = por %p53, %p54
      %p56 = scmp.ne.s32.totalorder %s45, %s46
      %p57 = scmp.eq.s32.totalorder %s23, 0
      %p58 = por %p56, %p57
      %p59 = scmp.ne.s32.totalorder %s45, %s46
      %p60 = scmp.eq.s32.totalorder %s24, 1
      %p61 = por %p59, %p60
      %p63 = scmp.ne.s32.totalorder %s46, %s62
      %p64 = scmp.eq.s32.totalorder %s24, 0
      %p65 = por %p63, %p64
      %s67 = sadd.s32 %s66, 1
      %p70 = scmp.eq.s32.totalorder %s18, 1
      %p71 = scmp.ne.s32.totalorder %s66, %s68
      %p72 = scmp.eq.s32.totalorder %s18, 0
      %p73 = por %p71, %p72
      %p74 = scmp.ne.s32.totalorder %s66, %s68
      %p75 = scmp.eq.s32.totalorder %s23, 1
      %p76 = por %p74, %p75
      %p77 = scmp.ne.s32.totalorder %s68, %s69
      %p78 = scmp.eq.s32.totalorder %s23, 0
      %p79 = por %p77, %p78
      %p80 = scmp.ne.s32.totalorder %s68, %s69
      %p81 = scmp.eq.s32.totalorder %s24, 1
      %p82 = por %p80, %p81
      %p84 = scmp.ne.s32.totalorder %s69, %s83
      %p85 = scmp.eq.s32.totalorder %s24, 0
      %p86 = por %p84, %p85
      %s88 = sadd.s32 %s87, 1
      %p91 = scmp.eq.s32.totalorder %s18, 1
      %p92 = scmp.ne.s32.totalorder %s87, %s89
      %p93 = scmp.eq.s32.totalorder %s18, 0
      %p94 = por %p92, %p93
      %p95 = scmp.ne.s32.totalorder %s87, %s89
      %p96 = scmp.eq.s32.totalorder %s23, 1
      %p97 = por %p95, %p96
      %p98 = scmp.ne.s32.totalorder %s89, %s90
      %p99 = scmp.eq.s32.totalorder %s23, 0
      %p100 = por %p98, %p99
      %p101 = scmp.ne.s32.totalorder %s89, %s90
      %p102 = scmp.eq.s32.totalorder %s24, 1
      %p103 = por %p101, %p102
      %p105 = scmp.ne.s32.totalorder %s90, %s104
      %p106 = scmp.eq.s32.totalorder %s24, 0
      %p107 = por %p105, %p106
      %s109 = sadd.s32 %s108, 1
      %p112 = scmp.eq.s32.totalorder %s18, 1
      %p113 = scmp.ne.s32.totalorder %s108, %s110
      %p114 = scmp.eq.s32.totalorder %s18, 0
      %p115 = por %p113, %p114
      %p116 = scmp.ne.s32.totalorder %s108, %s110
      %p117 = scmp.eq.s32.totalorder %s23, 1
      %p118 = por %p116, %p117
      %p119 = scmp.ne.s32.totalorder %s110, %s111
      %p120 = scmp.eq.s32.totalorder %s23, 0
      %p121 = por %p119, %p120
      %p122 = scmp.ne.s32.totalorder %s110, %s111
      %p123 = scmp.eq.s32.totalorder %s24, 1
      %p124 = por %p122, %p123
      %p126 = scmp.ne.s32.totalorder %s111, %s125
      %p127 = scmp.eq.s32.totalorder %s24, 0
      %p128 = por %p126, %p127
      %s130 = sadd.s32 %s129, 1
      %p133 = scmp.eq.s32.totalorder %s18, 1
      %p134 = scmp.ne.s32.totalorder %s129, %s131
      %p135 = scmp.eq.s32.totalorder %s18, 0
      %p136 = por %p134, %p135
      %p137 = scmp.ne.s32.totalorder %s129, %s131
      %p138 = scmp.eq.s32.totalorder %s23, 1
      %p139 = por %p137, %p138
      %p140 = scmp.ne.s32.totalorder %s131, %s132
      %p141 = scmp.eq.s32.totalorder %s23, 0
      %p142 = por %p140, %p141
      %p143 = scmp.ne.s32.totalorder %s131, %s132
      %p144 = scmp.eq.s32.totalorder %s24, 1
      %p145 = por %p143, %p144
      %p147 = scmp.ne.s32.totalorder %s132, %s146
      %p148 = scmp.eq.s32.totalorder %s24, 0
      %p149 = por %p147, %p148
      %s151 = sadd.s32 %s150, 1
      %p154 = scmp.eq.s32.totalorder %s18, 1
      %p155 = scmp.ne.s32.totalorder %s150, %s152
      %p156 = scmp.eq.s32.totalorder %s18, 0
      %p157 = por %p155, %p156
      %p158 = scmp.ne.s32.totalorder %s150, %s152
      %p159 = scmp.eq.s32.totalorder %s23, 1
      %p160 = por %p158, %p159
      %p161 = scmp.ne.s32.totalorder %s152, %s153
      %p162 = scmp.eq.s32.totalorder %s23, 0
      %p163 = por %p161, %p162
      %p164 = scmp.ne.s32.totalorder %s152, %s153
      %p165 = scmp.eq.s32.totalorder %s24, 1
      %p166 = por %p164, %p165
      %p168 = scmp.ne.s32.totalorder %s153, %s167
      %p169 = scmp.eq.s32.totalorder %s24, 0
      %p170 = por %p168, %p169
      %s172 = sadd.s32 %s171, 1
      %p175 = scmp.eq.s32.totalorder %s18, 1
      %p176 = scmp.ne.s32.totalorder %s171, %s173
      %p177 = scmp.eq.s32.totalorder %s18, 0
      %p178 = por %p176, %p177
      %p179 = scmp.ne.s32.totalorder %s171, %s173
      %p180 = scmp.eq.s32.totalorder %s23, 1
      %p181 = por %p179, %p180
      %p182 = scmp.ne.s32.totalorder %s173, %s174
      %p183 = scmp.eq.s32.totalorder %s23, 0
      %p184 = por %p182, %p183
      %p185 = scmp.ne.s32.totalorder %s173, %s174
      %p186 = scmp.eq.s32.totalorder %s24, 1
      %p187 = por %p185, %p186
      %p189 = scmp.ne.s32.totalorder %s174, %s188
      %p190 = scmp.eq.s32.totalorder %s24, 0
      %p191 = por %p189, %p190
      %s193 = sadd.s32 %s192, 1
      %p196 = scmp.eq.s32.totalorder %s18, 1
      %p197 = scmp.ne.s32.totalorder %s192, %s194
      %p198 = scmp.eq.s32.totalorder %s18, 0
      %p199 = por %p197, %p198
      %p200 = scmp.ne.s32.totalorder %s192, %s194
      %p201 = scmp.eq.s32.totalorder %s23, 1
      %p202 = por %p200, %p201
      %p203 = scmp.ne.s32.totalorder %s194, %s195
      %p204 = scmp.eq.s32.totalorder %s23, 0
      %p205 = por %p203, %p204
      %p206 = scmp.ne.s32.totalorder %s194, %s195
      %p207 = scmp.eq.s32.totalorder %s24, 1
      %p208 = por %p206, %p207
      %p210 = scmp.ne.s32.totalorder %s195, %s209
      %p211 = scmp.eq.s32.totalorder %s24, 0
      %p212 = por %p210, %p211
      %s214 = sadd.s32 %s213, 1
      %p217 = scmp.eq.s32.totalorder %s18, 1
      %p218 = scmp.ne.s32.totalorder %s213, %s215
      %p219 = scmp.eq.s32.totalorder %s18, 0
      %p220 = por %p218, %p219
      %p221 = scmp.ne.s32.totalorder %s213, %s215
      %p222 = scmp.eq.s32.totalorder %s23, 1
      %p223 = por %p221, %p222
      %p224 = scmp.ne.s32.totalorder %s215, %s216
      %p225 = scmp.eq.s32.totalorder %s23, 0
      %p226 = por %p224, %p225
      %p227 = scmp.ne.s32.totalorder %s215, %s216
      %p228 = scmp.eq.s32.totalorder %s24, 1
      %p229 = por %p227, %p228
      %p231 = scmp.ne.s32.totalorder %s216, %s230
      %p232 = scmp.eq.s32.totalorder %s24, 0
      %p233 = por %p231, %p232
      %s234 = ssub.s32 %s25, %s37
      %s235 = ssub.s32 %s26, %s33
      %s236 = sor.u32 %s234, %s235
      %p237 = scmp.eq.s32.totalorder %s236, 0
      %s239 = sadd.s32 %s238, 1
      %s240 = scalar_select %p237, %s238, %s239
      %p243 = pneg %p237
      %p244 = scmp.eq.s32.totalorder %s18, 1
      %p245 = por %p243, %p244
      %p246 = scmp.ne.s32.totalorder %s238, %s241
      %p247 = scmp.eq.s32.totalorder %s18, 0
      %p248 = por %p246, %p247
      %p249 = scmp.ne.s32.totalorder %s238, %s241
      %p250 = scmp.eq.s32.totalorder %s23, 1
      %p251 = por %p249, %p250
      %p252 = scmp.ne.s32.totalorder %s241, %s242
      %p253 = scmp.eq.s32.totalorder %s23, 0
      %p254 = por %p252, %p253
      %p255 = scmp.ne.s32.totalorder %s241, %s242
      %p256 = scmp.eq.s32.totalorder %s24, 1
      %p257 = por %p255, %p256
      %p259 = scmp.ne.s32.totalorder %s242, %s258
      %p260 = scmp.eq.s32.totalorder %s24, 0
      %p261 = por %p259, %p260
      %p262 = scmp.le.s32.totalorder 1, %s18
      %p263 = scmp.lt.s32.totalorder %s18, 3
      %p264 = pnand %p262, %p263
      %p265 = pneg %p264
      // Predicated region
      $region9: #{tpu_custom_call.1} parent=5 // pred_check
        _
      $region10: #{tpu_custom_call.1} parent=5 // pred_check_branch
        %267 = sbr.rel (%p264) target = $region12
      $region11: #{tpu_custom_call.1} parent=5 // pred_region
        %s268 = ssub.s32 %s18, 1
        // Predicated region
        $region13: #{tpu_custom_call.1} parent=11 // pred_check
          %p269 = pneg %p79
        $region14: #{tpu_custom_call.1} parent=11 // pred_check_branch
          %271 = sbr.rel (%p269) target = $region16
        $region15: #{tpu_custom_call.1} parent=11 // pred_region
          _
        $region16: #{tpu_custom_call.1} parent=11 // pred_fallthru
          _
        // Predicated region
        $region17: #{tpu_custom_call.1} parent=11 // pred_check
          %p272 = pneg %p100
        $region18: #{tpu_custom_call.1} parent=11 // pred_check_branch
          %274 = sbr.rel (%p272) target = $region20
        $region19: #{tpu_custom_call.1} parent=11 // pred_region
          _
        $region20: #{tpu_custom_call.1} parent=11 // pred_fallthru
          _
        // Predicated region
        $region21: #{tpu_custom_call.1} parent=11 // pred_check
          %p275 = pneg %p121
        $region22: #{tpu_custom_call.1} parent=11 // pred_check_branch
          %277 = sbr.rel (%p275) target = $region24
        $region23: #{tpu_custom_call.1} parent=11 // pred_region
          _
        $region24: #{tpu_custom_call.1} parent=11 // pred_fallthru
          _
        // Predicated region
        $region25: #{tpu_custom_call.1} parent=11 // pred_check
          %p278 = pneg %p142
        $region26: #{tpu_custom_call.1} parent=11 // pred_check_branch
          %280 = sbr.rel (%p278) target = $region28
        $region27: #{tpu_custom_call.1} parent=11 // pred_region
          _
        $region28: #{tpu_custom_call.1} parent=11 // pred_fallthru
          _
        // Predicated region
        $region29: #{tpu_custom_call.1} parent=11 // pred_check
          %p281 = pneg %p163
        $region30: #{tpu_custom_call.1} parent=11 // pred_check_branch
          %283 = sbr.rel (%p281) target = $region32
        $region31: #{tpu_custom_call.1} parent=11 // pred_region
          _
        $region32: #{tpu_custom_call.1} parent=11 // pred_fallthru
          _
        // Predicated region
        $region33: #{tpu_custom_call.1} parent=11 // pred_check
          %p284 = pneg %p184
        $region34: #{tpu_custom_call.1} parent=11 // pred_check_branch
          %286 = sbr.rel (%p284) target = $region36
        $region35: #{tpu_custom_call.1} parent=11 // pred_region
          _
        $region36: #{tpu_custom_call.1} parent=11 // pred_fallthru
          _
        // Predicated region
        $region37: #{tpu_custom_call.1} parent=11 // pred_check
          %p287 = pneg %p205
        $region38: #{tpu_custom_call.1} parent=11 // pred_check_branch
          %289 = sbr.rel (%p287) target = $region40
        $region39: #{tpu_custom_call.1} parent=11 // pred_region
          _
        $region40: #{tpu_custom_call.1} parent=11 // pred_fallthru
          _
        // Predicated region
        $region41: #{tpu_custom_call.1} parent=11 // pred_check
          %p290 = pneg %p226
        $region42: #{tpu_custom_call.1} parent=11 // pred_check_branch
          %292 = sbr.rel (%p290) target = $region44
        $region43: #{tpu_custom_call.1} parent=11 // pred_region
          _
        $region44: #{tpu_custom_call.1} parent=11 // pred_fallthru
          _
      $region12: #{tpu_custom_call.1} parent=5 // pred_fallthru
        _
      %p293 = scmp.lt.s32.totalorder %s18, 2
      // Predicated region
      $region45: #{tpu_custom_call.1} parent=5 // pred_check
        %p294 = pneg %p293
      $region46: #{tpu_custom_call.1} parent=5 // pred_check_branch
        %296 = sbr.rel (%p294) target = $region48
      $region47: #{tpu_custom_call.1} parent=5 // pred_region
        // Predicated region
        $region49: #{tpu_custom_call.1} parent=47 // pred_check
          %p297 = pneg %p52
        $region50: #{tpu_custom_call.1} parent=47 // pred_check_branch
          %299 = sbr.rel (%p297) target = $region52
        $region51: #{tpu_custom_call.1} parent=47 // pred_region
          %p300 = scmp.lt.s32.totalorder %s25, 1
          %s301 = scalar_select %p300, %s25, 1
          %p302 = scmp.lt.s32.totalorder %s26, 0
          %s303 = scalar_select %p302, %s26, 0
          %s304 = sadd.s32 %s303, %s301
          %s305 = smul.addr %s304, 8
          %s306 = scalar_lea.vmem %s0, %s305
        $region52: #{tpu_custom_call.1} parent=47 // pred_fallthru
          _
      $region48: #{tpu_custom_call.1} parent=5 // pred_fallthru
        _
      %p307 = scmp.le.s32.totalorder 1, %s18
      %p308 = scmp.lt.s32.totalorder %s18, 3
      %p309 = pnand %p307, %p308
      %p310 = pneg %p309
      // Predicated region
      $region53: #{tpu_custom_call.1} parent=5 // pred_check
        _
      $region54: #{tpu_custom_call.1} parent=5 // pred_check_branch
        %312 = sbr.rel (%p309) target = $region56
      $region55: #{tpu_custom_call.1} parent=5 // pred_region
        %s313 = ssub.s32 %s18, 1
        %p314 = scmp.lt.s32.totalorder %s27, 1
        %s315 = scalar_select %p314, %s27, 1
        %p316 = scmp.lt.s32.totalorder %s28, 0
        %s317 = scalar_select %p316, %s28, 0
        %s318 = sadd.s32 %s317, %s315
        %s319 = smul.addr %s318, 8
        %s320 = scalar_lea.vmem %s0, %s319
        %p321 = pneg %p58
        %p322 = pneg %p55
        %p323 = pneg %p79
        %p324 = pneg %p76
        %p325 = pneg %p100
        %p326 = pneg %p97
        %p327 = pneg %p121
        %p328 = pneg %p118
        %p329 = pneg %p142
        %p330 = pneg %p139
        %p331 = pneg %p163
        %p332 = pneg %p160
        %p333 = pneg %p184
        %p334 = pneg %p181
        %p335 = pneg %p205
        %p336 = pneg %p202
        %p337 = pneg %p226
        %p338 = pneg %p223
        %p339 = pneg %p254
        %p340 = pneg %p251
        %s341 = sand.u32 %s241, 1
        %s342 = scalar_lea.sflag [#allocation4], %s341
        %s343 = sand.u32 %s241, 1
        %s344 = smul.addr %s343, 8
        %s345 = scalar_lea.vmem [#allocation3], %s344
        %p346 = scmp.lt.s32.totalorder %s27, 1
        %s347 = scalar_select %p346, %s27, 1
        %p348 = scmp.lt.s32.totalorder %s28, 0
        %s349 = scalar_select %p348, %s28, 0
        %s350 = sadd.s32 %s349, %s347
        %s351 = smul.addr %s350, 8
        %s352 = scalar_lea.vmem %s0, %s351
        %p354 = scmp.eq.s32.totalorder %s28, 0
        // Predicated region
        $region57: #{tpu_custom_call.1} parent=55 // pred_check
          %p355 = pneg %p354
        $region58: #{tpu_custom_call.1} parent=55 // pred_check_branch
          %357 = sbr.rel (%p355) target = $region60
        $region59: #{tpu_custom_call.1} parent=55 // pred_region
          %vm358 = vcmask 253952
          %359 = vst.msk [vmem:[#allocation2] sm:$0x1] %vm358, 0.0
        $region60: #{tpu_custom_call.1} parent=55 // pred_fallthru
          _
        %v360 = vld [vmem:[%s352] sm:$0xff]
        %v361 = vpack.c.bf16 %v360, %v360
        %v362 = vlaneseq
        %v363 = vshrl.u32 %v362, 7
        %v364 = vlaneseq
        %v365 = vand.u32 %v364, 127
        %vm366 = vcmp.gt.s32.totalorder %v363, %v365
        %v367 = vsel %vm366, 1, 0
        %v368 = vcvt.s32.f32 %v367
        %v369 = vpack.c.bf16 %v368, %v368
        %v370 = vld [vmem:[#allocation2] sm:$0x1]
        %v372 = vlaneseq
        %v373 = vshrl.u32 %v372, 7
        %v374 = vsub.s32 0, %v373
        %v375 = vrot.slane %v370, %v374
        %vm377 = vcmask 64512
        %v379 = vsel %vm377, %v369, 0
        %vm381 = vcmask 1043456
        %v383 = vsel %vm381, %v361, 0
        %385 = vmatprep.subr.bf16.mxu0 0
        %386 = vmatpush1.bf16.msra.mxu0 0
        %387 = vmatprep.subr.bf16.mxu0 0
        %388 = vmatpush1.bf16.msra.mxu0 0
        %389 = vmatprep.subr.bf16.mxu0 0
        %390 = vmatpush1.bf16.msra.mxu0 0
        %391 = vmatprep.subr.bf16.mxu0 0
        %392 = vmatpush1.bf16.msra.mxu0 0
        %393 = vmatprep.subr.bf16.mxu0 0
        %394 = vmatpush1.bf16.msra.mxu0 0
        %395 = vmatprep.subr.bf16.mxu0 0
        %396 = vmatpush1.bf16.msra.mxu0 0
        %397 = vmatprep.subr.bf16.mxu0 0
        %398 = vmatpush1.bf16.msra.mxu0 0
        %399 = vmatprep.subr.bf16.mxu0 0
        %400 = vmatpush1.bf16.msra.mxu0 %v383
        %401 = vmatprep.subr.bf16.mxu0 0
        %402 = vmatpush2.bf16.msra.mxu0 0
        %403 = vmatprep.subr.bf16.mxu0 0
        %404 = vmatpush2.bf16.msra.mxu0 0
        %405 = vmatprep.subr.bf16.mxu0 0
        %406 = vmatpush2.bf16.msra.mxu0 0
        %407 = vmatprep.subr.bf16.mxu0 0
        %408 = vmatpush2.bf16.msra.mxu0 0
        %409 = vmatprep.subr.bf16.mxu0 0
        %410 = vmatpush2.bf16.msra.mxu0 0
        %411 = vmatprep.subr.bf16.mxu0 0
        %412 = vmatpush2.bf16.msra.mxu0 0
        %413 = vmatprep.subr.bf16.mxu0 0
        %414 = vmatpush2.bf16.msra.mxu0 0
        %415 = vmatprep.subr.bf16.mxu0 0
        %416 = vmatpush2.bf16.msra.mxu0 0
        %417 = vmatprep.mubr.bf16.mxu0 0
        %418 = vmatmul.mubr.bf16.gmra.mxu0 %v379
        %v419 = vpop.f32.mrf.mxu0
        %v420 = vadd.f32 %v375, %v419
        %v421 = vpop.f32.mrf.mxu0
        %v422 = vpop.f32.mrf.mxu0
        %v423 = vpop.f32.mrf.mxu0
        %424 = vdwg.mxu0
        %vm425 = vcmask 261120
        %v426 = vsel %vm425, %v360, 0.0
        %v427 = vrot.slane %v426, 4
        %v428 = vadd.f32 %v426, %v427
        %v429 = vrot.slane %v428, 2
        %v430 = vadd.f32 %v428, %v429
        %v431 = vrot.slane %v430, 1
        %v432 = vadd.f32 %v430, %v431
        %v433 = vadd.f32 %v370, %v432
        %vm434 = vcmask 253952
        %435 = vst.msk [vmem:[#allocation2] sm:$0x1] %vm434, %v433
        %v436 = vpack.c.bf16 %v420, %v420
        %v437 = vld [vmem:[%s6] sm:$0xf]
        %v438 = vld [vmem:[%s6 + $0x4] sm:$0xf]
        %v439 = vld [vmem:[%s6 + $0x8] sm:$0xf]
        %v440 = vld [vmem:[%s6 + $0xc] sm:$0xf]
        %v445 = vunpack.c.l.b16 %v437
        %v446 = vunpack.c.l.b16 %v438
        %v447 = vunpack.c.l.b16 %v439
        %v448 = vunpack.c.l.b16 %v440
        %v449 = vpack.c.b16 %v446, %v445
        %v450 = vpack.c.b16 %v448, %v447
        %v454 = vsel %vm425, %v436, 0
        %456 = vmatprep.subr.bf16.mxu0 0
        %457 = vmatpush1.bf16.msra.mxu0 0
        %458 = vmatprep.subr.bf16.mxu0 0
        %459 = vmatpush1.bf16.msra.mxu0 0
        %460 = vmatprep.subr.bf16.mxu0 0
        %461 = vmatpush1.bf16.msra.mxu0 0
        %462 = vmatprep.subr.bf16.mxu0 0
        %463 = vmatpush1.bf16.msra.mxu0 0
        %464 = vmatprep.subr.bf16.mxu0 0
        %465 = vmatpush1.bf16.msra.mxu0 0
        %466 = vmatprep.subr.bf16.mxu0 0
        %467 = vmatpush1.bf16.msra.mxu0 0
        %468 = vmatprep.subr.bf16.mxu0 0
        %469 = vmatpush1.bf16.msra.mxu0 %v450
        %470 = vmatprep.subr.bf16.mxu0 0
        %471 = vmatpush1.bf16.msra.mxu0 %v449
        %472 = vmatprep.subr.bf16.mxu0 0
        %473 = vmatpush2.bf16.msra.mxu0 0
        %474 = vmatprep.subr.bf16.mxu0 0
        %475 = vmatpush2.bf16.msra.mxu0 0
        %476 = vmatprep.subr.bf16.mxu0 0
        %477 = vmatpush2.bf16.msra.mxu0 0
        %478 = vmatprep.subr.bf16.mxu0 0
        %479 = vmatpush2.bf16.msra.mxu0 0
        %480 = vmatprep.subr.bf16.mxu0 0
        %481 = vmatpush2.bf16.msra.mxu0 0
        %482 = vmatprep.subr.bf16.mxu0 0
        %483 = vmatpush2.bf16.msra.mxu0 0
        %484 = vmatprep.subr.bf16.mxu0 0
        %485 = vmatpush2.bf16.msra.mxu0 0
        %486 = vmatprep.subr.bf16.mxu0 0
        %487 = vmatpush2.bf16.msra.mxu0 0
        %488 = vmatprep.mubr.bf16.mxu0 0
        %489 = vmatmul.mubr.bf16.gmra.mxu0 %v454
        %v490 = vpop.f32.mrf.mxu0
        %v491 = vadd.f32 0.0, %v490
        %v492 = vpop.f32.mrf.mxu0
        %v493 = vpop.f32.mrf.mxu0
        %v494 = vpop.f32.mrf.mxu0
        %495 = vdwg.mxu0
        %v496 = vld [vmem:[%s1] sm:$0xf]
        %v497 = vld [vmem:[%s1 + $0x4] sm:$0xf]
        %v498 = vld [vmem:[%s1 + $0x8] sm:$0xf]
        %v499 = vld [vmem:[%s1 + $0xc] sm:$0xf]
        %v500 = vld [vmem:[%s2] sm:$0xf]
        %v501 = vld [vmem:[%s2 + $0x4] sm:$0xf]
        %v502 = vld [vmem:[%s2 + $0x8] sm:$0xf]
        %v503 = vld [vmem:[%s2 + $0xc] sm:$0xf]
        %v508 = vunpack.c.l.b16 %v500
        %v509 = vunpack.c.l.b16 %v501
        %v510 = vunpack.c.l.b16 %v502
        %v511 = vunpack.c.l.b16 %v503
        %v512 = vpack.c.b16 %v509, %v508
        %v513 = vpack.c.b16 %v511, %v510
        %v516 = vsel %vm425, %v361, 0
        %518 = vmatprep.subr.bf16.mxu0 0
        %519 = vmatpush1.bf16.msra.mxu0 0
        %520 = vmatprep.subr.bf16.mxu0 0
        %521 = vmatpush1.bf16.msra.mxu0 0
        %522 = vmatprep.subr.bf16.mxu0 0
        %523 = vmatpush1.bf16.msra.mxu0 0
        %524 = vmatprep.subr.bf16.mxu0 0
        %525 = vmatpush1.bf16.msra.mxu0 0
        %526 = vmatprep.subr.bf16.mxu0 0
        %527 = vmatpush1.bf16.msra.mxu0 0
        %528 = vmatprep.subr.bf16.mxu0 0
        %529 = vmatpush1.bf16.msra.mxu0 0
        %530 = vmatprep.subr.bf16.mxu0 0
        %531 = vmatpush1.bf16.msra.mxu0 %v513
        %532 = vmatprep.subr.bf16.mxu0 0
        %533 = vmatpush1.bf16.msra.mxu0 %v512
        %534 = vmatprep.subr.bf16.mxu0 0
        %535 = vmatpush2.bf16.msra.mxu0 0
        %536 = vmatprep.subr.bf16.mxu0 0
        %537 = vmatpush2.bf16.msra.mxu0 0
        %538 = vmatprep.subr.bf16.mxu0 0
        %539 = vmatpush2.bf16.msra.mxu0 0
        %540 = vmatprep.subr.bf16.mxu0 0
        %541 = vmatpush2.bf16.msra.mxu0 0
        %542 = vmatprep.subr.bf16.mxu0 0
        %543 = vmatpush2.bf16.msra.mxu0 0
        %544 = vmatprep.subr.bf16.mxu0 0
        %545 = vmatpush2.bf16.msra.mxu0 0
        %546 = vmatprep.subr.bf16.mxu0 0
        %547 = vmatpush2.bf16.msra.mxu0 0
        %548 = vmatprep.subr.bf16.mxu0 0
        %549 = vmatpush2.bf16.msra.mxu0 0
        %550 = vmatprep.mubr.bf16.mxu0 0
        %551 = vmatmul.mubr.bf16.gmra.mxu0 %v516
        %v552 = vpop.f32.mrf.mxu0
        %v553 = vadd.f32 0.0, %v552
        %v554 = vpop.f32.mrf.mxu0
        %v555 = vpop.f32.mrf.mxu0
        %v556 = vpop.f32.mrf.mxu0
        %557 = vdwg.mxu0
        %v562 = vunpack.c.l.b16 %v496
        %v563 = vunpack.c.l.b16 %v497
        %v564 = vunpack.c.l.b16 %v498
        %v565 = vunpack.c.l.b16 %v499
        %v566 = vpack.c.b16 %v563, %v562
        %v567 = vpack.c.b16 %v565, %v564
        %570 = vmatprep.subr.bf16.mxu0 0
        %571 = vmatpush1.bf16.msra.mxu0 0
        %572 = vmatprep.subr.bf16.mxu0 0
        %573 = vmatpush1.bf16.msra.mxu0 0
        %574 = vmatprep.subr.bf16.mxu0 0
        %575 = vmatpush1.bf16.msra.mxu0 0
        %576 = vmatprep.subr.bf16.mxu0 0
        %577 = vmatpush1.bf16.msra.mxu0 0
        %578 = vmatprep.subr.bf16.mxu0 0
        %579 = vmatpush1.bf16.msra.mxu0 0
        %580 = vmatprep.subr.bf16.mxu0 0
        %581 = vmatpush1.bf16.msra.mxu0 0
        %582 = vmatprep.subr.bf16.mxu0 0
        %583 = vmatpush1.bf16.msra.mxu0 %v567
        %584 = vmatprep.subr.bf16.mxu0 0
        %585 = vmatpush1.bf16.msra.mxu0 %v566
        %586 = vmatprep.subr.bf16.mxu0 0
        %587 = vmatpush2.bf16.msra.mxu0 0
        %588 = vmatprep.subr.bf16.mxu0 0
        %589 = vmatpush2.bf16.msra.mxu0 0
        %590 = vmatprep.subr.bf16.mxu0 0
        %591 = vmatpush2.bf16.msra.mxu0 0
        %592 = vmatprep.subr.bf16.mxu0 0
        %593 = vmatpush2.bf16.msra.mxu0 0
        %594 = vmatprep.subr.bf16.mxu0 0
        %595 = vmatpush2.bf16.msra.mxu0 0
        %596 = vmatprep.subr.bf16.mxu0 0
        %597 = vmatpush2.bf16.msra.mxu0 0
        %598 = vmatprep.subr.bf16.mxu0 0
        %599 = vmatpush2.bf16.msra.mxu0 0
        %600 = vmatprep.subr.bf16.mxu0 0
        %601 = vmatpush2.bf16.msra.mxu0 0
        %602 = vmatprep.mubr.bf16.mxu0 0
        %603 = vmatmul.mubr.bf16.gmra.mxu0 %v454
        %v604 = vpop.f32.mrf.mxu0
        %v605 = vadd.f32 %v553, %v604
        %v606 = vpop.f32.mrf.mxu0
        %v607 = vpop.f32.mrf.mxu0
        %v608 = vpop.f32.mrf.mxu0
        %609 = vdwg.mxu0
        %v610 = vld [vmem:[%s3] sm:$0x1]
        %v612 = vlaneseq
        %v613 = vshrl.u32 %v612, 7
        %v614 = vsub.s32 0, %v613
        %v615 = vrot.slane %v610, %v614
        %v617 = vadd.f32 %v605, %v615
        %vm618 = vcmp.ge.f32.partialorder %v617, 0.0
        %v619 = vmul.f32 %v617, 0.01
        %v620 = vsel %vm618, %v617, %v619
        %v621 = vpack.c.bf16 %v620, %v620
        %v622 = vld [vmem:[%s4] sm:$0xf]
        %v623 = vld [vmem:[%s4 + $0x4] sm:$0xf]
        %v624 = vld [vmem:[%s4 + $0x8] sm:$0xf]
        %v625 = vld [vmem:[%s4 + $0xc] sm:$0xf]
        %v626 = vld [vmem:[%s4 + $0x10] sm:$0xf]
        %v627 = vld [vmem:[%s4 + $0x14] sm:$0xf]
        %v628 = vld [vmem:[%s4 + $0x18] sm:$0xf]
        %v629 = vld [vmem:[%s4 + $0x1c] sm:$0xf]
        %v630 = vld [vmem:[%s4 + $0x20] sm:$0xf]
        %v631 = vld [vmem:[%s4 + $0x24] sm:$0xf]
        %v632 = vld [vmem:[%s4 + $0x28] sm:$0xf]
        %v633 = vld [vmem:[%s4 + $0x2c] sm:$0xf]
        %v634 = vld [vmem:[%s4 + $0x30] sm:$0xf]
        %v635 = vld [vmem:[%s4 + $0x34] sm:$0xf]
        %v636 = vld [vmem:[%s4 + $0x38] sm:$0xf]
        %v637 = vld [vmem:[%s4 + $0x3c] sm:$0xf]
        %v638 = vld [vmem:[%s5] sm:$0x1]
        %v640 = vlaneseq
        %v641 = vshrl.u32 %v640, 7
        %v642 = vsub.s32 0, %v641
        %v643 = vrot.slane %v638, %v642
        %v661 = vunpack.c.l.b16 %v622
        %v662 = vunpack.c.l.b16 %v623
        %v663 = vunpack.c.l.b16 %v624
        %v664 = vunpack.c.l.b16 %v625
        %v665 = vunpack.c.l.b16 %v626
        %v666 = vunpack.c.l.b16 %v627
        %v667 = vunpack.c.l.b16 %v628
        %v668 = vunpack.c.l.b16 %v629
        %v669 = vunpack.c.l.b16 %v630
        %v670 = vunpack.c.l.b16 %v631
        %v671 = vunpack.c.l.b16 %v632
        %v672 = vunpack.c.l.b16 %v633
        %v673 = vunpack.c.l.b16 %v634
        %v674 = vunpack.c.l.b16 %v635
        %v675 = vunpack.c.l.b16 %v636
        %v676 = vunpack.c.l.b16 %v637
        %v677 = vpack.c.b16 %v662, %v661
        %v678 = vpack.c.b16 %v664, %v663
        %v679 = vpack.c.b16 %v666, %v665
        %v680 = vpack.c.b16 %v668, %v667
        %v681 = vpack.c.b16 %v670, %v669
        %v682 = vpack.c.b16 %v672, %v671
        %v683 = vpack.c.b16 %v674, %v673
        %v684 = vpack.c.b16 %v676, %v675
        %693 = vmatprep.subr.bf16.mxu0 0
        %694 = vmatpush1.bf16.msra.mxu0 %v684
        %695 = vmatprep.subr.bf16.mxu0 0
        %696 = vmatpush1.bf16.msra.mxu0 %v683
        %697 = vmatprep.subr.bf16.mxu0 0
        %698 = vmatpush1.bf16.msra.mxu0 %v682
        %699 = vmatprep.subr.bf16.mxu0 0
        %700 = vmatpush1.bf16.msra.mxu0 %v681
        %701 = vmatprep.subr.bf16.mxu0 0
        %702 = vmatpush1.bf16.msra.mxu0 %v680
        %703 = vmatprep.subr.bf16.mxu0 0
        %704 = vmatpush1.bf16.msra.mxu0 %v679
        %705 = vmatprep.subr.bf16.mxu0 0
        %706 = vmatpush1.bf16.msra.mxu0 %v678
        %707 = vmatprep.subr.bf16.mxu0 0
        %708 = vmatpush1.bf16.msra.mxu0 %v677
        %709 = vmatprep.subr.bf16.mxu0 0
        %710 = vmatpush2.bf16.msra.mxu0 0
        %711 = vmatprep.subr.bf16.mxu0 0
        %712 = vmatpush2.bf16.msra.mxu0 0
        %713 = vmatprep.subr.bf16.mxu0 0
        %714 = vmatpush2.bf16.msra.mxu0 0
        %715 = vmatprep.subr.bf16.mxu0 0
        %716 = vmatpush2.bf16.msra.mxu0 0
        %717 = vmatprep.subr.bf16.mxu0 0
        %718 = vmatpush2.bf16.msra.mxu0 0
        %719 = vmatprep.subr.bf16.mxu0 0
        %720 = vmatpush2.bf16.msra.mxu0 0
        %721 = vmatprep.subr.bf16.mxu0 0
        %722 = vmatpush2.bf16.msra.mxu0 0
        %723 = vmatprep.subr.bf16.mxu0 0
        %724 = vmatpush2.bf16.msra.mxu0 0
        %725 = vmatprep.mubr.bf16.mxu0 0
        %726 = vmatmul.mubr.bf16.gmra.mxu0 %v621
        %v727 = vpop.f32.mrf.mxu0
        %v728 = vadd.f32 %v643, %v727
        %v729 = vpop.f32.mrf.mxu0
        %v730 = vpop.f32.mrf.mxu0
        %v731 = vpop.f32.mrf.mxu0
        %732 = vdwg.mxu0
        %v733 = vpack.c.bf16 %v728, %v728
        %v735 = vsel %vm425, %v733, 0
        %737 = vmatprep.subr.bf16.mxu0 0
        %738 = vmatpush1.bf16.msra.mxu0 0
        %739 = vmatprep.subr.bf16.mxu0 0
        %740 = vmatpush1.bf16.msra.mxu0 0
        %741 = vmatprep.subr.bf16.mxu0 0
        %742 = vmatpush1.bf16.msra.mxu0 0
        %743 = vmatprep.subr.bf16.mxu0 0
        %744 = vmatpush1.bf16.msra.mxu0 0
        %745 = vmatprep.subr.bf16.mxu0 0
        %746 = vmatpush1.bf16.msra.mxu0 0
        %747 = vmatprep.subr.bf16.mxu0 0
        %748 = vmatpush1.bf16.msra.mxu0 0
        %749 = vmatprep.subr.bf16.mxu0 0
        %750 = vmatpush1.bf16.msra.mxu0 %v450
        %751 = vmatprep.subr.bf16.mxu0 0
        %752 = vmatpush1.bf16.msra.mxu0 %v449
        %753 = vmatprep.subr.bf16.mxu0 0
        %754 = vmatpush2.bf16.msra.mxu0 0
        %755 = vmatprep.subr.bf16.mxu0 0
        %756 = vmatpush2.bf16.msra.mxu0 0
        %757 = vmatprep.subr.bf16.mxu0 0
        %758 = vmatpush2.bf16.msra.mxu0 0
        %759 = vmatprep.subr.bf16.mxu0 0
        %760 = vmatpush2.bf16.msra.mxu0 0
        %761 = vmatprep.subr.bf16.mxu0 0
        %762 = vmatpush2.bf16.msra.mxu0 0
        %763 = vmatprep.subr.bf16.mxu0 0
        %764 = vmatpush2.bf16.msra.mxu0 0
        %765 = vmatprep.subr.bf16.mxu0 0
        %766 = vmatpush2.bf16.msra.mxu0 0
        %767 = vmatprep.subr.bf16.mxu0 0
        %768 = vmatpush2.bf16.msra.mxu0 0
        %769 = vmatprep.mubr.bf16.mxu0 0
        %770 = vmatmul.mubr.bf16.gmra.mxu0 %v735
        %v771 = vpop.f32.mrf.mxu0
        %v772 = vadd.f32 0.0, %v771
        %v773 = vpop.f32.mrf.mxu0
        %v774 = vpop.f32.mrf.mxu0
        %v775 = vpop.f32.mrf.mxu0
        %776 = vdwg.mxu0
        %v777 = vmul.f32 %v772, %v772
        %779 = vrot.lane.b32.xlu0 %v777, 96
        %v780 = vpop.permute.xlu0 %779
        %v782 = vadd.f32 %v777, %v780
        %v783 = vadd.f32 %v782, 1e-12
        %v784 = vrsqrt.pop %v783
        %v785 = vmul.f32 %v772, %v784
        %787 = vrot.lane.b32.xlu0 %v784, 32
        %v788 = vpop.permute.xlu0 %787
        %v790 = vmul.f32 %v772, %v788
        %s791 = scalar_lea.vmem %s1, 16
        %v792 = vld [vmem:[%s791] sm:$0xf]
        %v793 = vld [vmem:[%s791 + $0x4] sm:$0xf]
        %v794 = vld [vmem:[%s791 + $0x8] sm:$0xf]
        %v795 = vld [vmem:[%s791 + $0xc] sm:$0xf]
        %s796 = scalar_lea.vmem %s2, 16
        %v797 = vld [vmem:[%s796] sm:$0xf]
        %v798 = vld [vmem:[%s796 + $0x4] sm:$0xf]
        %v799 = vld [vmem:[%s796 + $0x8] sm:$0xf]
        %v800 = vld [vmem:[%s796 + $0xc] sm:$0xf]
        %v805 = vunpack.c.l.b16 %v797
        %v806 = vunpack.c.l.b16 %v798
        %v807 = vunpack.c.l.b16 %v799
        %v808 = vunpack.c.l.b16 %v800
        %v809 = vpack.c.b16 %v806, %v805
        %v810 = vpack.c.b16 %v808, %v807
        %813 = vmatprep.subr.bf16.mxu0 0
        %814 = vmatpush1.bf16.msra.mxu0 0
        %815 = vmatprep.subr.bf16.mxu0 0
        %816 = vmatpush1.bf16.msra.mxu0 0
        %817 = vmatprep.subr.bf16.mxu0 0
        %818 = vmatpush1.bf16.msra.mxu0 0
        %819 = vmatprep.subr.bf16.mxu0 0
        %820 = vmatpush1.bf16.msra.mxu0 0
        %821 = vmatprep.subr.bf16.mxu0 0
        %822 = vmatpush1.bf16.msra.mxu0 0
        %823 = vmatprep.subr.bf16.mxu0 0
        %824 = vmatpush1.bf16.msra.mxu0 0
        %825 = vmatprep.subr.bf16.mxu0 0
        %826 = vmatpush1.bf16.msra.mxu0 %v810
        %827 = vmatprep.subr.bf16.mxu0 0
        %828 = vmatpush1.bf16.msra.mxu0 %v809
        %829 = vmatprep.subr.bf16.mxu0 0
        %830 = vmatpush2.bf16.msra.mxu0 0
        %831 = vmatprep.subr.bf16.mxu0 0
        %832 = vmatpush2.bf16.msra.mxu0 0
        %833 = vmatprep.subr.bf16.mxu0 0
        %834 = vmatpush2.bf16.msra.mxu0 0
        %835 = vmatprep.subr.bf16.mxu0 0
        %836 = vmatpush2.bf16.msra.mxu0 0
        %837 = vmatprep.subr.bf16.mxu0 0
        %838 = vmatpush2.bf16.msra.mxu0 0
        %839 = vmatprep.subr.bf16.mxu0 0
        %840 = vmatpush2.bf16.msra.mxu0 0
        %841 = vmatprep.subr.bf16.mxu0 0
        %842 = vmatpush2.bf16.msra.mxu0 0
        %843 = vmatprep.subr.bf16.mxu0 0
        %844 = vmatpush2.bf16.msra.mxu0 0
        %845 = vmatprep.mubr.bf16.mxu0 0
        %846 = vmatmul.mubr.bf16.gmra.mxu0 %v516
        %v847 = vpop.f32.mrf.mxu0
        %v848 = vadd.f32 0.0, %v847
        %v849 = vpop.f32.mrf.mxu0
        %v850 = vpop.f32.mrf.mxu0
        %v851 = vpop.f32.mrf.mxu0
        %852 = vdwg.mxu0
        %v857 = vunpack.c.l.b16 %v792
        %v858 = vunpack.c.l.b16 %v793
        %v859 = vunpack.c.l.b16 %v794
        %v860 = vunpack.c.l.b16 %v795
        %v861 = vpack.c.b16 %v858, %v857
        %v862 = vpack.c.b16 %v860, %v859
        %865 = vmatprep.subr.bf16.mxu0 0
        %866 = vmatpush1.bf16.msra.mxu0 0
        %867 = vmatprep.subr.bf16.mxu0 0
        %868 = vmatpush1.bf16.msra.mxu0 0
        %869 = vmatprep.subr.bf16.mxu0 0
        %870 = vmatpush1.bf16.msra.mxu0 0
        %871 = vmatprep.subr.bf16.mxu0 0
        %872 = vmatpush1.bf16.msra.mxu0 0
        %873 = vmatprep.subr.bf16.mxu0 0
        %874 = vmatpush1.bf16.msra.mxu0 0
        %875 = vmatprep.subr.bf16.mxu0 0
        %876 = vmatpush1.bf16.msra.mxu0 0
        %877 = vmatprep.subr.bf16.mxu0 0
        %878 = vmatpush1.bf16.msra.mxu0 %v862
        %879 = vmatprep.subr.bf16.mxu0 0
        %880 = vmatpush1.bf16.msra.mxu0 %v861
        %881 = vmatprep.subr.bf16.mxu0 0
        %882 = vmatpush2.bf16.msra.mxu0 0
        %883 = vmatprep.subr.bf16.mxu0 0
        %884 = vmatpush2.bf16.msra.mxu0 0
        %885 = vmatprep.subr.bf16.mxu0 0
        %886 = vmatpush2.bf16.msra.mxu0 0
        %887 = vmatprep.subr.bf16.mxu0 0
        %888 = vmatpush2.bf16.msra.mxu0 0
        %889 = vmatprep.subr.bf16.mxu0 0
        %890 = vmatpush2.bf16.msra.mxu0 0
        %891 = vmatprep.subr.bf16.mxu0 0
        %892 = vmatpush2.bf16.msra.mxu0 0
        %893 = vmatprep.subr.bf16.mxu0 0
        %894 = vmatpush2.bf16.msra.mxu0 0
        %895 = vmatprep.subr.bf16.mxu0 0
        %896 = vmatpush2.bf16.msra.mxu0 0
        %897 = vmatprep.mubr.bf16.mxu0 0
        %898 = vmatmul.mubr.bf16.gmra.mxu0 %v454
        %v899 = vpop.f32.mrf.mxu0
        %v900 = vadd.f32 %v848, %v899
        %v901 = vpop.f32.mrf.mxu0
        %v902 = vpop.f32.mrf.mxu0
        %v903 = vpop.f32.mrf.mxu0
        %904 = vdwg.mxu0
        %s905 = scalar_lea.vmem %s3, 1
        %v906 = vld [vmem:[%s905] sm:$0x1]
        %v908 = vlaneseq
        %v909 = vshrl.u32 %v908, 7
        %v910 = vsub.s32 0, %v909
        %v911 = vrot.slane %v906, %v910
        %v913 = vadd.f32 %v900, %v911
        %vm914 = vcmp.ge.f32.partialorder %v913, 0.0
        %v915 = vmul.f32 %v913, 0.01
        %v916 = vsel %vm914, %v913, %v915
        %v917 = vpack.c.bf16 %v916, %v916
        %s918 = scalar_lea.vmem %s4, 64
        %v919 = vld [vmem:[%s918] sm:$0xf]
        %v920 = vld [vmem:[%s918 + $0x4] sm:$0xf]
        %v921 = vld [vmem:[%s918 + $0x8] sm:$0xf]
        %v922 = vld [vmem:[%s918 + $0xc] sm:$0xf]
        %v923 = vld [vmem:[%s918 + $0x10] sm:$0xf]
        %v924 = vld [vmem:[%s918 + $0x14] sm:$0xf]
        %v925 = vld [vmem:[%s918 + $0x18] sm:$0xf]
        %v926 = vld [vmem:[%s918 + $0x1c] sm:$0xf]
        %v927 = vld [vmem:[%s918 + $0x20] sm:$0xf]
        %v928 = vld [vmem:[%s918 + $0x24] sm:$0xf]
        %v929 = vld [vmem:[%s918 + $0x28] sm:$0xf]
        %v930 = vld [vmem:[%s918 + $0x2c] sm:$0xf]
        %v931 = vld [vmem:[%s918 + $0x30] sm:$0xf]
        %v932 = vld [vmem:[%s918 + $0x34] sm:$0xf]
        %v933 = vld [vmem:[%s918 + $0x38] sm:$0xf]
        %v934 = vld [vmem:[%s918 + $0x3c] sm:$0xf]
        %s935 = scalar_lea.vmem %s5, 1
        %v936 = vld [vmem:[%s935] sm:$0x1]
        %v938 = vlaneseq
        %v939 = vshrl.u32 %v938, 7
        %v940 = vsub.s32 0, %v939
        %v941 = vrot.slane %v936, %v940
        %v959 = vunpack.c.l.b16 %v919
        %v960 = vunpack.c.l.b16 %v920
        %v961 = vunpack.c.l.b16 %v921
        %v962 = vunpack.c.l.b16 %v922
        %v963 = vunpack.c.l.b16 %v923
        %v964 = vunpack.c.l.b16 %v924
        %v965 = vunpack.c.l.b16 %v925
        %v966 = vunpack.c.l.b16 %v926
        %v967 = vunpack.c.l.b16 %v927
        %v968 = vunpack.c.l.b16 %v928
        %v969 = vunpack.c.l.b16 %v929
        %v970 = vunpack.c.l.b16 %v930
        %v971 = vunpack.c.l.b16 %v931
        %v972 = vunpack.c.l.b16 %v932
        %v973 = vunpack.c.l.b16 %v933
        %v974 = vunpack.c.l.b16 %v934
        %v975 = vpack.c.b16 %v960, %v959
        %v976 = vpack.c.b16 %v962, %v961
        %v977 = vpack.c.b16 %v964, %v963
        %v978 = vpack.c.b16 %v966, %v965
        %v979 = vpack.c.b16 %v968, %v967
        %v980 = vpack.c.b16 %v970, %v969
        %v981 = vpack.c.b16 %v972, %v971
        %v982 = vpack.c.b16 %v974, %v973
        %991 = vmatprep.subr.bf16.mxu0 0
        %992 = vmatpush1.bf16.msra.mxu0 %v982
        %993 = vmatprep.subr.bf16.mxu0 0
        %994 = vmatpush1.bf16.msra.mxu0 %v981
        %995 = vmatprep.subr.bf16.mxu0 0
        %996 = vmatpush1.bf16.msra.mxu0 %v980
        %997 = vmatprep.subr.bf16.mxu0 0
        %998 = vmatpush1.bf16.msra.mxu0 %v979
        %999 = vmatprep.subr.bf16.mxu0 0
        %1000 = vmatpush1.bf16.msra.mxu0 %v978
        %1001 = vmatprep.subr.bf16.mxu0 0
        %1002 = vmatpush1.bf16.msra.mxu0 %v977
        %1003 = vmatprep.subr.bf16.mxu0 0
        %1004 = vmatpush1.bf16.msra.mxu0 %v976
        %1005 = vmatprep.subr.bf16.mxu0 0
        %1006 = vmatpush1.bf16.msra.mxu0 %v975
        %1007 = vmatprep.subr.bf16.mxu0 0
        %1008 = vmatpush2.bf16.msra.mxu0 0
        %1009 = vmatprep.subr.bf16.mxu0 0
        %1010 = vmatpush2.bf16.msra.mxu0 0
        %1011 = vmatprep.subr.bf16.mxu0 0
        %1012 = vmatpush2.bf16.msra.mxu0 0
        %1013 = vmatprep.subr.bf16.mxu0 0
        %1014 = vmatpush2.bf16.msra.mxu0 0
        %1015 = vmatprep.subr.bf16.mxu0 0
        %1016 = vmatpush2.bf16.msra.mxu0 0
        %1017 = vmatprep.subr.bf16.mxu0 0
        %1018 = vmatpush2.bf16.msra.mxu0 0
        %1019 = vmatprep.subr.bf16.mxu0 0
        %1020 = vmatpush2.bf16.msra.mxu0 0
        %1021 = vmatprep.subr.bf16.mxu0 0
        %1022 = vmatpush2.bf16.msra.mxu0 0
        %1023 = vmatprep.mubr.bf16.mxu0 0
        %1024 = vmatmul.mubr.bf16.gmra.mxu0 %v917
        %v1025 = vpop.f32.mrf.mxu0
        %v1026 = vadd.f32 %v941, %v1025
        %v1027 = vpop.f32.mrf.mxu0
        %v1028 = vpop.f32.mrf.mxu0
        %v1029 = vpop.f32.mrf.mxu0
        %1030 = vdwg.mxu0
        %v1031 = vpack.c.bf16 %v1026, %v1026
        %v1033 = vsel %vm425, %v1031, 0
        %1035 = vmatprep.subr.bf16.mxu0 0
        %1036 = vmatpush1.bf16.msra.mxu0 0
        %1037 = vmatprep.subr.bf16.mxu0 0
        %1038 = vmatpush1.bf16.msra.mxu0 0
        %1039 = vmatprep.subr.bf16.mxu0 0
        %1040 = vmatpush1.bf16.msra.mxu0 0
        %1041 = vmatprep.subr.bf16.mxu0 0
        %1042 = vmatpush1.bf16.msra.mxu0 0
        %1043 = vmatprep.subr.bf16.mxu0 0
        %1044 = vmatpush1.bf16.msra.mxu0 0
        %1045 = vmatprep.subr.bf16.mxu0 0
        %1046 = vmatpush1.bf16.msra.mxu0 0
        %1047 = vmatprep.subr.bf16.mxu0 0
        %1048 = vmatpush1.bf16.msra.mxu0 %v450
        %1049 = vmatprep.subr.bf16.mxu0 0
        %1050 = vmatpush1.bf16.msra.mxu0 %v449
        %1051 = vmatprep.subr.bf16.mxu0 0
        %1052 = vmatpush2.bf16.msra.mxu0 0
        %1053 = vmatprep.subr.bf16.mxu0 0
        %1054 = vmatpush2.bf16.msra.mxu0 0
        %1055 = vmatprep.subr.bf16.mxu0 0
        %1056 = vmatpush2.bf16.msra.mxu0 0
        %1057 = vmatprep.subr.bf16.mxu0 0
        %1058 = vmatpush2.bf16.msra.mxu0 0
        %1059 = vmatprep.subr.bf16.mxu0 0
        %1060 = vmatpush2.bf16.msra.mxu0 0
        %1061 = vmatprep.subr.bf16.mxu0 0
        %1062 = vmatpush2.bf16.msra.mxu0 0
        %1063 = vmatprep.subr.bf16.mxu0 0
        %1064 = vmatpush2.bf16.msra.mxu0 0
        %1065 = vmatprep.subr.bf16.mxu0 0
        %1066 = vmatpush2.bf16.msra.mxu0 0
        %1067 = vmatprep.mubr.bf16.mxu0 0
        %1068 = vmatmul.mubr.bf16.gmra.mxu0 %v1033
        %v1069 = vpop.f32.mrf.mxu0
        %v1070 = vadd.f32 0.0, %v1069
        %v1071 = vpop.f32.mrf.mxu0
        %v1072 = vpop.f32.mrf.mxu0
        %v1073 = vpop.f32.mrf.mxu0
        %1074 = vdwg.mxu0
        %v1075 = vmul.f32 %v1070, %v1070
        %1077 = vrot.lane.b32.xlu0 %v1075, 96
        %v1078 = vpop.permute.xlu0 %1077
        %v1080 = vadd.f32 %v1075, %v1078
        %v1081 = vadd.f32 %v1080, 1e-12
        %v1082 = vrsqrt.pop %v1081
        %v1083 = vmul.f32 %v1070, %v1082
        %1085 = vrot.lane.b32.xlu0 %v1082, 32
        %v1086 = vpop.permute.xlu0 %1085
        %v1088 = vmul.f32 %v1070, %v1086
        %s1089 = scalar_lea.vmem %s1, 32
        %v1090 = vld [vmem:[%s1089] sm:$0xf]
        %v1091 = vld [vmem:[%s1089 + $0x4] sm:$0xf]
        %v1092 = vld [vmem:[%s1089 + $0x8] sm:$0xf]
        %v1093 = vld [vmem:[%s1089 + $0xc] sm:$0xf]
        %s1094 = scalar_lea.vmem %s2, 32
        %v1095 = vld [vmem:[%s1094] sm:$0xf]
        %v1096 = vld [vmem:[%s1094 + $0x4] sm:$0xf]
        %v1097 = vld [vmem:[%s1094 + $0x8] sm:$0xf]
        %v1098 = vld [vmem:[%s1094 + $0xc] sm:$0xf]
        %v1103 = vunpack.c.l.b16 %v1095
        %v1104 = vunpack.c.l.b16 %v1096
        %v1105 = vunpack.c.l.b16 %v1097
        %v1106 = vunpack.c.l.b16 %v1098
        %v1107 = vpack.c.b16 %v1104, %v1103
        %v1108 = vpack.c.b16 %v1106, %v1105
        %1111 = vmatprep.subr.bf16.mxu0 0
        %1112 = vmatpush1.bf16.msra.mxu0 0
        %1113 = vmatprep.subr.bf16.mxu0 0
        %1114 = vmatpush1.bf16.msra.mxu0 0
        %1115 = vmatprep.subr.bf16.mxu0 0
        %1116 = vmatpush1.bf16.msra.mxu0 0
        %1117 = vmatprep.subr.bf16.mxu0 0
        %1118 = vmatpush1.bf16.msra.mxu0 0
        %1119 = vmatprep.subr.bf16.mxu0 0
        %1120 = vmatpush1.bf16.msra.mxu0 0
        %1121 = vmatprep.subr.bf16.mxu0 0
        %1122 = vmatpush1.bf16.msra.mxu0 0
        %1123 = vmatprep.subr.bf16.mxu0 0
        %1124 = vmatpush1.bf16.msra.mxu0 %v1108
        %1125 = vmatprep.subr.bf16.mxu0 0
        %1126 = vmatpush1.bf16.msra.mxu0 %v1107
        %1127 = vmatprep.subr.bf16.mxu0 0
        %1128 = vmatpush2.bf16.msra.mxu0 0
        %1129 = vmatprep.subr.bf16.mxu0 0
        %1130 = vmatpush2.bf16.msra.mxu0 0
        %1131 = vmatprep.subr.bf16.mxu0 0
        %1132 = vmatpush2.bf16.msra.mxu0 0
        %1133 = vmatprep.subr.bf16.mxu0 0
        %1134 = vmatpush2.bf16.msra.mxu0 0
        %1135 = vmatprep.subr.bf16.mxu0 0
        %1136 = vmatpush2.bf16.msra.mxu0 0
        %1137 = vmatprep.subr.bf16.mxu0 0
        %1138 = vmatpush2.bf16.msra.mxu0 0
        %1139 = vmatprep.subr.bf16.mxu0 0
        %1140 = vmatpush2.bf16.msra.mxu0 0
        %1141 = vmatprep.subr.bf16.mxu0 0
        %1142 = vmatpush2.bf16.msra.mxu0 0
        %1143 = vmatprep.mubr.bf16.mxu0 0
        %1144 = vmatmul.mubr.bf16.gmra.mxu0 %v516
        %v1145 = vpop.f32.mrf.mxu0
        %v1146 = vadd.f32 0.0, %v1145
        %v1147 = vpop.f32.mrf.mxu0
        %v1148 = vpop.f32.mrf.mxu0
        %v1149 = vpop.f32.mrf.mxu0
        %1150 = vdwg.mxu0
        %v1155 = vunpack.c.l.b16 %v1090
        %v1156 = vunpack.c.l.b16 %v1091
        %v1157 = vunpack.c.l.b16 %v1092
        %v1158 = vunpack.c.l.b16 %v1093
        %v1159 = vpack.c.b16 %v1156, %v1155
        %v1160 = vpack.c.b16 %v1158, %v1157
        %1163 = vmatprep.subr.bf16.mxu0 0
        %1164 = vmatpush1.bf16.msra.mxu0 0
        %1165 = vmatprep.subr.bf16.mxu0 0
        %1166 = vmatpush1.bf16.msra.mxu0 0
        %1167 = vmatprep.subr.bf16.mxu0 0
        %1168 = vmatpush1.bf16.msra.mxu0 0
        %1169 = vmatprep.subr.bf16.mxu0 0
        %1170 = vmatpush1.bf16.msra.mxu0 0
        %1171 = vmatprep.subr.bf16.mxu0 0
        %1172 = vmatpush1.bf16.msra.mxu0 0
        %1173 = vmatprep.subr.bf16.mxu0 0
        %1174 = vmatpush1.bf16.msra.mxu0 0
        %1175 = vmatprep.subr.bf16.mxu0 0
        %1176 = vmatpush1.bf16.msra.mxu0 %v1160
        %1177 = vmatprep.subr.bf16.mxu0 0
        %1178 = vmatpush1.bf16.msra.mxu0 %v1159
        %1179 = vmatprep.subr.bf16.mxu0 0
        %1180 = vmatpush2.bf16.msra.mxu0 0
        %1181 = vmatprep.subr.bf16.mxu0 0
        %1182 = vmatpush2.bf16.msra.mxu0 0
        %1183 = vmatprep.subr.bf16.mxu0 0
        %1184 = vmatpush2.bf16.msra.mxu0 0
        %1185 = vmatprep.subr.bf16.mxu0 0
        %1186 = vmatpush2.bf16.msra.mxu0 0
        %1187 = vmatprep.subr.bf16.mxu0 0
        %1188 = vmatpush2.bf16.msra.mxu0 0
        %1189 = vmatprep.subr.bf16.mxu0 0
        %1190 = vmatpush2.bf16.msra.mxu0 0
        %1191 = vmatprep.subr.bf16.mxu0 0
        %1192 = vmatpush2.bf16.msra.mxu0 0
        %1193 = vmatprep.subr.bf16.mxu0 0
        %1194 = vmatpush2.bf16.msra.mxu0 0
        %1195 = vmatprep.mubr.bf16.mxu0 0
        %1196 = vmatmul.mubr.bf16.gmra.mxu0 %v454
        %v1197 = vpop.f32.mrf.mxu0
        %v1198 = vadd.f32 %v1146, %v1197
        %v1199 = vpop.f32.mrf.mxu0
        %v1200 = vpop.f32.mrf.mxu0
        %v1201 = vpop.f32.mrf.mxu0
        %1202 = vdwg.mxu0
        %s1203 = scalar_lea.vmem %s3, 2
        %v1204 = vld [vmem:[%s1203] sm:$0x1]
        %v1206 = vlaneseq
        %v1207 = vshrl.u32 %v1206, 7
        %v1208 = vsub.s32 0, %v1207
        %v1209 = vrot.slane %v1204, %v1208
        %v1211 = vadd.f32 %v1198, %v1209
        %vm1212 = vcmp.ge.f32.partialorder %v1211, 0.0
        %v1213 = vmul.f32 %v1211, 0.01
        %v1214 = vsel %vm1212, %v1211, %v1213
        %v1215 = vpack.c.bf16 %v1214, %v1214
        %s1216 = scalar_lea.vmem %s4, 128
        %v1217 = vld [vmem:[%s1216] sm:$0xf]
        %v1218 = vld [vmem:[%s1216 + $0x4] sm:$0xf]
        %v1219 = vld [vmem:[%s1216 + $0x8] sm:$0xf]
        %v1220 = vld [vmem:[%s1216 + $0xc] sm:$0xf]
        %v1221 = vld [vmem:[%s1216 + $0x10] sm:$0xf]
        %v1222 = vld [vmem:[%s1216 + $0x14] sm:$0xf]
        %v1223 = vld [vmem:[%s1216 + $0x18] sm:$0xf]
        %v1224 = vld [vmem:[%s1216 + $0x1c] sm:$0xf]
        %v1225 = vld [vmem:[%s1216 + $0x20] sm:$0xf]
        %v1226 = vld [vmem:[%s1216 + $0x24] sm:$0xf]
        %v1227 = vld [vmem:[%s1216 + $0x28] sm:$0xf]
        %v1228 = vld [vmem:[%s1216 + $0x2c] sm:$0xf]
        %v1229 = vld [vmem:[%s1216 + $0x30] sm:$0xf]
        %v1230 = vld [vmem:[%s1216 + $0x34] sm:$0xf]
        %v1231 = vld [vmem:[%s1216 + $0x38] sm:$0xf]
        %v1232 = vld [vmem:[%s1216 + $0x3c] sm:$0xf]
        %s1233 = scalar_lea.vmem %s5, 2
        %v1234 = vld [vmem:[%s1233] sm:$0x1]
        %v1236 = vlaneseq
        %v1237 = vshrl.u32 %v1236, 7
        %v1238 = vsub.s32 0, %v1237
        %v1239 = vrot.slane %v1234, %v1238
        %v1257 = vunpack.c.l.b16 %v1217
        %v1258 = vunpack.c.l.b16 %v1218
        %v1259 = vunpack.c.l.b16 %v1219
        %v1260 = vunpack.c.l.b16 %v1220
        %v1261 = vunpack.c.l.b16 %v1221
        %v1262 = vunpack.c.l.b16 %v1222
        %v1263 = vunpack.c.l.b16 %v1223
        %v1264 = vunpack.c.l.b16 %v1224
        %v1265 = vunpack.c.l.b16 %v1225
        %v1266 = vunpack.c.l.b16 %v1226
        %v1267 = vunpack.c.l.b16 %v1227
        %v1268 = vunpack.c.l.b16 %v1228
        %v1269 = vunpack.c.l.b16 %v1229
        %v1270 = vunpack.c.l.b16 %v1230
        %v1271 = vunpack.c.l.b16 %v1231
        %v1272 = vunpack.c.l.b16 %v1232
        %v1273 = vpack.c.b16 %v1258, %v1257
        %v1274 = vpack.c.b16 %v1260, %v1259
        %v1275 = vpack.c.b16 %v1262, %v1261
        %v1276 = vpack.c.b16 %v1264, %v1263
        %v1277 = vpack.c.b16 %v1266, %v1265
        %v1278 = vpack.c.b16 %v1268, %v1267
        %v1279 = vpack.c.b16 %v1270, %v1269
        %v1280 = vpack.c.b16 %v1272, %v1271
        %1289 = vmatprep.subr.bf16.mxu0 0
        %1290 = vmatpush1.bf16.msra.mxu0 %v1280
        %1291 = vmatprep.subr.bf16.mxu0 0
        %1292 = vmatpush1.bf16.msra.mxu0 %v1279
        %1293 = vmatprep.subr.bf16.mxu0 0
        %1294 = vmatpush1.bf16.msra.mxu0 %v1278
        %1295 = vmatprep.subr.bf16.mxu0 0
        %1296 = vmatpush1.bf16.msra.mxu0 %v1277
        %1297 = vmatprep.subr.bf16.mxu0 0
        %1298 = vmatpush1.bf16.msra.mxu0 %v1276
        %1299 = vmatprep.subr.bf16.mxu0 0
        %1300 = vmatpush1.bf16.msra.mxu0 %v1275
        %1301 = vmatprep.subr.bf16.mxu0 0
        %1302 = vmatpush1.bf16.msra.mxu0 %v1274
        %1303 = vmatprep.subr.bf16.mxu0 0
        %1304 = vmatpush1.bf16.msra.mxu0 %v1273
        %1305 = vmatprep.subr.bf16.mxu0 0
        %1306 = vmatpush2.bf16.msra.mxu0 0
        %1307 = vmatprep.subr.bf16.mxu0 0
        %1308 = vmatpush2.bf16.msra.mxu0 0
        %1309 = vmatprep.subr.bf16.mxu0 0
        %1310 = vmatpush2.bf16.msra.mxu0 0
        %1311 = vmatprep.subr.bf16.mxu0 0
        %1312 = vmatpush2.bf16.msra.mxu0 0
        %1313 = vmatprep.subr.bf16.mxu0 0
        %1314 = vmatpush2.bf16.msra.mxu0 0
        %1315 = vmatprep.subr.bf16.mxu0 0
        %1316 = vmatpush2.bf16.msra.mxu0 0
        %1317 = vmatprep.subr.bf16.mxu0 0
        %1318 = vmatpush2.bf16.msra.mxu0 0
        %1319 = vmatprep.subr.bf16.mxu0 0
        %1320 = vmatpush2.bf16.msra.mxu0 0
        %1321 = vmatprep.mubr.bf16.mxu0 0
        %1322 = vmatmul.mubr.bf16.gmra.mxu0 %v1215
        %v1323 = vpop.f32.mrf.mxu0
        %v1324 = vadd.f32 %v1239, %v1323
        %v1325 = vpop.f32.mrf.mxu0
        %v1326 = vpop.f32.mrf.mxu0
        %v1327 = vpop.f32.mrf.mxu0
        %1328 = vdwg.mxu0
        %v1329 = vpack.c.bf16 %v1324, %v1324
        %v1331 = vsel %vm425, %v1329, 0
        %1333 = vmatprep.subr.bf16.mxu0 0
        %1334 = vmatpush1.bf16.msra.mxu0 0
        %1335 = vmatprep.subr.bf16.mxu0 0
        %1336 = vmatpush1.bf16.msra.mxu0 0
        %1337 = vmatprep.subr.bf16.mxu0 0
        %1338 = vmatpush1.bf16.msra.mxu0 0
        %1339 = vmatprep.subr.bf16.mxu0 0
        %1340 = vmatpush1.bf16.msra.mxu0 0
        %1341 = vmatprep.subr.bf16.mxu0 0
        %1342 = vmatpush1.bf16.msra.mxu0 0
        %1343 = vmatprep.subr.bf16.mxu0 0
        %1344 = vmatpush1.bf16.msra.mxu0 0
        %1345 = vmatprep.subr.bf16.mxu0 0
        %1346 = vmatpush1.bf16.msra.mxu0 %v450
        %1347 = vmatprep.subr.bf16.mxu0 0
        %1348 = vmatpush1.bf16.msra.mxu0 %v449
        %1349 = vmatprep.subr.bf16.mxu0 0
        %1350 = vmatpush2.bf16.msra.mxu0 0
        %1351 = vmatprep.subr.bf16.mxu0 0
        %1352 = vmatpush2.bf16.msra.mxu0 0
        %1353 = vmatprep.subr.bf16.mxu0 0
        %1354 = vmatpush2.bf16.msra.mxu0 0
        %1355 = vmatprep.subr.bf16.mxu0 0
        %1356 = vmatpush2.bf16.msra.mxu0 0
        %1357 = vmatprep.subr.bf16.mxu0 0
        %1358 = vmatpush2.bf16.msra.mxu0 0
        %1359 = vmatprep.subr.bf16.mxu0 0
        %1360 = vmatpush2.bf16.msra.mxu0 0
        %1361 = vmatprep.subr.bf16.mxu0 0
        %1362 = vmatpush2.bf16.msra.mxu0 0
        %1363 = vmatprep.subr.bf16.mxu0 0
        %1364 = vmatpush2.bf16.msra.mxu0 0
        %1365 = vmatprep.mubr.bf16.mxu0 0
        %1366 = vmatmul.mubr.bf16.gmra.mxu0 %v1331
        %v1367 = vpop.f32.mrf.mxu0
        %v1368 = vadd.f32 0.0, %v1367
        %v1369 = vpop.f32.mrf.mxu0
        %v1370 = vpop.f32.mrf.mxu0
        %v1371 = vpop.f32.mrf.mxu0
        %1372 = vdwg.mxu0
        %v1373 = vmul.f32 %v1368, %v1368
        %1375 = vrot.lane.b32.xlu0 %v1373, 96
        %v1376 = vpop.permute.xlu0 %1375
        %v1378 = vadd.f32 %v1373, %v1376
        %v1379 = vadd.f32 %v1378, 1e-12
        %v1380 = vrsqrt.pop %v1379
        %v1381 = vmul.f32 %v1368, %v1380
        %1383 = vrot.lane.b32.xlu0 %v1380, 32
        %v1384 = vpop.permute.xlu0 %1383
        %v1386 = vmul.f32 %v1368, %v1384
        %s1387 = scalar_lea.vmem %s1, 48
        %v1388 = vld [vmem:[%s1387] sm:$0xf]
        %v1389 = vld [vmem:[%s1387 + $0x4] sm:$0xf]
        %v1390 = vld [vmem:[%s1387 + $0x8] sm:$0xf]
        %v1391 = vld [vmem:[%s1387 + $0xc] sm:$0xf]
        %s1392 = scalar_lea.vmem %s2, 48
        %v1393 = vld [vmem:[%s1392] sm:$0xf]
        %v1394 = vld [vmem:[%s1392 + $0x4] sm:$0xf]
        %v1395 = vld [vmem:[%s1392 + $0x8] sm:$0xf]
        %v1396 = vld [vmem:[%s1392 + $0xc] sm:$0xf]
        %v1401 = vunpack.c.l.b16 %v1393
        %v1402 = vunpack.c.l.b16 %v1394
        %v1403 = vunpack.c.l.b16 %v1395
        %v1404 = vunpack.c.l.b16 %v1396
        %v1405 = vpack.c.b16 %v1402, %v1401
        %v1406 = vpack.c.b16 %v1404, %v1403
        %1409 = vmatprep.subr.bf16.mxu0 0
        %1410 = vmatpush1.bf16.msra.mxu0 0
        %1411 = vmatprep.subr.bf16.mxu0 0
        %1412 = vmatpush1.bf16.msra.mxu0 0
        %1413 = vmatprep.subr.bf16.mxu0 0
        %1414 = vmatpush1.bf16.msra.mxu0 0
        %1415 = vmatprep.subr.bf16.mxu0 0
        %1416 = vmatpush1.bf16.msra.mxu0 0
        %1417 = vmatprep.subr.bf16.mxu0 0
        %1418 = vmatpush1.bf16.msra.mxu0 0
        %1419 = vmatprep.subr.bf16.mxu0 0
        %1420 = vmatpush1.bf16.msra.mxu0 0
        %1421 = vmatprep.subr.bf16.mxu0 0
        %1422 = vmatpush1.bf16.msra.mxu0 %v1406
        %1423 = vmatprep.subr.bf16.mxu0 0
        %1424 = vmatpush1.bf16.msra.mxu0 %v1405
        %1425 = vmatprep.subr.bf16.mxu0 0
        %1426 = vmatpush2.bf16.msra.mxu0 0
        %1427 = vmatprep.subr.bf16.mxu0 0
        %1428 = vmatpush2.bf16.msra.mxu0 0
        %1429 = vmatprep.subr.bf16.mxu0 0
        %1430 = vmatpush2.bf16.msra.mxu0 0
        %1431 = vmatprep.subr.bf16.mxu0 0
        %1432 = vmatpush2.bf16.msra.mxu0 0
        %1433 = vmatprep.subr.bf16.mxu0 0
        %1434 = vmatpush2.bf16.msra.mxu0 0
        %1435 = vmatprep.subr.bf16.mxu0 0
        %1436 = vmatpush2.bf16.msra.mxu0 0
        %1437 = vmatprep.subr.bf16.mxu0 0
        %1438 = vmatpush2.bf16.msra.mxu0 0
        %1439 = vmatprep.subr.bf16.mxu0 0
        %1440 = vmatpush2.bf16.msra.mxu0 0
        %1441 = vmatprep.mubr.bf16.mxu0 0
        %1442 = vmatmul.mubr.bf16.gmra.mxu0 %v516
        %v1443 = vpop.f32.mrf.mxu0
        %v1444 = vadd.f32 0.0, %v1443
        %v1445 = vpop.f32.mrf.mxu0
        %v1446 = vpop.f32.mrf.mxu0
        %v1447 = vpop.f32.mrf.mxu0
        %1448 = vdwg.mxu0
        %v1453 = vunpack.c.l.b16 %v1388
        %v1454 = vunpack.c.l.b16 %v1389
        %v1455 = vunpack.c.l.b16 %v1390
        %v1456 = vunpack.c.l.b16 %v1391
        %v1457 = vpack.c.b16 %v1454, %v1453
        %v1458 = vpack.c.b16 %v1456, %v1455
        %1461 = vmatprep.subr.bf16.mxu0 0
        %1462 = vmatpush1.bf16.msra.mxu0 0
        %1463 = vmatprep.subr.bf16.mxu0 0
        %1464 = vmatpush1.bf16.msra.mxu0 0
        %1465 = vmatprep.subr.bf16.mxu0 0
        %1466 = vmatpush1.bf16.msra.mxu0 0
        %1467 = vmatprep.subr.bf16.mxu0 0
        %1468 = vmatpush1.bf16.msra.mxu0 0
        %1469 = vmatprep.subr.bf16.mxu0 0
        %1470 = vmatpush1.bf16.msra.mxu0 0
        %1471 = vmatprep.subr.bf16.mxu0 0
        %1472 = vmatpush1.bf16.msra.mxu0 0
        %1473 = vmatprep.subr.bf16.mxu0 0
        %1474 = vmatpush1.bf16.msra.mxu0 %v1458
        %1475 = vmatprep.subr.bf16.mxu0 0
        %1476 = vmatpush1.bf16.msra.mxu0 %v1457
        %1477 = vmatprep.subr.bf16.mxu0 0
        %1478 = vmatpush2.bf16.msra.mxu0 0
        %1479 = vmatprep.subr.bf16.mxu0 0
        %1480 = vmatpush2.bf16.msra.mxu0 0
        %1481 = vmatprep.subr.bf16.mxu0 0
        %1482 = vmatpush2.bf16.msra.mxu0 0
        %1483 = vmatprep.subr.bf16.mxu0 0
        %1484 = vmatpush2.bf16.msra.mxu0 0
        %1485 = vmatprep.subr.bf16.mxu0 0
        %1486 = vmatpush2.bf16.msra.mxu0 0
        %1487 = vmatprep.subr.bf16.mxu0 0
        %1488 = vmatpush2.bf16.msra.mxu0 0
        %1489 = vmatprep.subr.bf16.mxu0 0
        %1490 = vmatpush2.bf16.msra.mxu0 0
        %1491 = vmatprep.subr.bf16.mxu0 0
        %1492 = vmatpush2.bf16.msra.mxu0 0
        %1493 = vmatprep.mubr.bf16.mxu0 0
        %1494 = vmatmul.mubr.bf16.gmra.mxu0 %v454
        %v1495 = vpop.f32.mrf.mxu0
        %v1496 = vadd.f32 %v1444, %v1495
        %v1497 = vpop.f32.mrf.mxu0
        %v1498 = vpop.f32.mrf.mxu0
        %v1499 = vpop.f32.mrf.mxu0
        %1500 = vdwg.mxu0
        %s1501 = scalar_lea.vmem %s3, 3
        %v1502 = vld [vmem:[%s1501] sm:$0x1]
        %v1504 = vlaneseq
        %v1505 = vshrl.u32 %v1504, 7
        %v1506 = vsub.s32 0, %v1505
        %v1507 = vrot.slane %v1502, %v1506
        %v1509 = vadd.f32 %v1496, %v1507
        %vm1510 = vcmp.ge.f32.partialorder %v1509, 0.0
        %v1511 = vmul.f32 %v1509, 0.01
        %v1512 = vsel %vm1510, %v1509, %v1511
        %v1513 = vpack.c.bf16 %v1512, %v1512
        %s1514 = scalar_lea.vmem %s4, 192
        %v1515 = vld [vmem:[%s1514] sm:$0xf]
        %v1516 = vld [vmem:[%s1514 + $0x4] sm:$0xf]
        %v1517 = vld [vmem:[%s1514 + $0x8] sm:$0xf]
        %v1518 = vld [vmem:[%s1514 + $0xc] sm:$0xf]
        %v1519 = vld [vmem:[%s1514 + $0x10] sm:$0xf]
        %v1520 = vld [vmem:[%s1514 + $0x14] sm:$0xf]
        %v1521 = vld [vmem:[%s1514 + $0x18] sm:$0xf]
        %v1522 = vld [vmem:[%s1514 + $0x1c] sm:$0xf]
        %v1523 = vld [vmem:[%s1514 + $0x20] sm:$0xf]
        %v1524 = vld [vmem:[%s1514 + $0x24] sm:$0xf]
        %v1525 = vld [vmem:[%s1514 + $0x28] sm:$0xf]
        %v1526 = vld [vmem:[%s1514 + $0x2c] sm:$0xf]
        %v1527 = vld [vmem:[%s1514 + $0x30] sm:$0xf]
        %v1528 = vld [vmem:[%s1514 + $0x34] sm:$0xf]
        %v1529 = vld [vmem:[%s1514 + $0x38] sm:$0xf]
        %v1530 = vld [vmem:[%s1514 + $0x3c] sm:$0xf]
        %s1531 = scalar_lea.vmem %s5, 3
        %v1532 = vld [vmem:[%s1531] sm:$0x1]
        %v1534 = vlaneseq
        %v1535 = vshrl.u32 %v1534, 7
        %v1536 = vsub.s32 0, %v1535
        %v1537 = vrot.slane %v1532, %v1536
        %v1555 = vunpack.c.l.b16 %v1515
        %v1556 = vunpack.c.l.b16 %v1516
        %v1557 = vunpack.c.l.b16 %v1517
        %v1558 = vunpack.c.l.b16 %v1518
        %v1559 = vunpack.c.l.b16 %v1519
        %v1560 = vunpack.c.l.b16 %v1520
        %v1561 = vunpack.c.l.b16 %v1521
        %v1562 = vunpack.c.l.b16 %v1522
        %v1563 = vunpack.c.l.b16 %v1523
        %v1564 = vunpack.c.l.b16 %v1524
        %v1565 = vunpack.c.l.b16 %v1525
        %v1566 = vunpack.c.l.b16 %v1526
        %v1567 = vunpack.c.l.b16 %v1527
        %v1568 = vunpack.c.l.b16 %v1528
        %v1569 = vunpack.c.l.b16 %v1529
        %v1570 = vunpack.c.l.b16 %v1530
        %v1571 = vpack.c.b16 %v1556, %v1555
        %v1572 = vpack.c.b16 %v1558, %v1557
        %v1573 = vpack.c.b16 %v1560, %v1559
        %v1574 = vpack.c.b16 %v1562, %v1561
        %v1575 = vpack.c.b16 %v1564, %v1563
        %v1576 = vpack.c.b16 %v1566, %v1565
        %v1577 = vpack.c.b16 %v1568, %v1567
        %v1578 = vpack.c.b16 %v1570, %v1569
        %1587 = vmatprep.subr.bf16.mxu0 0
        %1588 = vmatpush1.bf16.msra.mxu0 %v1578
        %1589 = vmatprep.subr.bf16.mxu0 0
        %1590 = vmatpush1.bf16.msra.mxu0 %v1577
        %1591 = vmatprep.subr.bf16.mxu0 0
        %1592 = vmatpush1.bf16.msra.mxu0 %v1576
        %1593 = vmatprep.subr.bf16.mxu0 0
        %1594 = vmatpush1.bf16.msra.mxu0 %v1575
        %1595 = vmatprep.subr.bf16.mxu0 0
        %1596 = vmatpush1.bf16.msra.mxu0 %v1574
        %1597 = vmatprep.subr.bf16.mxu0 0
        %1598 = vmatpush1.bf16.msra.mxu0 %v1573
        %1599 = vmatprep.subr.bf16.mxu0 0
        %1600 = vmatpush1.bf16.msra.mxu0 %v1572
        %1601 = vmatprep.subr.bf16.mxu0 0
        %1602 = vmatpush1.bf16.msra.mxu0 %v1571
        %1603 = vmatprep.subr.bf16.mxu0 0
        %1604 = vmatpush2.bf16.msra.mxu0 0
        %1605 = vmatprep.subr.bf16.mxu0 0
        %1606 = vmatpush2.bf16.msra.mxu0 0
        %1607 = vmatprep.subr.bf16.mxu0 0
        %1608 = vmatpush2.bf16.msra.mxu0 0
        %1609 = vmatprep.subr.bf16.mxu0 0
        %1610 = vmatpush2.bf16.msra.mxu0 0
        %1611 = vmatprep.subr.bf16.mxu0 0
        %1612 = vmatpush2.bf16.msra.mxu0 0
        %1613 = vmatprep.subr.bf16.mxu0 0
        %1614 = vmatpush2.bf16.msra.mxu0 0
        %1615 = vmatprep.subr.bf16.mxu0 0
        %1616 = vmatpush2.bf16.msra.mxu0 0
        %1617 = vmatprep.subr.bf16.mxu0 0
        %1618 = vmatpush2.bf16.msra.mxu0 0
        %1619 = vmatprep.mubr.bf16.mxu0 0
        %1620 = vmatmul.mubr.bf16.gmra.mxu0 %v1513
        %v1621 = vpop.f32.mrf.mxu0
        %v1622 = vadd.f32 %v1537, %v1621
        %v1623 = vpop.f32.mrf.mxu0
        %v1624 = vpop.f32.mrf.mxu0
        %v1625 = vpop.f32.mrf.mxu0
        %1626 = vdwg.mxu0
        %v1627 = vpack.c.bf16 %v1622, %v1622
        %v1629 = vsel %vm425, %v1627, 0
        %1631 = vmatprep.subr.bf16.mxu0 0
        %1632 = vmatpush1.bf16.msra.mxu0 0
        %1633 = vmatprep.subr.bf16.mxu0 0
        %1634 = vmatpush1.bf16.msra.mxu0 0
        %1635 = vmatprep.subr.bf16.mxu0 0
        %1636 = vmatpush1.bf16.msra.mxu0 0
        %1637 = vmatprep.subr.bf16.mxu0 0
        %1638 = vmatpush1.bf16.msra.mxu0 0
        %1639 = vmatprep.subr.bf16.mxu0 0
        %1640 = vmatpush1.bf16.msra.mxu0 0
        %1641 = vmatprep.subr.bf16.mxu0 0
        %1642 = vmatpush1.bf16.msra.mxu0 0
        %1643 = vmatprep.subr.bf16.mxu0 0
        %1644 = vmatpush1.bf16.msra.mxu0 %v450
        %1645 = vmatprep.subr.bf16.mxu0 0
        %1646 = vmatpush1.bf16.msra.mxu0 %v449
        %1647 = vmatprep.subr.bf16.mxu0 0
        %1648 = vmatpush2.bf16.msra.mxu0 0
        %1649 = vmatprep.subr.bf16.mxu0 0
        %1650 = vmatpush2.bf16.msra.mxu0 0
        %1651 = vmatprep.subr.bf16.mxu0 0
        %1652 = vmatpush2.bf16.msra.mxu0 0
        %1653 = vmatprep.subr.bf16.mxu0 0
        %1654 = vmatpush2.bf16.msra.mxu0 0
        %1655 = vmatprep.subr.bf16.mxu0 0
        %1656 = vmatpush2.bf16.msra.mxu0 0
        %1657 = vmatprep.subr.bf16.mxu0 0
        %1658 = vmatpush2.bf16.msra.mxu0 0
        %1659 = vmatprep.subr.bf16.mxu0 0
        %1660 = vmatpush2.bf16.msra.mxu0 0
        %1661 = vmatprep.subr.bf16.mxu0 0
        %1662 = vmatpush2.bf16.msra.mxu0 0
        %1663 = vmatprep.mubr.bf16.mxu0 0
        %1664 = vmatmul.mubr.bf16.gmra.mxu0 %v1629
        %v1665 = vpop.f32.mrf.mxu0
        %v1666 = vadd.f32 0.0, %v1665
        %v1667 = vpop.f32.mrf.mxu0
        %v1668 = vpop.f32.mrf.mxu0
        %v1669 = vpop.f32.mrf.mxu0
        %1670 = vdwg.mxu0
        %v1671 = vmul.f32 %v1666, %v1666
        %1673 = vrot.lane.b32.xlu0 %v1671, 96
        %v1674 = vpop.permute.xlu0 %1673
        %v1676 = vadd.f32 %v1671, %v1674
        %v1677 = vadd.f32 %v1676, 1e-12
        %v1678 = vrsqrt.pop %v1677
        %v1679 = vmul.f32 %v1666, %v1678
        %1681 = vrot.lane.b32.xlu0 %v1678, 32
        %v1682 = vpop.permute.xlu0 %1681
        %v1684 = vmul.f32 %v1666, %v1682
        %s1685 = scalar_lea.vmem %s1, 64
        %v1686 = vld [vmem:[%s1685] sm:$0xf]
        %v1687 = vld [vmem:[%s1685 + $0x4] sm:$0xf]
        %v1688 = vld [vmem:[%s1685 + $0x8] sm:$0xf]
        %v1689 = vld [vmem:[%s1685 + $0xc] sm:$0xf]
        %s1690 = scalar_lea.vmem %s2, 64
        %v1691 = vld [vmem:[%s1690] sm:$0xf]
        %v1692 = vld [vmem:[%s1690 + $0x4] sm:$0xf]
        %v1693 = vld [vmem:[%s1690 + $0x8] sm:$0xf]
        %v1694 = vld [vmem:[%s1690 + $0xc] sm:$0xf]
        %v1699 = vunpack.c.l.b16 %v1691
        %v1700 = vunpack.c.l.b16 %v1692
        %v1701 = vunpack.c.l.b16 %v1693
        %v1702 = vunpack.c.l.b16 %v1694
        %v1703 = vpack.c.b16 %v1700, %v1699
        %v1704 = vpack.c.b16 %v1702, %v1701
        %1707 = vmatprep.subr.bf16.mxu0 0
        %1708 = vmatpush1.bf16.msra.mxu0 0
        %1709 = vmatprep.subr.bf16.mxu0 0
        %1710 = vmatpush1.bf16.msra.mxu0 0
        %1711 = vmatprep.subr.bf16.mxu0 0
        %1712 = vmatpush1.bf16.msra.mxu0 0
        %1713 = vmatprep.subr.bf16.mxu0 0
        %1714 = vmatpush1.bf16.msra.mxu0 0
        %1715 = vmatprep.subr.bf16.mxu0 0
        %1716 = vmatpush1.bf16.msra.mxu0 0
        %1717 = vmatprep.subr.bf16.mxu0 0
        %1718 = vmatpush1.bf16.msra.mxu0 0
        %1719 = vmatprep.subr.bf16.mxu0 0
        %1720 = vmatpush1.bf16.msra.mxu0 %v1704
        %1721 = vmatprep.subr.bf16.mxu0 0
        %1722 = vmatpush1.bf16.msra.mxu0 %v1703
        %1723 = vmatprep.subr.bf16.mxu0 0
        %1724 = vmatpush2.bf16.msra.mxu0 0
        %1725 = vmatprep.subr.bf16.mxu0 0
        %1726 = vmatpush2.bf16.msra.mxu0 0
        %1727 = vmatprep.subr.bf16.mxu0 0
        %1728 = vmatpush2.bf16.msra.mxu0 0
        %1729 = vmatprep.subr.bf16.mxu0 0
        %1730 = vmatpush2.bf16.msra.mxu0 0
        %1731 = vmatprep.subr.bf16.mxu0 0
        %1732 = vmatpush2.bf16.msra.mxu0 0
        %1733 = vmatprep.subr.bf16.mxu0 0
        %1734 = vmatpush2.bf16.msra.mxu0 0
        %1735 = vmatprep.subr.bf16.mxu0 0
        %1736 = vmatpush2.bf16.msra.mxu0 0
        %1737 = vmatprep.subr.bf16.mxu0 0
        %1738 = vmatpush2.bf16.msra.mxu0 0
        %1739 = vmatprep.mubr.bf16.mxu0 0
        %1740 = vmatmul.mubr.bf16.gmra.mxu0 %v516
        %v1741 = vpop.f32.mrf.mxu0
        %v1742 = vadd.f32 0.0, %v1741
        %v1743 = vpop.f32.mrf.mxu0
        %v1744 = vpop.f32.mrf.mxu0
        %v1745 = vpop.f32.mrf.mxu0
        %1746 = vdwg.mxu0
        %v1751 = vunpack.c.l.b16 %v1686
        %v1752 = vunpack.c.l.b16 %v1687
        %v1753 = vunpack.c.l.b16 %v1688
        %v1754 = vunpack.c.l.b16 %v1689
        %v1755 = vpack.c.b16 %v1752, %v1751
        %v1756 = vpack.c.b16 %v1754, %v1753
        %1759 = vmatprep.subr.bf16.mxu0 0
        %1760 = vmatpush1.bf16.msra.mxu0 0
        %1761 = vmatprep.subr.bf16.mxu0 0
        %1762 = vmatpush1.bf16.msra.mxu0 0
        %1763 = vmatprep.subr.bf16.mxu0 0
        %1764 = vmatpush1.bf16.msra.mxu0 0
        %1765 = vmatprep.subr.bf16.mxu0 0
        %1766 = vmatpush1.bf16.msra.mxu0 0
        %1767 = vmatprep.subr.bf16.mxu0 0
        %1768 = vmatpush1.bf16.msra.mxu0 0
        %1769 = vmatprep.subr.bf16.mxu0 0
        %1770 = vmatpush1.bf16.msra.mxu0 0
        %1771 = vmatprep.subr.bf16.mxu0 0
        %1772 = vmatpush1.bf16.msra.mxu0 %v1756
        %1773 = vmatprep.subr.bf16.mxu0 0
        %1774 = vmatpush1.bf16.msra.mxu0 %v1755
        %1775 = vmatprep.subr.bf16.mxu0 0
        %1776 = vmatpush2.bf16.msra.mxu0 0
        %1777 = vmatprep.subr.bf16.mxu0 0
        %1778 = vmatpush2.bf16.msra.mxu0 0
        %1779 = vmatprep.subr.bf16.mxu0 0
        %1780 = vmatpush2.bf16.msra.mxu0 0
        %1781 = vmatprep.subr.bf16.mxu0 0
        %1782 = vmatpush2.bf16.msra.mxu0 0
        %1783 = vmatprep.subr.bf16.mxu0 0
        %1784 = vmatpush2.bf16.msra.mxu0 0
        %1785 = vmatprep.subr.bf16.mxu0 0
        %1786 = vmatpush2.bf16.msra.mxu0 0
        %1787 = vmatprep.subr.bf16.mxu0 0
        %1788 = vmatpush2.bf16.msra.mxu0 0
        %1789 = vmatprep.subr.bf16.mxu0 0
        %1790 = vmatpush2.bf16.msra.mxu0 0
        %1791 = vmatprep.mubr.bf16.mxu0 0
        %1792 = vmatmul.mubr.bf16.gmra.mxu0 %v454
        %v1793 = vpop.f32.mrf.mxu0
        %v1794 = vadd.f32 %v1742, %v1793
        %v1795 = vpop.f32.mrf.mxu0
        %v1796 = vpop.f32.mrf.mxu0
        %v1797 = vpop.f32.mrf.mxu0
        %1798 = vdwg.mxu0
        %s1799 = scalar_lea.vmem %s3, 4
        %v1800 = vld [vmem:[%s1799] sm:$0x1]
        %v1802 = vlaneseq
        %v1803 = vshrl.u32 %v1802, 7
        %v1804 = vsub.s32 0, %v1803
        %v1805 = vrot.slane %v1800, %v1804
        %v1807 = vadd.f32 %v1794, %v1805
        %vm1808 = vcmp.ge.f32.partialorder %v1807, 0.0
        %v1809 = vmul.f32 %v1807, 0.01
        %v1810 = vsel %vm1808, %v1807, %v1809
        %v1811 = vpack.c.bf16 %v1810, %v1810
        %s1812 = scalar_lea.vmem %s4, 256
        %v1813 = vld [vmem:[%s1812] sm:$0xf]
        %v1814 = vld [vmem:[%s1812 + $0x4] sm:$0xf]
        %v1815 = vld [vmem:[%s1812 + $0x8] sm:$0xf]
        %v1816 = vld [vmem:[%s1812 + $0xc] sm:$0xf]
        %v1817 = vld [vmem:[%s1812 + $0x10] sm:$0xf]
        %v1818 = vld [vmem:[%s1812 + $0x14] sm:$0xf]
        %v1819 = vld [vmem:[%s1812 + $0x18] sm:$0xf]
        %v1820 = vld [vmem:[%s1812 + $0x1c] sm:$0xf]
        %v1821 = vld [vmem:[%s1812 + $0x20] sm:$0xf]
        %v1822 = vld [vmem:[%s1812 + $0x24] sm:$0xf]
        %v1823 = vld [vmem:[%s1812 + $0x28] sm:$0xf]
        %v1824 = vld [vmem:[%s1812 + $0x2c] sm:$0xf]
        %v1825 = vld [vmem:[%s1812 + $0x30] sm:$0xf]
        %v1826 = vld [vmem:[%s1812 + $0x34] sm:$0xf]
        %v1827 = vld [vmem:[%s1812 + $0x38] sm:$0xf]
        %v1828 = vld [vmem:[%s1812 + $0x3c] sm:$0xf]
        %s1829 = scalar_lea.vmem %s5, 4
        %v1830 = vld [vmem:[%s1829] sm:$0x1]
        %v1832 = vlaneseq
        %v1833 = vshrl.u32 %v1832, 7
        %v1834 = vsub.s32 0, %v1833
        %v1835 = vrot.slane %v1830, %v1834
        %v1853 = vunpack.c.l.b16 %v1813
        %v1854 = vunpack.c.l.b16 %v1814
        %v1855 = vunpack.c.l.b16 %v1815
        %v1856 = vunpack.c.l.b16 %v1816
        %v1857 = vunpack.c.l.b16 %v1817
        %v1858 = vunpack.c.l.b16 %v1818
        %v1859 = vunpack.c.l.b16 %v1819
        %v1860 = vunpack.c.l.b16 %v1820
        %v1861 = vunpack.c.l.b16 %v1821
        %v1862 = vunpack.c.l.b16 %v1822
        %v1863 = vunpack.c.l.b16 %v1823
        %v1864 = vunpack.c.l.b16 %v1824
        %v1865 = vunpack.c.l.b16 %v1825
        %v1866 = vunpack.c.l.b16 %v1826
        %v1867 = vunpack.c.l.b16 %v1827
        %v1868 = vunpack.c.l.b16 %v1828
        %v1869 = vpack.c.b16 %v1854, %v1853
        %v1870 = vpack.c.b16 %v1856, %v1855
        %v1871 = vpack.c.b16 %v1858, %v1857
        %v1872 = vpack.c.b16 %v1860, %v1859
        %v1873 = vpack.c.b16 %v1862, %v1861
        %v1874 = vpack.c.b16 %v1864, %v1863
        %v1875 = vpack.c.b16 %v1866, %v1865
        %v1876 = vpack.c.b16 %v1868, %v1867
        %1885 = vmatprep.subr.bf16.mxu0 0
        %1886 = vmatpush1.bf16.msra.mxu0 %v1876
        %1887 = vmatprep.subr.bf16.mxu0 0
        %1888 = vmatpush1.bf16.msra.mxu0 %v1875
        %1889 = vmatprep.subr.bf16.mxu0 0
        %1890 = vmatpush1.bf16.msra.mxu0 %v1874
        %1891 = vmatprep.subr.bf16.mxu0 0
        %1892 = vmatpush1.bf16.msra.mxu0 %v1873
        %1893 = vmatprep.subr.bf16.mxu0 0
        %1894 = vmatpush1.bf16.msra.mxu0 %v1872
        %1895 = vmatprep.subr.bf16.mxu0 0
        %1896 = vmatpush1.bf16.msra.mxu0 %v1871
        %1897 = vmatprep.subr.bf16.mxu0 0
        %1898 = vmatpush1.bf16.msra.mxu0 %v1870
        %1899 = vmatprep.subr.bf16.mxu0 0
        %1900 = vmatpush1.bf16.msra.mxu0 %v1869
        %1901 = vmatprep.subr.bf16.mxu0 0
        %1902 = vmatpush2.bf16.msra.mxu0 0
        %1903 = vmatprep.subr.bf16.mxu0 0
        %1904 = vmatpush2.bf16.msra.mxu0 0
        %1905 = vmatprep.subr.bf16.mxu0 0
        %1906 = vmatpush2.bf16.msra.mxu0 0
        %1907 = vmatprep.subr.bf16.mxu0 0
        %1908 = vmatpush2.bf16.msra.mxu0 0
        %1909 = vmatprep.subr.bf16.mxu0 0
        %1910 = vmatpush2.bf16.msra.mxu0 0
        %1911 = vmatprep.subr.bf16.mxu0 0
        %1912 = vmatpush2.bf16.msra.mxu0 0
        %1913 = vmatprep.subr.bf16.mxu0 0
        %1914 = vmatpush2.bf16.msra.mxu0 0
        %1915 = vmatprep.subr.bf16.mxu0 0
        %1916 = vmatpush2.bf16.msra.mxu0 0
        %1917 = vmatprep.mubr.bf16.mxu0 0
        %1918 = vmatmul.mubr.bf16.gmra.mxu0 %v1811
        %v1919 = vpop.f32.mrf.mxu0
        %v1920 = vadd.f32 %v1835, %v1919
        %v1921 = vpop.f32.mrf.mxu0
        %v1922 = vpop.f32.mrf.mxu0
        %v1923 = vpop.f32.mrf.mxu0
        %1924 = vdwg.mxu0
        %v1925 = vpack.c.bf16 %v1920, %v1920
        %v1927 = vsel %vm425, %v1925, 0
        %1929 = vmatprep.subr.bf16.mxu0 0
        %1930 = vmatpush1.bf16.msra.mxu0 0
        %1931 = vmatprep.subr.bf16.mxu0 0
        %1932 = vmatpush1.bf16.msra.mxu0 0
        %1933 = vmatprep.subr.bf16.mxu0 0
        %1934 = vmatpush1.bf16.msra.mxu0 0
        %1935 = vmatprep.subr.bf16.mxu0 0
        %1936 = vmatpush1.bf16.msra.mxu0 0
        %1937 = vmatprep.subr.bf16.mxu0 0
        %1938 = vmatpush1.bf16.msra.mxu0 0
        %1939 = vmatprep.subr.bf16.mxu0 0
        %1940 = vmatpush1.bf16.msra.mxu0 0
        %1941 = vmatprep.subr.bf16.mxu0 0
        %1942 = vmatpush1.bf16.msra.mxu0 %v450
        %1943 = vmatprep.subr.bf16.mxu0 0
        %1944 = vmatpush1.bf16.msra.mxu0 %v449
        %1945 = vmatprep.subr.bf16.mxu0 0
        %1946 = vmatpush2.bf16.msra.mxu0 0
        %1947 = vmatprep.subr.bf16.mxu0 0
        %1948 = vmatpush2.bf16.msra.mxu0 0
        %1949 = vmatprep.subr.bf16.mxu0 0
        %1950 = vmatpush2.bf16.msra.mxu0 0
        %1951 = vmatprep.subr.bf16.mxu0 0
        %1952 = vmatpush2.bf16.msra.mxu0 0
        %1953 = vmatprep.subr.bf16.mxu0 0
        %1954 = vmatpush2.bf16.msra.mxu0 0
        %1955 = vmatprep.subr.bf16.mxu0 0
        %1956 = vmatpush2.bf16.msra.mxu0 0
        %1957 = vmatprep.subr.bf16.mxu0 0
        %1958 = vmatpush2.bf16.msra.mxu0 0
        %1959 = vmatprep.subr.bf16.mxu0 0
        %1960 = vmatpush2.bf16.msra.mxu0 0
        %1961 = vmatprep.mubr.bf16.mxu0 0
        %1962 = vmatmul.mubr.bf16.gmra.mxu0 %v1927
        %v1963 = vpop.f32.mrf.mxu0
        %v1964 = vadd.f32 0.0, %v1963
        %v1965 = vpop.f32.mrf.mxu0
        %v1966 = vpop.f32.mrf.mxu0
        %v1967 = vpop.f32.mrf.mxu0
        %1968 = vdwg.mxu0
        %v1969 = vmul.f32 %v1964, %v1964
        %1971 = vrot.lane.b32.xlu0 %v1969, 96
        %v1972 = vpop.permute.xlu0 %1971
        %v1974 = vadd.f32 %v1969, %v1972
        %v1975 = vadd.f32 %v1974, 1e-12
        %v1976 = vrsqrt.pop %v1975
        %v1977 = vmul.f32 %v1964, %v1976
        %1979 = vrot.lane.b32.xlu0 %v1976, 32
        %v1980 = vpop.permute.xlu0 %1979
        %v1982 = vmul.f32 %v1964, %v1980
        %v1983 = vadd.f32 %v1381, %v1679
        %v1984 = vadd.f32 %v1983, %v1977
        %v1985 = vadd.f32 %v1386, %v1684
        %v1986 = vadd.f32 %v1985, %v1982
        %v1987 = vmul.f32 %v785, %v1984
        %v1988 = vmul.f32 %v790, %v1986
        %1990 = vrot.lane.b32.xlu0 %v1988, 96
        %v1991 = vpop.permute.xlu0 %1990
        %v1993 = vsub.f32 %v1987, %v1991
        %1995 = vrot.lane.b32.xlu0 %v1986, 96
        %v1996 = vpop.permute.xlu0 %1995
        %v1998 = vmul.f32 %v785, %v1996
        %2000 = vrot.lane.b32.xlu0 %v1984, 32
        %v2001 = vpop.permute.xlu0 %2000
        %v2003 = vmul.f32 %v790, %v2001
        %2005 = vrot.lane.b32.xlu0 %v2003, 96
        %v2006 = vpop.permute.xlu0 %2005
        %v2008 = vadd.f32 %v1998, %v2006
        %v2009 = vmul.f32 %v1993, %v1083
        %2011 = vrot.lane.b32.xlu0 %v1088, 96
        %v2012 = vpop.permute.xlu0 %2011
        %v2014 = vmul.f32 %v2008, %v2012
        %v2015 = vsub.f32 %v2009, %v2014
        %v2016 = vmul.f32 %v1993, %v2012
        %v2017 = vmul.f32 %v2008, %v1083
        %v2018 = vadd.f32 %v2016, %v2017
        %v2019 = vmul.f32 %v785, %v785
        %v2020 = vmul.f32 %v790, %v790
        %2022 = vrot.lane.b32.xlu0 %v2020, 96
        %v2023 = vpop.permute.xlu0 %2022
        %v2025 = vadd.f32 %v2019, %v2023
        %v2026 = vmul.f32 %v1083, %v1083
        %v2027 = vmul.f32 %v1088, %v1088
        %2029 = vrot.lane.b32.xlu0 %v2027, 96
        %v2030 = vpop.permute.xlu0 %2029
        %v2032 = vadd.f32 %v2026, %v2030
        %v2033 = vmul.f32 %v1381, %v1381
        %v2034 = vmul.f32 %v1386, %v1386
        %2036 = vrot.lane.b32.xlu0 %v2034, 96
        %v2037 = vpop.permute.xlu0 %2036
        %v2039 = vadd.f32 %v2033, %v2037
        %v2040 = vmul.f32 %v1679, %v1679
        %v2041 = vadd.f32 %v2039, %v2040
        %v2042 = vmul.f32 %v1684, %v1684
        %2044 = vrot.lane.b32.xlu0 %v2042, 96
        %v2045 = vpop.permute.xlu0 %2044
        %v2047 = vadd.f32 %v2041, %v2045
        %v2048 = vmul.f32 %v2025, %v2047
        %v2049 = vmul.f32 %v1977, %v1977
        %v2050 = vmul.f32 %v1982, %v1982
        %2052 = vrot.lane.b32.xlu0 %v2050, 96
        %v2053 = vpop.permute.xlu0 %2052
        %v2055 = vadd.f32 %v2049, %v2053
        %v2056 = vmul.f32 %v2032, %v2055
        %v2057 = vadd.f32 %v2048, %v2056
        %v2058 = vmul.f32 %v2057, %v491
        %v2059 = vsub.f32 %v2015, %v2058
        %v2060 = vpack.c.bf16 %v2059, %v2059
        %2062 = vrot.lane.b32.xlu0 %v491, 96
        %v2063 = vpop.permute.xlu0 %2062
        %v2065 = vmul.f32 %v2057, %v2063
        %v2066 = vsub.f32 %v2018, %v2065
        %v2067 = vpack.c.bf16 %v2066, %v2066
        %v2068 = vld [vmem:[%s7] sm:$0xf]
        %v2069 = vld [vmem:[%s7 + $0x4] sm:$0xf]
        %v2070 = vld [vmem:[%s7 + $0x8] sm:$0xf]
        %v2071 = vld [vmem:[%s7 + $0xc] sm:$0xf]
        %v2076 = vunpack.c.l.b16 %v2068
        %v2077 = vunpack.c.l.b16 %v2069
        %v2078 = vunpack.c.l.b16 %v2070
        %v2079 = vunpack.c.l.b16 %v2071
        %v2080 = vpack.c.b16 %v2077, %v2076
        %v2081 = vpack.c.b16 %v2079, %v2078
        %v2085 = vsel %vm425, %v2060, 0
        %2087 = vmatprep.subr.bf16.mxu0 0
        %2088 = vmatpush1.bf16.msra.mxu0 0
        %2089 = vmatprep.subr.bf16.mxu0 0
        %2090 = vmatpush1.bf16.msra.mxu0 0
        %2091 = vmatprep.subr.bf16.mxu0 0
        %2092 = vmatpush1.bf16.msra.mxu0 0
        %2093 = vmatprep.subr.bf16.mxu0 0
        %2094 = vmatpush1.bf16.msra.mxu0 0
        %2095 = vmatprep.subr.bf16.mxu0 0
        %2096 = vmatpush1.bf16.msra.mxu0 0
        %2097 = vmatprep.subr.bf16.mxu0 0
        %2098 = vmatpush1.bf16.msra.mxu0 0
        %2099 = vmatprep.subr.bf16.mxu0 0
        %2100 = vmatpush1.bf16.msra.mxu0 %v2081
        %2101 = vmatprep.subr.bf16.mxu0 0
        %2102 = vmatpush1.bf16.msra.mxu0 %v2080
        %2103 = vmatprep.subr.bf16.mxu0 0
        %2104 = vmatpush2.bf16.msra.mxu0 0
        %2105 = vmatprep.subr.bf16.mxu0 0
        %2106 = vmatpush2.bf16.msra.mxu0 0
        %2107 = vmatprep.subr.bf16.mxu0 0
        %2108 = vmatpush2.bf16.msra.mxu0 0
        %2109 = vmatprep.subr.bf16.mxu0 0
        %2110 = vmatpush2.bf16.msra.mxu0 0
        %2111 = vmatprep.subr.bf16.mxu0 0
        %2112 = vmatpush2.bf16.msra.mxu0 0
        %2113 = vmatprep.subr.bf16.mxu0 0
        %2114 = vmatpush2.bf16.msra.mxu0 0
        %2115 = vmatprep.subr.bf16.mxu0 0
        %2116 = vmatpush2.bf16.msra.mxu0 0
        %2117 = vmatprep.subr.bf16.mxu0 0
        %2118 = vmatpush2.bf16.msra.mxu0 0
        %2119 = vmatprep.mubr.bf16.mxu0 0
        %2120 = vmatmul.mubr.bf16.gmra.mxu0 %v2085
        %v2121 = vpop.f32.mrf.mxu0
        %v2122 = vadd.f32 0.0, %v2121
        %v2123 = vpop.f32.mrf.mxu0
        %v2124 = vpop.f32.mrf.mxu0
        %v2125 = vpop.f32.mrf.mxu0
        %2126 = vdwg.mxu0
        %v2127 = vld [vmem:[%s8] sm:$0xf]
        %v2128 = vld [vmem:[%s8 + $0x4] sm:$0xf]
        %v2129 = vld [vmem:[%s8 + $0x8] sm:$0xf]
        %v2130 = vld [vmem:[%s8 + $0xc] sm:$0xf]
        %v2135 = vunpack.c.l.b16 %v2127
        %v2136 = vunpack.c.l.b16 %v2128
        %v2137 = vunpack.c.l.b16 %v2129
        %v2138 = vunpack.c.l.b16 %v2130
        %v2139 = vpack.c.b16 %v2136, %v2135
        %v2140 = vpack.c.b16 %v2138, %v2137
        %v2144 = vsel %vm425, %v2067, 0
        %2146 = vmatprep.subr.bf16.mxu0 0
        %2147 = vmatpush1.bf16.msra.mxu0 0
        %2148 = vmatprep.subr.bf16.mxu0 0
        %2149 = vmatpush1.bf16.msra.mxu0 0
        %2150 = vmatprep.subr.bf16.mxu0 0
        %2151 = vmatpush1.bf16.msra.mxu0 0
        %2152 = vmatprep.subr.bf16.mxu0 0
        %2153 = vmatpush1.bf16.msra.mxu0 0
        %2154 = vmatprep.subr.bf16.mxu0 0
        %2155 = vmatpush1.bf16.msra.mxu0 0
        %2156 = vmatprep.subr.bf16.mxu0 0
        %2157 = vmatpush1.bf16.msra.mxu0 0
        %2158 = vmatprep.subr.bf16.mxu0 0
        %2159 = vmatpush1.bf16.msra.mxu0 %v2140
        %2160 = vmatprep.subr.bf16.mxu0 0
        %2161 = vmatpush1.bf16.msra.mxu0 %v2139
        %2162 = vmatprep.subr.bf16.mxu0 0
        %2163 = vmatpush2.bf16.msra.mxu0 0
        %2164 = vmatprep.subr.bf16.mxu0 0
        %2165 = vmatpush2.bf16.msra.mxu0 0
        %2166 = vmatprep.subr.bf16.mxu0 0
        %2167 = vmatpush2.bf16.msra.mxu0 0
        %2168 = vmatprep.subr.bf16.mxu0 0
        %2169 = vmatpush2.bf16.msra.mxu0 0
        %2170 = vmatprep.subr.bf16.mxu0 0
        %2171 = vmatpush2.bf16.msra.mxu0 0
        %2172 = vmatprep.subr.bf16.mxu0 0
        %2173 = vmatpush2.bf16.msra.mxu0 0
        %2174 = vmatprep.subr.bf16.mxu0 0
        %2175 = vmatpush2.bf16.msra.mxu0 0
        %2176 = vmatprep.subr.bf16.mxu0 0
        %2177 = vmatpush2.bf16.msra.mxu0 0
        %2178 = vmatprep.mubr.bf16.mxu0 0
        %2179 = vmatmul.mubr.bf16.gmra.mxu0 %v2144
        %v2180 = vpop.f32.mrf.mxu0
        %v2181 = vadd.f32 0.0, %v2180
        %v2182 = vpop.f32.mrf.mxu0
        %v2183 = vpop.f32.mrf.mxu0
        %v2184 = vpop.f32.mrf.mxu0
        %2185 = vdwg.mxu0
        %v2186 = vsub.f32 %v2122, %v2181
        %2187 = vst.msk [vmem:[%s345] sm:$0xff] %vm425, %v2186
        %s2188 = sand.u32 %s241, 1
        %s2189 = scalar_lea.sflag [#allocation4], %s2188
        %s2190 = sand.u32 %s241, 1
        %s2191 = smul.addr %s2190, 8
        %s2192 = scalar_lea.vmem [#allocation3], %s2191
        // Predicated region
        $region61: #{tpu_custom_call.1} parent=55 // pred_check
          %p2193 = pneg %p251
        $region62: #{tpu_custom_call.1} parent=55 // pred_check_branch
          %2195 = sbr.rel (%p2193) target = $region64
        $region63: #{tpu_custom_call.1} parent=55 // pred_region
          %s2197 = ssub.s32 128, 128
          %2198 = vsyncadd %s2189, %s2197
          %s2199 = sadd.s32 %s28, %s27
          %s2200 = smul.addr %s2199, 128
          %s2201 = scalar_lea.hbm %s9, %s2200
          %s2203 = sshll.u32 %s2192, 4
          %s2204 = int_to_ptr.vmem [resolvable:$true] %s2203
          %2206 = dma.vmem_to_hbm [thread:$0]  %s2204, 128, %s2201, %s2189
        $region64: #{tpu_custom_call.1} parent=55 // pred_fallthru
          _
      $region56: #{tpu_custom_call.1} parent=5 // pred_fallthru
        _
      %p2207 = scmp.le.s32.totalorder 2, %s18
      // Predicated region
      $region65: #{tpu_custom_call.1} parent=5 // pred_check
        %p2208 = pneg %p2207
      $region66: #{tpu_custom_call.1} parent=5 // pred_check_branch
        %2210 = sbr.rel (%p2208) target = $region68
      $region67: #{tpu_custom_call.1} parent=5 // pred_region
        %s2211 = ssub.s32 %s18, 2
        // Predicated region
        $region69: #{tpu_custom_call.1} parent=67 // pred_check
          %p2212 = pneg %p257
        $region70: #{tpu_custom_call.1} parent=67 // pred_check_branch
          %2214 = sbr.rel (%p2212) target = $region72
        $region71: #{tpu_custom_call.1} parent=67 // pred_region
          %s2215 = sand.u32 %s242, 1
          %s2216 = scalar_lea.sflag [#allocation4], %s2215
          %s2217 = sand.u32 %s242, 1
          %s2218 = smul.addr %s2217, 8
          %s2219 = scalar_lea.vmem [#allocation3], %s2218
          %2220 = dma.done %s2216, 128
        $region72: #{tpu_custom_call.1} parent=67 // pred_fallthru
          _
      $region68: #{tpu_custom_call.1} parent=5 // pred_fallthru
        _
    $region6: #{tpu_custom_call.1} parent=1 // loop_footer
      %s22 = sadd.s32 1, %s18
    $region7: #{tpu_custom_call.1} parent=1 // loop_footer_branch
      %17 = sbr.rel target = $region3
    $region8: #{tpu_custom_call.1} parent=1 // loop_exit
      _
    %2221 = vsyncpa [#allocation4], 1
    %s2222 = scalar_lea.sflag [#allocation4], 1
    %2223 = vsyncpa %s2222, 1

</llo_original>
